<compile_context>
chip_gen: v6e
topology: v6e:2x2x1
jax: 0.10.0
libtpu: 0.0.40
codegen_flags: <defaults>
</compile_context>

<pallas_src>
import functools

import numpy as np

import jax
import jax.numpy as jnp
from jax.experimental import pallas as pl
from jax.experimental.pallas import tpu as pltpu


# ----------------------------------------------------------------------------
# Fused kernel: the whole AutoEncoder forward for one batch tile.
#
# Activations live as lane-dense 2-D values (rows = stacked per-image rows,
# lanes = W*C).  Per layer:
#   padded input = (one 0/1 row-map matmul) or max(two 0/1 row-map matmuls)
#   conv         = sum over kh of  input[kh:kh+M] @ banded_W[kh]   (+bias, ReLU)
#   [2x2 pool]   = column part here (max of two 0/1 col-select matmuls),
#                  row part in the *next* layer's row-map.
# ----------------------------------------------------------------------------
def _fused_ae_kernel(*refs, plan):
    it = iter(refs)
    x_ref = next(it)

    def mm(a, b):
        return jnp.dot(a.astype(jnp.bfloat16), b.astype(jnp.bfloat16),
                       preferred_element_type=jnp.float32)

    a = x_ref[...]                                    # (Bt*H, W*Cin) activation
    for kh_count, two_pre, pool_after in plan:
        # ---- prologue: build H-padded (maybe row-upsampled / row-pooled) rows
        if two_pre:                                   # fused max-pool row part
            pe_ref, po_ref = next(it), next(it)
            p = jnp.maximum(mm(pe_ref[...], a), mm(po_ref[...], a))
        else:                                         # pad / identity / row-upsample
            t_ref = next(it)
            p = mm(t_ref[...], a)
        # ---- banded conv: KH matmuls, kw shift folded into the weights ------
        w_ref, b_ref = next(it), next(it)
        pb = p.astype(jnp.bfloat16)
        m = pb.shape[0] - (kh_count - 1)
        acc = jnp.dot(pb[0:m, :], w_ref[0], preferred_element_type=jnp.float32)
        for kh in range(1, kh_count):
            acc = acc + jnp.dot(pb[kh:kh + m, :], w_ref[kh],
                                preferred_element_type=jnp.float32)
        a = jnp.maximum(acc + b_ref[...], 0.0)        # bias + fused ReLU (f32)
        # ---- epilogue: fused 2x2 max-pool, column part ----------------------
        if pool_after:
            se_ref, so_ref = next(it), next(it)
            a = jnp.maximum(mm(a, se_ref[...]), mm(a, so_ref[...]))

    g_ref = next(it)                                  # final valid-row gather
    o_ref = next(it)
    o_ref[...] = mm(g_ref[...], a).astype(o_ref.dtype)


# ----------------------------------------------------------------------------
# Host-side constant builders (tiny; evaluated once per jit trace).
# ----------------------------------------------------------------------------
def _banded_weights(w, wsp):
    """(KH,KW,Cin,Cout) -> (KH, wsp*Cin, wsp*Cout) banded matrices.

    B[kh][wi*Cin+ci, wo*Cout+co] = w[kh, wi-wo+pw, ci, co]  (0 elsewhere),
    i.e. the kw shift AND the width zero-padding are folded into the weights.
    """
    KH, KW, Cin, Cout = w.shape
    pw = KW // 2
    wi = np.arange(wsp)[:, None]
    wo = np.arange(wsp)[None, :]
    kw_idx = wi - wo + pw
    valid = (kw_idx >= 0) & (kw_idx < KW)
    kw_c = np.clip(kw_idx, 0, KW - 1)
    band = w[:, kw_c, :, :] * jnp.asarray(valid, w.dtype)[None, :, :, None, None]
    band = jnp.transpose(band, (0, 1, 3, 2, 4))       # (KH, wi, Cin, wo, Cout)
    return band.reshape(KH, wsp * Cin, wsp * Cout)


def _banded_weights_upsampled(w, wsrc):
    """Banded weights for a conv applied to the 2x column-upsampled input,
    with the nearest-neighbor column replication pre-folded in (K = wsrc*Cin)."""
    KH, KW, Cin, Cout = w.shape
    wout = 2 * wsrc
    band = _banded_weights(w, wout)                   # (KH, wout*Cin, wout*Cout)
    band = band.reshape(KH, wsrc, 2, Cin, wout * Cout).sum(axis=2)
    return band.reshape(KH, wsrc * Cin, wout * Cout)


def _col_pool_selectors(wsp, c):
    """0/1 (wsp*c, (wsp//2)*c) even/odd column selectors for 2x2 max-pool."""
    src = np.arange(wsp * c)
    dst = np.arange((wsp // 2) * c)
    same_c = (src[:, None] % c) == (dst[None, :] % c)
    even = same_c & ((src[:, None] // c) == 2 * (dst[None, :] // c))
    odd = same_c & ((src[:, None] // c) == 2 * (dst[None, :] // c) + 1)
    return even.astype(np.float32), odd.astype(np.float32)


def _row_map(bt, prev_stride, m_prev, next_hp, next_h, next_ph, src_of):
    """0/1 (bt*next_hp, m_prev) matrix: padded-input row (i, ph+h) <- previous
    activation row (i*prev_stride + src_of(h)); padding rows stay all-zero."""
    t = np.zeros((bt * next_hp, m_prev), np.float32)
    for i in range(bt):
        for h in range(next_h):
            t[i * next_hp + next_ph + h, i * prev_stride + src_of(h)] = 1.0
    return t


def _gather_rows(bt, prev_stride, m_prev, h_out):
    """0/1 (bt*h_out, m_prev) matrix gathering the valid output rows."""
    g = np.zeros((bt * h_out, m_prev), np.float32)
    for i in range(bt):
        for h in range(h_out):
            g[i * h_out + h, i * prev_stride + h] = 1.0
    return g


def _build_fused_operands(params, *, H, W, Ci, Ch, Bt):
    bf16 = jnp.bfloat16

    def bias_row(b, wsp):
        return jnp.tile(b, wsp)[None, :].astype(jnp.float32)

    # conv output spatial sizes per stage
    H1, W1 = H, W                 # e1 / d3
    H2, W2 = H // 2, W // 2       # e2 / d2
    H3, W3 = H // 4, W // 4       # e3 / d1
    # padded row counts (per image) of each conv's input buffer
    Hp1, Hp2, Hp3 = H1 + 4, H2 + 2, H3 + 2      # e1(5x5), e2(3x3), e3(3x3)
    Hp4, Hp5, Hp6 = H3 + 4, H2 + 2, H1 + 2      # d1(5x5), d2(3x3), d3(3x3)
    # activation row counts (valid-row extents) of each stage
    M0 = Bt * H
    M1, M2, M3 = Bt * Hp1 - 4, Bt * Hp2 - 2, Bt * Hp3 - 2
    M4, M5, M6 = Bt * Hp4 - 4, Bt * Hp5 - 2, Bt * Hp6 - 2

    # banded (kw-folded) conv weights; nearest col-upsample folded for d2/d3
    B1 = _banded_weights(params['e1_w'], W1).astype(bf16)
    B2 = _banded_weights(params['e2_w'], W2).astype(bf16)
    B3 = _banded_weights(params['e3_w'], W3).astype(bf16)
    B4 = _banded_weights(params['d1_w'], W3).astype(bf16)
    B5 = _banded_weights_upsampled(params['d2_w'], W3).astype(bf16)
    B6 = _banded_weights_upsampled(params['d3_w'], W2).astype(bf16)

    b1, b2, b3 = bias_row(params['e1_b'], W1), bias_row(params['e2_b'], W2), \
        bias_row(params['e3_b'], W3)
    b4, b5, b6 = bias_row(params['d1_b'], W3), bias_row(params['d2_b'], W2), \
        bias_row(params['d3_b'], W1)

    # 0/1 row plumbing (padding / pool rows / nearest row-upsample / gather)
    T0 = _row_map(Bt, H, M0, Hp1, H1, 2, lambda h: h)
    Pe1 = _row_map(Bt, Hp1, M1, Hp2, H2, 1, lambda h: 2 * h)
    Po1 = _row_map(Bt, Hp1, M1, Hp2, H2, 1, lambda h: 2 * h + 1)
    Pe2 = _row_map(Bt, Hp2, M2, Hp3, H3, 1, lambda h: 2 * h)
    Po2 = _row_map(Bt, Hp2, M2, Hp3, H3, 1, lambda h: 2 * h + 1)
    T3 = _row_map(Bt, Hp3, M3, Hp4, H3, 2, lambda h: h)
    T4 = _row_map(Bt, Hp4, M4, Hp5, H2, 1, lambda h: h // 2)
    T5 = _row_map(Bt, Hp5, M5, Hp6, H1, 1, lambda h: h // 2)
    G = _gather_rows(Bt, Hp6, M6, H1)

    # 0/1 column selectors for the fused 2x2 max-pool (width direction)
    Se1, So1 = _col_pool_selectors(W1, Ch)
    Se2, So2 = _col_pool_selectors(W2, Ch)

    cast = lambda m: jnp.asarray(m, bf16)             # 0/1 matrices exact in bf16
    operands = [
        cast(T0), B1, b1, cast(Se1), cast(So1),
        cast(Pe1), cast(Po1), B2, b2, cast(Se2), cast(So2),
        cast(Pe2), cast(Po2), B3, b3,
        cast(T3), B4, b4,
        cast(T4), B5, b5,
        cast(T5), B6, b6,
        cast(G),
    ]
    # per layer: (KH, uses two row-map matrices (pool rows), pool columns after)
    plan = ((5, False, True),
            (3, True, True),
            (3, True, False),
            (5, False, False),
            (3, False, False),
            (3, False, False))
    return operands, plan


def _const_index_map(ndim):
    return lambda n: (0,) * ndim


def _pick_batch_tile(n):
    # Biggest tile that keeps >= 2 grid steps (megacore / v7x core sharding).
    for bt in (16, 8, 4, 2, 1):
        if n % bt == 0 and n // bt >= 2:
            return bt
    return n


# ----------------------------------------------------------------------------
# AutoEncoder forward (matches the PyTorch module semantics)
# ----------------------------------------------------------------------------
def autoencoder_forward(x_nchw, params):
    N, Ci, H, W = x_nchw.shape
    assert H % 4 == 0 and W % 4 == 0, "two 2x2 max-pools need H, W % 4 == 0"
    Ch = params['e1_w'].shape[3]
    Bt = _pick_batch_tile(N)
    n_steps = N // Bt

    operands, plan = _build_fused_operands(params, H=H, W=W, Ci=Ci, Ch=Ch, Bt=Bt)

    # lane-dense flattened NHWC: rows = N*H, lanes = W*C (byte-identical to NHWC)
    x2d = jnp.transpose(x_nchw, (0, 2, 3, 1)).reshape(N * H, W * Ci)

    in_specs = [pl.BlockSpec((Bt * H, W * Ci), lambda n: (n, 0))]
    for op in operands:
        in_specs.append(pl.BlockSpec(op.shape, _const_index_map(op.ndim)))

    out2d = pl.pallas_call(
        functools.partial(_fused_ae_kernel, plan=plan),
        out_shape=jax.ShapeDtypeStruct((N * H, W * Ci), x_nchw.dtype),
        grid_spec=pltpu.PrefetchScalarGridSpec(
            num_scalar_prefetch=0,
            grid=(n_steps,),
            in_specs=in_specs,
            out_specs=pl.BlockSpec((Bt * H, W * Ci), lambda n: (n, 0)),
        ),
        compiler_params=pltpu.CompilerParams(
            dimension_semantics=("parallel",),
            vmem_limit_bytes=32 * 1024 * 1024),
    )(x2d, *operands)

    return jnp.transpose(out2d.reshape(N, H, W, Ci), (0, 3, 1, 2))   # -> NCHW


# ----------------------------------------------------------------------------
# Pure-XLA reference (correctness check of the fused kernel)
# ----------------------------------------------------------------------------
def _conv2d_ref(x, w, b):
    KH, KW = w.shape[0], w.shape[1]
    y = jax.lax.conv_general_dilated(
        x, w, window_strides=(1, 1),
        padding=((KH // 2, KH // 2), (KW // 2, KW // 2)),
        dimension_numbers=('NHWC', 'HWIO', 'NHWC'),
        precision=jax.lax.Precision.HIGHEST)
    return y + b


def _pool_ref(x):
    N, H, W, C = x.shape
    return x.reshape(N, H // 2, 2, W // 2, 2, C).max(axis=(2, 4))


def _up_ref(x):
    return jnp.repeat(jnp.repeat(x, 2, axis=1), 2, axis=2)


def autoencoder_reference(x_nchw, p):
    relu = lambda t: jnp.maximum(t, 0.0)
    x = jnp.transpose(x_nchw, (0, 2, 3, 1))
    x = relu(_pool_ref(_conv2d_ref(x, p['e1_w'], p['e1_b'])))
    x = relu(_pool_ref(_conv2d_ref(x, p['e2_w'], p['e2_b'])))
    x = relu(_conv2d_ref(x, p['e3_w'], p['e3_b']))
    x = relu(_up_ref(_conv2d_ref(x, p['d1_w'], p['d1_b'])))
    x = relu(_up_ref(_conv2d_ref(x, p['d2_w'], p['d2_b'])))
    x = relu(_conv2d_ref(x, p['d3_w'], p['d3_b']))
    return jnp.transpose(x, (0, 3, 1, 2))


# ----------------------------------------------------------------------------
# Params (PyTorch-default-style uniform +-1/sqrt(fan_in), HWIO layout)
# ----------------------------------------------------------------------------
def init_params(key, in_chan, hidden):
    def conv_init(k, kh, kw, cin, cout):
        k1, k2 = jax.random.split(k)
        bound = float(1.0 / (cin * kh * kw) ** 0.5)
        w = jax.random.uniform(k1, (kh, kw, cin, cout), jnp.float32, -bound, bound)
        b = jax.random.uniform(k2, (cout,), jnp.float32, -bound, bound)
        return w, b

    keys = jax.random.split(key, 6)
    p = {}
    p['e1_w'], p['e1_b'] = conv_init(keys[0], 5, 5, in_chan, hidden)
    p['e2_w'], p['e2_b'] = conv_init(keys[1], 3, 3, hidden, hidden)
    p['e3_w'], p['e3_b'] = conv_init(keys[2], 3, 3, hidden, 1)
    p['d1_w'], p['d1_b'] = conv_init(keys[3], 5, 5, 1, hidden)
    p['d2_w'], p['d2_b'] = conv_init(keys[4], 3, 3, hidden, hidden)
    p['d3_w'], p['d3_b'] = conv_init(keys[5], 3, 3, hidden, in_chan)
    return p


if __name__ == "__main__":
    key = jax.random.PRNGKey(0)
    kx, kp = jax.random.split(key)
    in_chan, hidden = 4, 8
    N, H, W = 8, 16, 16                       # batch 8 -> Bt=4, grid of 2 steps
    x = jax.random.normal(kx, (N, in_chan, H, W), jnp.float32)  # NCHW input
    params = init_params(kp, in_chan, hidden)

    y = jax.jit(autoencoder_forward)(x, params)
    jax.block_until_ready(y)
    assert y.shape == x.shape and y.dtype == jnp.float32

    # Correctness vs. a pure-XLA f32 reference of the PyTorch module.
    # Kernel uses bf16 MXU operands (f32 accumulation) -> allow ~bf16 tolerance.
    y_ref = jax.jit(autoencoder_reference)(x, params)
    err = float(jnp.max(jnp.abs(y - y_ref)))
    scale = float(jnp.max(jnp.abs(y_ref)))
    assert err <= 5e-2 * max(1.0, scale), \
        f"max abs error vs reference: {err} (ref scale {scale})"
    print("KERNEL_OK")
</pallas_src>

<mosaic_0001>
module attributes {stable_mosaic.version = 11 : i64} {
  func.func @_fused_ae_kernel(%arg0: i32, %arg1: memref<64x64xf32, #tpu.memory_space<vmem>>, %arg2: memref<80x64xbf16, #tpu.memory_space<vmem>>, %arg3: memref<5x64x128xbf16, #tpu.memory_space<vmem>>, %arg4: memref<1x128xf32, #tpu.memory_space<vmem>>, %arg5: memref<128x64xbf16, #tpu.memory_space<vmem>>, %arg6: memref<128x64xbf16, #tpu.memory_space<vmem>>, %arg7: memref<40x76xbf16, #tpu.memory_space<vmem>>, %arg8: memref<40x76xbf16, #tpu.memory_space<vmem>>, %arg9: memref<3x64x64xbf16, #tpu.memory_space<vmem>>, %arg10: memref<1x64xf32, #tpu.memory_space<vmem>>, %arg11: memref<64x32xbf16, #tpu.memory_space<vmem>>, %arg12: memref<64x32xbf16, #tpu.memory_space<vmem>>, %arg13: memref<24x38xbf16, #tpu.memory_space<vmem>>, %arg14: memref<24x38xbf16, #tpu.memory_space<vmem>>, %arg15: memref<3x32x4xbf16, #tpu.memory_space<vmem>>, %arg16: memref<1x4xf32, #tpu.memory_space<vmem>>, %arg17: memref<32x22xbf16, #tpu.memory_space<vmem>>, %arg18: memref<5x4x32xbf16, #tpu.memory_space<vmem>>, %arg19: memref<1x32xf32, #tpu.memory_space<vmem>>, %arg20: memref<40x28xbf16, #tpu.memory_space<vmem>>, %arg21: memref<3x32x64xbf16, #tpu.memory_space<vmem>>, %arg22: memref<1x64xf32, #tpu.memory_space<vmem>>, %arg23: memref<72x38xbf16, #tpu.memory_space<vmem>>, %arg24: memref<3x64x64xbf16, #tpu.memory_space<vmem>>, %arg25: memref<1x64xf32, #tpu.memory_space<vmem>>, %arg26: memref<64x70xbf16, #tpu.memory_space<vmem>>, %arg27: memref<64x64xf32, #tpu.memory_space<vmem>>) attributes {dimension_semantics = [#tpu.dimension_semantics<parallel>], iteration_bounds = array<i64: 2>, scalar_prefetch = 0 : i64, scratch_operands = 0 : i64, tpu.core_type = #tpu.core_type<tc>, window_params = [{transform_indices = @transform_0, window_bounds = array<i64: 64, 64>}, {pipeline_mode = #tpu.pipeline_mode<synchronous>, transform_indices = @transform_1, window_bounds = array<i64: 80, 64>}, {pipeline_mode = #tpu.pipeline_mode<synchronous>, transform_indices = @transform_2, window_bounds = array<i64: 5, 64, 128>}, {pipeline_mode = #tpu.pipeline_mode<synchronous>, transform_indices = @transform_3, window_bounds = array<i64: 1, 128>}, {pipeline_mode = #tpu.pipeline_mode<synchronous>, transform_indices = @transform_4, window_bounds = array<i64: 128, 64>}, {pipeline_mode = #tpu.pipeline_mode<synchronous>, transform_indices = @transform_5, window_bounds = array<i64: 128, 64>}, {pipeline_mode = #tpu.pipeline_mode<synchronous>, transform_indices = @transform_6, window_bounds = array<i64: 40, 76>}, {pipeline_mode = #tpu.pipeline_mode<synchronous>, transform_indices = @transform_7, window_bounds = array<i64: 40, 76>}, {pipeline_mode = #tpu.pipeline_mode<synchronous>, transform_indices = @transform_8, window_bounds = array<i64: 3, 64, 64>}, {pipeline_mode = #tpu.pipeline_mode<synchronous>, transform_indices = @transform_9, window_bounds = array<i64: 1, 64>}, {pipeline_mode = #tpu.pipeline_mode<synchronous>, transform_indices = @transform_10, window_bounds = array<i64: 64, 32>}, {pipeline_mode = #tpu.pipeline_mode<synchronous>, transform_indices = @transform_11, window_bounds = array<i64: 64, 32>}, {pipeline_mode = #tpu.pipeline_mode<synchronous>, transform_indices = @transform_12, window_bounds = array<i64: 24, 38>}, {pipeline_mode = #tpu.pipeline_mode<synchronous>, transform_indices = @transform_13, window_bounds = array<i64: 24, 38>}, {pipeline_mode = #tpu.pipeline_mode<synchronous>, transform_indices = @transform_14, window_bounds = array<i64: 3, 32, 4>}, {pipeline_mode = #tpu.pipeline_mode<synchronous>, transform_indices = @transform_15, window_bounds = array<i64: 1, 4>}, {pipeline_mode = #tpu.pipeline_mode<synchronous>, transform_indices = @transform_16, window_bounds = array<i64: 32, 22>}, {pipeline_mode = #tpu.pipeline_mode<synchronous>, transform_indices = @transform_17, window_bounds = array<i64: 5, 4, 32>}, {pipeline_mode = #tpu.pipeline_mode<synchronous>, transform_indices = @transform_18, window_bounds = array<i64: 1, 32>}, {pipeline_mode = #tpu.pipeline_mode<synchronous>, transform_indices = @transform_19, window_bounds = array<i64: 40, 28>}, {pipeline_mode = #tpu.pipeline_mode<synchronous>, transform_indices = @transform_20, window_bounds = array<i64: 3, 32, 64>}, {pipeline_mode = #tpu.pipeline_mode<synchronous>, transform_indices = @transform_21, window_bounds = array<i64: 1, 64>}, {pipeline_mode = #tpu.pipeline_mode<synchronous>, transform_indices = @transform_22, window_bounds = array<i64: 72, 38>}, {pipeline_mode = #tpu.pipeline_mode<synchronous>, transform_indices = @transform_23, window_bounds = array<i64: 3, 64, 64>}, {pipeline_mode = #tpu.pipeline_mode<synchronous>, transform_indices = @transform_24, window_bounds = array<i64: 1, 64>}, {pipeline_mode = #tpu.pipeline_mode<synchronous>, transform_indices = @transform_25, window_bounds = array<i64: 64, 70>}, {transform_indices = @transform_26, window_bounds = array<i64: 64, 64>}]} {
    %c0 = arith.constant 0 : index
    %c0_0 = arith.constant 0 : index
    %0 = vector.load %arg1[%c0, %c0_0] : memref<64x64xf32, #tpu.memory_space<vmem>>, vector<64x64xf32>
    %c0_1 = arith.constant 0 : index
    %c0_2 = arith.constant 0 : index
    %1 = vector.load %arg2[%c0_1, %c0_2] : memref<80x64xbf16, #tpu.memory_space<vmem>>, vector<80x64xbf16>
    %2 = arith.truncf %0 : vector<64x64xf32> to vector<64x64xbf16>
    %cst = arith.constant dense<0.000000e+00> : vector<80x64xf32>
    %3 = tpu.matmul %1, %2, %cst {dimension_numbers = #tpu.dot_dimension_numbers<[1], [0], [0], [1], [0, 0, 1, 1], [], []>} : vector<80x64xbf16>, vector<64x64xbf16>, vector<80x64xf32> -> vector<80x64xf32>
    %4 = arith.truncf %3 : vector<80x64xf32> to vector<80x64xbf16>
    %5 = vector.extract_strided_slice %4 {offsets = [0, 0], sizes = [76, 64], strides = [1, 1]} : vector<80x64xbf16> to vector<76x64xbf16>
    %c0_3 = arith.constant 0 : index
    %c0_4 = arith.constant 0 : index
    %c0_5 = arith.constant 0 : index
    %6 = vector.load %arg3[%c0_3, %c0_4, %c0_5] : memref<5x64x128xbf16, #tpu.memory_space<vmem>>, vector<1x64x128xbf16>
    %7 = vector.shape_cast %6 : vector<1x64x128xbf16> to vector<64x128xbf16>
    %cst_6 = arith.constant dense<0.000000e+00> : vector<76x128xf32>
    %8 = tpu.matmul %5, %7, %cst_6 {dimension_numbers = #tpu.dot_dimension_numbers<[1], [0], [0], [1], [0, 0, 1, 1], [], []>} : vector<76x64xbf16>, vector<64x128xbf16>, vector<76x128xf32> -> vector<76x128xf32>
    %9 = vector.extract_strided_slice %4 {offsets = [1, 0], sizes = [76, 64], strides = [1, 1]} : vector<80x64xbf16> to vector<76x64xbf16>
    %c1 = arith.constant 1 : index
    %c0_7 = arith.constant 0 : index
    %c0_8 = arith.constant 0 : index
    %10 = vector.load %arg3[%c1, %c0_7, %c0_8] : memref<5x64x128xbf16, #tpu.memory_space<vmem>>, vector<1x64x128xbf16>
    %11 = vector.shape_cast %10 : vector<1x64x128xbf16> to vector<64x128xbf16>
    %cst_9 = arith.constant dense<0.000000e+00> : vector<76x128xf32>
    %12 = tpu.matmul %9, %11, %cst_9 {dimension_numbers = #tpu.dot_dimension_numbers<[1], [0], [0], [1], [0, 0, 1, 1], [], []>} : vector<76x64xbf16>, vector<64x128xbf16>, vector<76x128xf32> -> vector<76x128xf32>
    %13 = arith.addf %8, %12 : vector<76x128xf32>
    %14 = vector.extract_strided_slice %4 {offsets = [2, 0], sizes = [76, 64], strides = [1, 1]} : vector<80x64xbf16> to vector<76x64xbf16>
    %c2 = arith.constant 2 : index
    %c0_10 = arith.constant 0 : index
    %c0_11 = arith.constant 0 : index
    %15 = vector.load %arg3[%c2, %c0_10, %c0_11] : memref<5x64x128xbf16, #tpu.memory_space<vmem>>, vector<1x64x128xbf16>
    %16 = vector.shape_cast %15 : vector<1x64x128xbf16> to vector<64x128xbf16>
    %cst_12 = arith.constant dense<0.000000e+00> : vector<76x128xf32>
    %17 = tpu.matmul %14, %16, %cst_12 {dimension_numbers = #tpu.dot_dimension_numbers<[1], [0], [0], [1], [0, 0, 1, 1], [], []>} : vector<76x64xbf16>, vector<64x128xbf16>, vector<76x128xf32> -> vector<76x128xf32>
    %18 = arith.addf %13, %17 : vector<76x128xf32>
    %19 = vector.extract_strided_slice %4 {offsets = [3, 0], sizes = [76, 64], strides = [1, 1]} : vector<80x64xbf16> to vector<76x64xbf16>
    %c3 = arith.constant 3 : index
    %c0_13 = arith.constant 0 : index
    %c0_14 = arith.constant 0 : index
    %20 = vector.load %arg3[%c3, %c0_13, %c0_14] : memref<5x64x128xbf16, #tpu.memory_space<vmem>>, vector<1x64x128xbf16>
    %21 = vector.shape_cast %20 : vector<1x64x128xbf16> to vector<64x128xbf16>
    %cst_15 = arith.constant dense<0.000000e+00> : vector<76x128xf32>
    %22 = tpu.matmul %19, %21, %cst_15 {dimension_numbers = #tpu.dot_dimension_numbers<[1], [0], [0], [1], [0, 0, 1, 1], [], []>} : vector<76x64xbf16>, vector<64x128xbf16>, vector<76x128xf32> -> vector<76x128xf32>
    %23 = arith.addf %18, %22 : vector<76x128xf32>
    %24 = vector.extract_strided_slice %4 {offsets = [4, 0], sizes = [76, 64], strides = [1, 1]} : vector<80x64xbf16> to vector<76x64xbf16>
    %c4 = arith.constant 4 : index
    %c0_16 = arith.constant 0 : index
    %c0_17 = arith.constant 0 : index
    %25 = vector.load %arg3[%c4, %c0_16, %c0_17] : memref<5x64x128xbf16, #tpu.memory_space<vmem>>, vector<1x64x128xbf16>
    %26 = vector.shape_cast %25 : vector<1x64x128xbf16> to vector<64x128xbf16>
    %cst_18 = arith.constant dense<0.000000e+00> : vector<76x128xf32>
    %27 = tpu.matmul %24, %26, %cst_18 {dimension_numbers = #tpu.dot_dimension_numbers<[1], [0], [0], [1], [0, 0, 1, 1], [], []>} : vector<76x64xbf16>, vector<64x128xbf16>, vector<76x128xf32> -> vector<76x128xf32>
    %28 = arith.addf %23, %27 : vector<76x128xf32>
    %c0_19 = arith.constant 0 : index
    %c0_20 = arith.constant 0 : index
    %29 = vector.load %arg4[%c0_19, %c0_20] : memref<1x128xf32, #tpu.memory_space<vmem>>, vector<1x128xf32>
    %30 = vector.broadcast %29 : vector<1x128xf32> to vector<76x128xf32>
    %31 = arith.addf %28, %30 : vector<76x128xf32>
    %cst_21 = arith.constant 0.000000e+00 : f32
    %32 = vector.broadcast %cst_21 : f32 to vector<76x128xf32>
    %33 = arith.maximumf %31, %32 : vector<76x128xf32>
    %c0_22 = arith.constant 0 : index
    %c0_23 = arith.constant 0 : index
    %34 = vector.load %arg5[%c0_22, %c0_23] : memref<128x64xbf16, #tpu.memory_space<vmem>>, vector<128x64xbf16>
    %35 = arith.truncf %33 : vector<76x128xf32> to vector<76x128xbf16>
    %cst_24 = arith.constant dense<0.000000e+00> : vector<76x64xf32>
    %36 = tpu.matmul %35, %34, %cst_24 {dimension_numbers = #tpu.dot_dimension_numbers<[1], [0], [0], [1], [0, 0, 1, 1], [], []>} : vector<76x128xbf16>, vector<128x64xbf16>, vector<76x64xf32> -> vector<76x64xf32>
    %c0_25 = arith.constant 0 : index
    %c0_26 = arith.constant 0 : index
    %37 = vector.load %arg6[%c0_25, %c0_26] : memref<128x64xbf16, #tpu.memory_space<vmem>>, vector<128x64xbf16>
    %38 = arith.truncf %33 : vector<76x128xf32> to vector<76x128xbf16>
    %cst_27 = arith.constant dense<0.000000e+00> : vector<76x64xf32>
    %39 = tpu.matmul %38, %37, %cst_27 {dimension_numbers = #tpu.dot_dimension_numbers<[1], [0], [0], [1], [0, 0, 1, 1], [], []>} : vector<76x128xbf16>, vector<128x64xbf16>, vector<76x64xf32> -> vector<76x64xf32>
    %40 = arith.maximumf %36, %39 : vector<76x64xf32>
    %c0_28 = arith.constant 0 : index
    %c0_29 = arith.constant 0 : index
    %41 = vector.load %arg7[%c0_28, %c0_29] : memref<40x76xbf16, #tpu.memory_space<vmem>>, vector<40x76xbf16>
    %42 = arith.truncf %40 : vector<76x64xf32> to vector<76x64xbf16>
    %cst_30 = arith.constant dense<0.000000e+00> : vector<40x64xf32>
    %43 = tpu.matmul %41, %42, %cst_30 {dimension_numbers = #tpu.dot_dimension_numbers<[1], [0], [0], [1], [0, 0, 1, 1], [], []>} : vector<40x76xbf16>, vector<76x64xbf16>, vector<40x64xf32> -> vector<40x64xf32>
    %c0_31 = arith.constant 0 : index
    %c0_32 = arith.constant 0 : index
    %44 = vector.load %arg8[%c0_31, %c0_32] : memref<40x76xbf16, #tpu.memory_space<vmem>>, vector<40x76xbf16>
    %45 = arith.truncf %40 : vector<76x64xf32> to vector<76x64xbf16>
    %cst_33 = arith.constant dense<0.000000e+00> : vector<40x64xf32>
    %46 = tpu.matmul %44, %45, %cst_33 {dimension_numbers = #tpu.dot_dimension_numbers<[1], [0], [0], [1], [0, 0, 1, 1], [], []>} : vector<40x76xbf16>, vector<76x64xbf16>, vector<40x64xf32> -> vector<40x64xf32>
    %47 = arith.maximumf %43, %46 : vector<40x64xf32>
    %48 = arith.truncf %47 : vector<40x64xf32> to vector<40x64xbf16>
    %49 = vector.extract_strided_slice %48 {offsets = [0, 0], sizes = [38, 64], strides = [1, 1]} : vector<40x64xbf16> to vector<38x64xbf16>
    %c0_34 = arith.constant 0 : index
    %c0_35 = arith.constant 0 : index
    %c0_36 = arith.constant 0 : index
    %50 = vector.load %arg9[%c0_34, %c0_35, %c0_36] : memref<3x64x64xbf16, #tpu.memory_space<vmem>>, vector<1x64x64xbf16>
    %51 = vector.shape_cast %50 : vector<1x64x64xbf16> to vector<64x64xbf16>
    %cst_37 = arith.constant dense<0.000000e+00> : vector<38x64xf32>
    %52 = tpu.matmul %49, %51, %cst_37 {dimension_numbers = #tpu.dot_dimension_numbers<[1], [0], [0], [1], [0, 0, 1, 1], [], []>} : vector<38x64xbf16>, vector<64x64xbf16>, vector<38x64xf32> -> vector<38x64xf32>
    %53 = vector.extract_strided_slice %48 {offsets = [1, 0], sizes = [38, 64], strides = [1, 1]} : vector<40x64xbf16> to vector<38x64xbf16>
    %c1_38 = arith.constant 1 : index
    %c0_39 = arith.constant 0 : index
    %c0_40 = arith.constant 0 : index
    %54 = vector.load %arg9[%c1_38, %c0_39, %c0_40] : memref<3x64x64xbf16, #tpu.memory_space<vmem>>, vector<1x64x64xbf16>
    %55 = vector.shape_cast %54 : vector<1x64x64xbf16> to vector<64x64xbf16>
    %cst_41 = arith.constant dense<0.000000e+00> : vector<38x64xf32>
    %56 = tpu.matmul %53, %55, %cst_41 {dimension_numbers = #tpu.dot_dimension_numbers<[1], [0], [0], [1], [0, 0, 1, 1], [], []>} : vector<38x64xbf16>, vector<64x64xbf16>, vector<38x64xf32> -> vector<38x64xf32>
    %57 = arith.addf %52, %56 : vector<38x64xf32>
    %58 = vector.extract_strided_slice %48 {offsets = [2, 0], sizes = [38, 64], strides = [1, 1]} : vector<40x64xbf16> to vector<38x64xbf16>
    %c2_42 = arith.constant 2 : index
    %c0_43 = arith.constant 0 : index
    %c0_44 = arith.constant 0 : index
    %59 = vector.load %arg9[%c2_42, %c0_43, %c0_44] : memref<3x64x64xbf16, #tpu.memory_space<vmem>>, vector<1x64x64xbf16>
    %60 = vector.shape_cast %59 : vector<1x64x64xbf16> to vector<64x64xbf16>
    %cst_45 = arith.constant dense<0.000000e+00> : vector<38x64xf32>
    %61 = tpu.matmul %58, %60, %cst_45 {dimension_numbers = #tpu.dot_dimension_numbers<[1], [0], [0], [1], [0, 0, 1, 1], [], []>} : vector<38x64xbf16>, vector<64x64xbf16>, vector<38x64xf32> -> vector<38x64xf32>
    %62 = arith.addf %57, %61 : vector<38x64xf32>
    %c0_46 = arith.constant 0 : index
    %c0_47 = arith.constant 0 : index
    %63 = vector.load %arg10[%c0_46, %c0_47] : memref<1x64xf32, #tpu.memory_space<vmem>>, vector<1x64xf32>
    %64 = vector.broadcast %63 : vector<1x64xf32> to vector<38x64xf32>
    %65 = arith.addf %62, %64 : vector<38x64xf32>
    %cst_48 = arith.constant 0.000000e+00 : f32
    %66 = vector.broadcast %cst_48 : f32 to vector<38x64xf32>
    %67 = arith.maximumf %65, %66 : vector<38x64xf32>
    %c0_49 = arith.constant 0 : index
    %c0_50 = arith.constant 0 : index
    %68 = vector.load %arg11[%c0_49, %c0_50] : memref<64x32xbf16, #tpu.memory_space<vmem>>, vector<64x32xbf16>
    %69 = arith.truncf %67 : vector<38x64xf32> to vector<38x64xbf16>
    %cst_51 = arith.constant dense<0.000000e+00> : vector<38x32xf32>
    %70 = tpu.matmul %69, %68, %cst_51 {dimension_numbers = #tpu.dot_dimension_numbers<[1], [0], [0], [1], [0, 0, 1, 1], [], []>} : vector<38x64xbf16>, vector<64x32xbf16>, vector<38x32xf32> -> vector<38x32xf32>
    %c0_52 = arith.constant 0 : index
    %c0_53 = arith.constant 0 : index
    %71 = vector.load %arg12[%c0_52, %c0_53] : memref<64x32xbf16, #tpu.memory_space<vmem>>, vector<64x32xbf16>
    %72 = arith.truncf %67 : vector<38x64xf32> to vector<38x64xbf16>
    %cst_54 = arith.constant dense<0.000000e+00> : vector<38x32xf32>
    %73 = tpu.matmul %72, %71, %cst_54 {dimension_numbers = #tpu.dot_dimension_numbers<[1], [0], [0], [1], [0, 0, 1, 1], [], []>} : vector<38x64xbf16>, vector<64x32xbf16>, vector<38x32xf32> -> vector<38x32xf32>
    %74 = arith.maximumf %70, %73 : vector<38x32xf32>
    %c0_55 = arith.constant 0 : index
    %c0_56 = arith.constant 0 : index
    %75 = vector.load %arg13[%c0_55, %c0_56] : memref<24x38xbf16, #tpu.memory_space<vmem>>, vector<24x38xbf16>
    %76 = arith.truncf %74 : vector<38x32xf32> to vector<38x32xbf16>
    %cst_57 = arith.constant dense<0.000000e+00> : vector<24x32xf32>
    %77 = tpu.matmul %75, %76, %cst_57 {dimension_numbers = #tpu.dot_dimension_numbers<[1], [0], [0], [1], [0, 0, 1, 1], [], []>} : vector<24x38xbf16>, vector<38x32xbf16>, vector<24x32xf32> -> vector<24x32xf32>
    %c0_58 = arith.constant 0 : index
    %c0_59 = arith.constant 0 : index
    %78 = vector.load %arg14[%c0_58, %c0_59] : memref<24x38xbf16, #tpu.memory_space<vmem>>, vector<24x38xbf16>
    %79 = arith.truncf %74 : vector<38x32xf32> to vector<38x32xbf16>
    %cst_60 = arith.constant dense<0.000000e+00> : vector<24x32xf32>
    %80 = tpu.matmul %78, %79, %cst_60 {dimension_numbers = #tpu.dot_dimension_numbers<[1], [0], [0], [1], [0, 0, 1, 1], [], []>} : vector<24x38xbf16>, vector<38x32xbf16>, vector<24x32xf32> -> vector<24x32xf32>
    %81 = arith.maximumf %77, %80 : vector<24x32xf32>
    %82 = arith.truncf %81 : vector<24x32xf32> to vector<24x32xbf16>
    %83 = vector.extract_strided_slice %82 {offsets = [0, 0], sizes = [22, 32], strides = [1, 1]} : vector<24x32xbf16> to vector<22x32xbf16>
    %c0_61 = arith.constant 0 : index
    %c0_62 = arith.constant 0 : index
    %c0_63 = arith.constant 0 : index
    %84 = vector.load %arg15[%c0_61, %c0_62, %c0_63] : memref<3x32x4xbf16, #tpu.memory_space<vmem>>, vector<1x32x4xbf16>
    %85 = vector.shape_cast %84 : vector<1x32x4xbf16> to vector<32x4xbf16>
    %cst_64 = arith.constant dense<0.000000e+00> : vector<22x4xf32>
    %86 = tpu.matmul %83, %85, %cst_64 {dimension_numbers = #tpu.dot_dimension_numbers<[1], [0], [0], [1], [0, 0, 1, 1], [], []>} : vector<22x32xbf16>, vector<32x4xbf16>, vector<22x4xf32> -> vector<22x4xf32>
    %87 = vector.extract_strided_slice %82 {offsets = [1, 0], sizes = [22, 32], strides = [1, 1]} : vector<24x32xbf16> to vector<22x32xbf16>
    %c1_65 = arith.constant 1 : index
    %c0_66 = arith.constant 0 : index
    %c0_67 = arith.constant 0 : index
    %88 = vector.load %arg15[%c1_65, %c0_66, %c0_67] : memref<3x32x4xbf16, #tpu.memory_space<vmem>>, vector<1x32x4xbf16>
    %89 = vector.shape_cast %88 : vector<1x32x4xbf16> to vector<32x4xbf16>
    %cst_68 = arith.constant dense<0.000000e+00> : vector<22x4xf32>
    %90 = tpu.matmul %87, %89, %cst_68 {dimension_numbers = #tpu.dot_dimension_numbers<[1], [0], [0], [1], [0, 0, 1, 1], [], []>} : vector<22x32xbf16>, vector<32x4xbf16>, vector<22x4xf32> -> vector<22x4xf32>
    %91 = arith.addf %86, %90 : vector<22x4xf32>
    %92 = vector.extract_strided_slice %82 {offsets = [2, 0], sizes = [22, 32], strides = [1, 1]} : vector<24x32xbf16> to vector<22x32xbf16>
    %c2_69 = arith.constant 2 : index
    %c0_70 = arith.constant 0 : index
    %c0_71 = arith.constant 0 : index
    %93 = vector.load %arg15[%c2_69, %c0_70, %c0_71] : memref<3x32x4xbf16, #tpu.memory_space<vmem>>, vector<1x32x4xbf16>
    %94 = vector.shape_cast %93 : vector<1x32x4xbf16> to vector<32x4xbf16>
    %cst_72 = arith.constant dense<0.000000e+00> : vector<22x4xf32>
    %95 = tpu.matmul %92, %94, %cst_72 {dimension_numbers = #tpu.dot_dimension_numbers<[1], [0], [0], [1], [0, 0, 1, 1], [], []>} : vector<22x32xbf16>, vector<32x4xbf16>, vector<22x4xf32> -> vector<22x4xf32>
    %96 = arith.addf %91, %95 : vector<22x4xf32>
    %c0_73 = arith.constant 0 : index
    %c0_74 = arith.constant 0 : index
    %97 = vector.load %arg16[%c0_73, %c0_74] : memref<1x4xf32, #tpu.memory_space<vmem>>, vector<1x4xf32>
    %98 = vector.broadcast %97 : vector<1x4xf32> to vector<22x4xf32>
    %99 = arith.addf %96, %98 : vector<22x4xf32>
    %cst_75 = arith.constant 0.000000e+00 : f32
    %100 = vector.broadcast %cst_75 : f32 to vector<22x4xf32>
    %101 = arith.maximumf %99, %100 : vector<22x4xf32>
    %c0_76 = arith.constant 0 : index
    %c0_77 = arith.constant 0 : index
    %102 = vector.load %arg17[%c0_76, %c0_77] : memref<32x22xbf16, #tpu.memory_space<vmem>>, vector<32x22xbf16>
    %103 = arith.truncf %101 : vector<22x4xf32> to vector<22x4xbf16>
    %cst_78 = arith.constant dense<0.000000e+00> : vector<32x4xf32>
    %104 = tpu.matmul %102, %103, %cst_78 {dimension_numbers = #tpu.dot_dimension_numbers<[1], [0], [0], [1], [0, 0, 1, 1], [], []>} : vector<32x22xbf16>, vector<22x4xbf16>, vector<32x4xf32> -> vector<32x4xf32>
    %105 = arith.truncf %104 : vector<32x4xf32> to vector<32x4xbf16>
    %106 = vector.extract_strided_slice %105 {offsets = [0, 0], sizes = [28, 4], strides = [1, 1]} : vector<32x4xbf16> to vector<28x4xbf16>
    %c0_79 = arith.constant 0 : index
    %c0_80 = arith.constant 0 : index
    %c0_81 = arith.constant 0 : index
    %107 = vector.load %arg18[%c0_79, %c0_80, %c0_81] : memref<5x4x32xbf16, #tpu.memory_space<vmem>>, vector<1x4x32xbf16>
    %108 = vector.shape_cast %107 : vector<1x4x32xbf16> to vector<4x32xbf16>
    %cst_82 = arith.constant dense<0.000000e+00> : vector<28x32xf32>
    %109 = tpu.matmul %106, %108, %cst_82 {dimension_numbers = #tpu.dot_dimension_numbers<[1], [0], [0], [1], [0, 0, 1, 1], [], []>} : vector<28x4xbf16>, vector<4x32xbf16>, vector<28x32xf32> -> vector<28x32xf32>
    %110 = vector.extract_strided_slice %105 {offsets = [1, 0], sizes = [28, 4], strides = [1, 1]} : vector<32x4xbf16> to vector<28x4xbf16>
    %c1_83 = arith.constant 1 : index
    %c0_84 = arith.constant 0 : index
    %c0_85 = arith.constant 0 : index
    %111 = vector.load %arg18[%c1_83, %c0_84, %c0_85] : memref<5x4x32xbf16, #tpu.memory_space<vmem>>, vector<1x4x32xbf16>
    %112 = vector.shape_cast %111 : vector<1x4x32xbf16> to vector<4x32xbf16>
    %cst_86 = arith.constant dense<0.000000e+00> : vector<28x32xf32>
    %113 = tpu.matmul %110, %112, %cst_86 {dimension_numbers = #tpu.dot_dimension_numbers<[1], [0], [0], [1], [0, 0, 1, 1], [], []>} : vector<28x4xbf16>, vector<4x32xbf16>, vector<28x32xf32> -> vector<28x32xf32>
    %114 = arith.addf %109, %113 : vector<28x32xf32>
    %115 = vector.extract_strided_slice %105 {offsets = [2, 0], sizes = [28, 4], strides = [1, 1]} : vector<32x4xbf16> to vector<28x4xbf16>
    %c2_87 = arith.constant 2 : index
    %c0_88 = arith.constant 0 : index
    %c0_89 = arith.constant 0 : index
    %116 = vector.load %arg18[%c2_87, %c0_88, %c0_89] : memref<5x4x32xbf16, #tpu.memory_space<vmem>>, vector<1x4x32xbf16>
    %117 = vector.shape_cast %116 : vector<1x4x32xbf16> to vector<4x32xbf16>
    %cst_90 = arith.constant dense<0.000000e+00> : vector<28x32xf32>
    %118 = tpu.matmul %115, %117, %cst_90 {dimension_numbers = #tpu.dot_dimension_numbers<[1], [0], [0], [1], [0, 0, 1, 1], [], []>} : vector<28x4xbf16>, vector<4x32xbf16>, vector<28x32xf32> -> vector<28x32xf32>
    %119 = arith.addf %114, %118 : vector<28x32xf32>
    %120 = vector.extract_strided_slice %105 {offsets = [3, 0], sizes = [28, 4], strides = [1, 1]} : vector<32x4xbf16> to vector<28x4xbf16>
    %c3_91 = arith.constant 3 : index
    %c0_92 = arith.constant 0 : index
    %c0_93 = arith.constant 0 : index
    %121 = vector.load %arg18[%c3_91, %c0_92, %c0_93] : memref<5x4x32xbf16, #tpu.memory_space<vmem>>, vector<1x4x32xbf16>
    %122 = vector.shape_cast %121 : vector<1x4x32xbf16> to vector<4x32xbf16>
    %cst_94 = arith.constant dense<0.000000e+00> : vector<28x32xf32>
    %123 = tpu.matmul %120, %122, %cst_94 {dimension_numbers = #tpu.dot_dimension_numbers<[1], [0], [0], [1], [0, 0, 1, 1], [], []>} : vector<28x4xbf16>, vector<4x32xbf16>, vector<28x32xf32> -> vector<28x32xf32>
    %124 = arith.addf %119, %123 : vector<28x32xf32>
    %125 = vector.extract_strided_slice %105 {offsets = [4, 0], sizes = [28, 4], strides = [1, 1]} : vector<32x4xbf16> to vector<28x4xbf16>
    %c4_95 = arith.constant 4 : index
    %c0_96 = arith.constant 0 : index
    %c0_97 = arith.constant 0 : index
    %126 = vector.load %arg18[%c4_95, %c0_96, %c0_97] : memref<5x4x32xbf16, #tpu.memory_space<vmem>>, vector<1x4x32xbf16>
    %127 = vector.shape_cast %126 : vector<1x4x32xbf16> to vector<4x32xbf16>
    %cst_98 = arith.constant dense<0.000000e+00> : vector<28x32xf32>
    %128 = tpu.matmul %125, %127, %cst_98 {dimension_numbers = #tpu.dot_dimension_numbers<[1], [0], [0], [1], [0, 0, 1, 1], [], []>} : vector<28x4xbf16>, vector<4x32xbf16>, vector<28x32xf32> -> vector<28x32xf32>
    %129 = arith.addf %124, %128 : vector<28x32xf32>
    %c0_99 = arith.constant 0 : index
    %c0_100 = arith.constant 0 : index
    %130 = vector.load %arg19[%c0_99, %c0_100] : memref<1x32xf32, #tpu.memory_space<vmem>>, vector<1x32xf32>
    %131 = vector.broadcast %130 : vector<1x32xf32> to vector<28x32xf32>
    %132 = arith.addf %129, %131 : vector<28x32xf32>
    %cst_101 = arith.constant 0.000000e+00 : f32
    %133 = vector.broadcast %cst_101 : f32 to vector<28x32xf32>
    %134 = arith.maximumf %132, %133 : vector<28x32xf32>
    %c0_102 = arith.constant 0 : index
    %c0_103 = arith.constant 0 : index
    %135 = vector.load %arg20[%c0_102, %c0_103] : memref<40x28xbf16, #tpu.memory_space<vmem>>, vector<40x28xbf16>
    %136 = arith.truncf %134 : vector<28x32xf32> to vector<28x32xbf16>
    %cst_104 = arith.constant dense<0.000000e+00> : vector<40x32xf32>
    %137 = tpu.matmul %135, %136, %cst_104 {dimension_numbers = #tpu.dot_dimension_numbers<[1], [0], [0], [1], [0, 0, 1, 1], [], []>} : vector<40x28xbf16>, vector<28x32xbf16>, vector<40x32xf32> -> vector<40x32xf32>
    %138 = arith.truncf %137 : vector<40x32xf32> to vector<40x32xbf16>
    %139 = vector.extract_strided_slice %138 {offsets = [0, 0], sizes = [38, 32], strides = [1, 1]} : vector<40x32xbf16> to vector<38x32xbf16>
    %c0_105 = arith.constant 0 : index
    %c0_106 = arith.constant 0 : index
    %c0_107 = arith.constant 0 : index
    %140 = vector.load %arg21[%c0_105, %c0_106, %c0_107] : memref<3x32x64xbf16, #tpu.memory_space<vmem>>, vector<1x32x64xbf16>
    %141 = vector.shape_cast %140 : vector<1x32x64xbf16> to vector<32x64xbf16>
    %cst_108 = arith.constant dense<0.000000e+00> : vector<38x64xf32>
    %142 = tpu.matmul %139, %141, %cst_108 {dimension_numbers = #tpu.dot_dimension_numbers<[1], [0], [0], [1], [0, 0, 1, 1], [], []>} : vector<38x32xbf16>, vector<32x64xbf16>, vector<38x64xf32> -> vector<38x64xf32>
    %143 = vector.extract_strided_slice %138 {offsets = [1, 0], sizes = [38, 32], strides = [1, 1]} : vector<40x32xbf16> to vector<38x32xbf16>
    %c1_109 = arith.constant 1 : index
    %c0_110 = arith.constant 0 : index
    %c0_111 = arith.constant 0 : index
    %144 = vector.load %arg21[%c1_109, %c0_110, %c0_111] : memref<3x32x64xbf16, #tpu.memory_space<vmem>>, vector<1x32x64xbf16>
    %145 = vector.shape_cast %144 : vector<1x32x64xbf16> to vector<32x64xbf16>
    %cst_112 = arith.constant dense<0.000000e+00> : vector<38x64xf32>
    %146 = tpu.matmul %143, %145, %cst_112 {dimension_numbers = #tpu.dot_dimension_numbers<[1], [0], [0], [1], [0, 0, 1, 1], [], []>} : vector<38x32xbf16>, vector<32x64xbf16>, vector<38x64xf32> -> vector<38x64xf32>
    %147 = arith.addf %142, %146 : vector<38x64xf32>
    %148 = vector.extract_strided_slice %138 {offsets = [2, 0], sizes = [38, 32], strides = [1, 1]} : vector<40x32xbf16> to vector<38x32xbf16>
    %c2_113 = arith.constant 2 : index
    %c0_114 = arith.constant 0 : index
    %c0_115 = arith.constant 0 : index
    %149 = vector.load %arg21[%c2_113, %c0_114, %c0_115] : memref<3x32x64xbf16, #tpu.memory_space<vmem>>, vector<1x32x64xbf16>
    %150 = vector.shape_cast %149 : vector<1x32x64xbf16> to vector<32x64xbf16>
    %cst_116 = arith.constant dense<0.000000e+00> : vector<38x64xf32>
    %151 = tpu.matmul %148, %150, %cst_116 {dimension_numbers = #tpu.dot_dimension_numbers<[1], [0], [0], [1], [0, 0, 1, 1], [], []>} : vector<38x32xbf16>, vector<32x64xbf16>, vector<38x64xf32> -> vector<38x64xf32>
    %152 = arith.addf %147, %151 : vector<38x64xf32>
    %c0_117 = arith.constant 0 : index
    %c0_118 = arith.constant 0 : index
    %153 = vector.load %arg22[%c0_117, %c0_118] : memref<1x64xf32, #tpu.memory_space<vmem>>, vector<1x64xf32>
    %154 = vector.broadcast %153 : vector<1x64xf32> to vector<38x64xf32>
    %155 = arith.addf %152, %154 : vector<38x64xf32>
    %cst_119 = arith.constant 0.000000e+00 : f32
    %156 = vector.broadcast %cst_119 : f32 to vector<38x64xf32>
    %157 = arith.maximumf %155, %156 : vector<38x64xf32>
    %c0_120 = arith.constant 0 : index
    %c0_121 = arith.constant 0 : index
    %158 = vector.load %arg23[%c0_120, %c0_121] : memref<72x38xbf16, #tpu.memory_space<vmem>>, vector<72x38xbf16>
    %159 = arith.truncf %157 : vector<38x64xf32> to vector<38x64xbf16>
    %cst_122 = arith.constant dense<0.000000e+00> : vector<72x64xf32>
    %160 = tpu.matmul %158, %159, %cst_122 {dimension_numbers = #tpu.dot_dimension_numbers<[1], [0], [0], [1], [0, 0, 1, 1], [], []>} : vector<72x38xbf16>, vector<38x64xbf16>, vector<72x64xf32> -> vector<72x64xf32>
    %161 = arith.truncf %160 : vector<72x64xf32> to vector<72x64xbf16>
    %162 = vector.extract_strided_slice %161 {offsets = [0, 0], sizes = [70, 64], strides = [1, 1]} : vector<72x64xbf16> to vector<70x64xbf16>
    %c0_123 = arith.constant 0 : index
    %c0_124 = arith.constant 0 : index
    %c0_125 = arith.constant 0 : index
    %163 = vector.load %arg24[%c0_123, %c0_124, %c0_125] : memref<3x64x64xbf16, #tpu.memory_space<vmem>>, vector<1x64x64xbf16>
    %164 = vector.shape_cast %163 : vector<1x64x64xbf16> to vector<64x64xbf16>
    %cst_126 = arith.constant dense<0.000000e+00> : vector<70x64xf32>
    %165 = tpu.matmul %162, %164, %cst_126 {dimension_numbers = #tpu.dot_dimension_numbers<[1], [0], [0], [1], [0, 0, 1, 1], [], []>} : vector<70x64xbf16>, vector<64x64xbf16>, vector<70x64xf32> -> vector<70x64xf32>
    %166 = vector.extract_strided_slice %161 {offsets = [1, 0], sizes = [70, 64], strides = [1, 1]} : vector<72x64xbf16> to vector<70x64xbf16>
    %c1_127 = arith.constant 1 : index
    %c0_128 = arith.constant 0 : index
    %c0_129 = arith.constant 0 : index
    %167 = vector.load %arg24[%c1_127, %c0_128, %c0_129] : memref<3x64x64xbf16, #tpu.memory_space<vmem>>, vector<1x64x64xbf16>
    %168 = vector.shape_cast %167 : vector<1x64x64xbf16> to vector<64x64xbf16>
    %cst_130 = arith.constant dense<0.000000e+00> : vector<70x64xf32>
    %169 = tpu.matmul %166, %168, %cst_130 {dimension_numbers = #tpu.dot_dimension_numbers<[1], [0], [0], [1], [0, 0, 1, 1], [], []>} : vector<70x64xbf16>, vector<64x64xbf16>, vector<70x64xf32> -> vector<70x64xf32>
    %170 = arith.addf %165, %169 : vector<70x64xf32>
    %171 = vector.extract_strided_slice %161 {offsets = [2, 0], sizes = [70, 64], strides = [1, 1]} : vector<72x64xbf16> to vector<70x64xbf16>
    %c2_131 = arith.constant 2 : index
    %c0_132 = arith.constant 0 : index
    %c0_133 = arith.constant 0 : index
    %172 = vector.load %arg24[%c2_131, %c0_132, %c0_133] : memref<3x64x64xbf16, #tpu.memory_space<vmem>>, vector<1x64x64xbf16>
    %173 = vector.shape_cast %172 : vector<1x64x64xbf16> to vector<64x64xbf16>
    %cst_134 = arith.constant dense<0.000000e+00> : vector<70x64xf32>
    %174 = tpu.matmul %171, %173, %cst_134 {dimension_numbers = #tpu.dot_dimension_numbers<[1], [0], [0], [1], [0, 0, 1, 1], [], []>} : vector<70x64xbf16>, vector<64x64xbf16>, vector<70x64xf32> -> vector<70x64xf32>
    %175 = arith.addf %170, %174 : vector<70x64xf32>
    %c0_135 = arith.constant 0 : index
    %c0_136 = arith.constant 0 : index
    %176 = vector.load %arg25[%c0_135, %c0_136] : memref<1x64xf32, #tpu.memory_space<vmem>>, vector<1x64xf32>
    %177 = vector.broadcast %176 : vector<1x64xf32> to vector<70x64xf32>
    %178 = arith.addf %175, %177 : vector<70x64xf32>
    %cst_137 = arith.constant 0.000000e+00 : f32
    %179 = vector.broadcast %cst_137 : f32 to vector<70x64xf32>
    %180 = arith.maximumf %178, %179 : vector<70x64xf32>
    %c0_138 = arith.constant 0 : index
    %c0_139 = arith.constant 0 : index
    %181 = vector.load %arg26[%c0_138, %c0_139] : memref<64x70xbf16, #tpu.memory_space<vmem>>, vector<64x70xbf16>
    %182 = arith.truncf %180 : vector<70x64xf32> to vector<70x64xbf16>
    %cst_140 = arith.constant dense<0.000000e+00> : vector<64x64xf32>
    %183 = tpu.matmul %181, %182, %cst_140 {dimension_numbers = #tpu.dot_dimension_numbers<[1], [0], [0], [1], [0, 0, 1, 1], [], []>} : vector<64x70xbf16>, vector<70x64xbf16>, vector<64x64xf32> -> vector<64x64xf32>
    %c0_141 = arith.constant 0 : index
    %c0_142 = arith.constant 0 : index
    %184 = vector.load %arg27[%c0_141, %c0_142] : memref<64x64xf32, #tpu.memory_space<vmem>>, vector<64x64xf32>
    tpu.vector_store %arg27[%c0_141, %c0_142], %183 {strides = array<i32>} : memref<64x64xf32, #tpu.memory_space<vmem>>, vector<64x64xf32>,
    return
  }
  func.func @transform_0(%arg0: i32) -> (i32, i32) {
    %c0_i32 = arith.constant 0 : i32
    %c0_i32_0 = arith.constant 0 : i32
    return %arg0, %c0_i32 : i32, i32
  }
  func.func @transform_1(%arg0: i32) -> (i32, i32) {
    %c0_i32 = arith.constant 0 : i32
    %c0_i32_0 = arith.constant 0 : i32
    %c0_i32_1 = arith.constant 0 : i32
    return %c0_i32, %c0_i32_0 : i32, i32
  }
  func.func @transform_2(%arg0: i32) -> (i32, i32, i32) {
    %c0_i32 = arith.constant 0 : i32
    %c0_i32_0 = arith.constant 0 : i32
    %c0_i32_1 = arith.constant 0 : i32
    %c0_i32_2 = arith.constant 0 : i32
    return %c0_i32, %c0_i32_0, %c0_i32_1 : i32, i32, i32
  }
  func.func @transform_3(%arg0: i32) -> (i32, i32) {
    %c0_i32 = arith.constant 0 : i32
    %c0_i32_0 = arith.constant 0 : i32
    %c0_i32_1 = arith.constant 0 : i32
    return %c0_i32, %c0_i32_0 : i32, i32
  }
  func.func @transform_4(%arg0: i32) -> (i32, i32) {
    %c0_i32 = arith.constant 0 : i32
    %c0_i32_0 = arith.constant 0 : i32
    %c0_i32_1 = arith.constant 0 : i32
    return %c0_i32, %c0_i32_0 : i32, i32
  }
  func.func @transform_5(%arg0: i32) -> (i32, i32) {
    %c0_i32 = arith.constant 0 : i32
    %c0_i32_0 = arith.constant 0 : i32
    %c0_i32_1 = arith.constant 0 : i32
    return %c0_i32, %c0_i32_0 : i32, i32
  }
  func.func @transform_6(%arg0: i32) -> (i32, i32) {
    %c0_i32 = arith.constant 0 : i32
    %c0_i32_0 = arith.constant 0 : i32
    %c0_i32_1 = arith.constant 0 : i32
    return %c0_i32, %c0_i32_0 : i32, i32
  }
  func.func @transform_7(%arg0: i32) -> (i32, i32) {
    %c0_i32 = arith.constant 0 : i32
    %c0_i32_0 = arith.constant 0 : i32
    %c0_i32_1 = arith.constant 0 : i32
    return %c0_i32, %c0_i32_0 : i32, i32
  }
  func.func @transform_8(%arg0: i32) -> (i32, i32, i32) {
    %c0_i32 = arith.constant 0 : i32
    %c0_i32_0 = arith.constant 0 : i32
    %c0_i32_1 = arith.constant 0 : i32
    %c0_i32_2 = arith.constant 0 : i32
    return %c0_i32, %c0_i32_0, %c0_i32_1 : i32, i32, i32
  }
  func.func @transform_9(%arg0: i32) -> (i32, i32) {
    %c0_i32 = arith.constant 0 : i32
    %c0_i32_0 = arith.constant 0 : i32
    %c0_i32_1 = arith.constant 0 : i32
    return %c0_i32, %c0_i32_0 : i32, i32
  }
  func.func @transform_10(%arg0: i32) -> (i32, i32) {
    %c0_i32 = arith.constant 0 : i32
    %c0_i32_0 = arith.constant 0 : i32
    %c0_i32_1 = arith.constant 0 : i32
    return %c0_i32, %c0_i32_0 : i32, i32
  }
  func.func @transform_11(%arg0: i32) -> (i32, i32) {
    %c0_i32 = arith.constant 0 : i32
    %c0_i32_0 = arith.constant 0 : i32
    %c0_i32_1 = arith.constant 0 : i32
    return %c0_i32, %c0_i32_0 : i32, i32
  }
  func.func @transform_12(%arg0: i32) -> (i32, i32) {
    %c0_i32 = arith.constant 0 : i32
    %c0_i32_0 = arith.constant 0 : i32
    %c0_i32_1 = arith.constant 0 : i32
    return %c0_i32, %c0_i32_0 : i32, i32
  }
  func.func @transform_13(%arg0: i32) -> (i32, i32) {
    %c0_i32 = arith.constant 0 : i32
    %c0_i32_0 = arith.constant 0 : i32
    %c0_i32_1 = arith.constant 0 : i32
    return %c0_i32, %c0_i32_0 : i32, i32
  }
  func.func @transform_14(%arg0: i32) -> (i32, i32, i32) {
    %c0_i32 = arith.constant 0 : i32
    %c0_i32_0 = arith.constant 0 : i32
    %c0_i32_1 = arith.constant 0 : i32
    %c0_i32_2 = arith.constant 0 : i32
    return %c0_i32, %c0_i32_0, %c0_i32_1 : i32, i32, i32
  }
  func.func @transform_15(%arg0: i32) -> (i32, i32) {
    %c0_i32 = arith.constant 0 : i32
    %c0_i32_0 = arith.constant 0 : i32
    %c0_i32_1 = arith.constant 0 : i32
    return %c0_i32, %c0_i32_0 : i32, i32
  }
  func.func @transform_16(%arg0: i32) -> (i32, i32) {
    %c0_i32 = arith.constant 0 : i32
    %c0_i32_0 = arith.constant 0 : i32
    %c0_i32_1 = arith.constant 0 : i32
    return %c0_i32, %c0_i32_0 : i32, i32
  }
  func.func @transform_17(%arg0: i32) -> (i32, i32, i32) {
    %c0_i32 = arith.constant 0 : i32
    %c0_i32_0 = arith.constant 0 : i32
    %c0_i32_1 = arith.constant 0 : i32
    %c0_i32_2 = arith.constant 0 : i32
    return %c0_i32, %c0_i32_0, %c0_i32_1 : i32, i32, i32
  }
  func.func @transform_18(%arg0: i32) -> (i32, i32) {
    %c0_i32 = arith.constant 0 : i32
    %c0_i32_0 = arith.constant 0 : i32
    %c0_i32_1 = arith.constant 0 : i32
    return %c0_i32, %c0_i32_0 : i32, i32
  }
  func.func @transform_19(%arg0: i32) -> (i32, i32) {
    %c0_i32 = arith.constant 0 : i32
    %c0_i32_0 = arith.constant 0 : i32
    %c0_i32_1 = arith.constant 0 : i32
    return %c0_i32, %c0_i32_0 : i32, i32
  }
  func.func @transform_20(%arg0: i32) -> (i32, i32, i32) {
    %c0_i32 = arith.constant 0 : i32
    %c0_i32_0 = arith.constant 0 : i32
    %c0_i32_1 = arith.constant 0 : i32
    %c0_i32_2 = arith.constant 0 : i32
    return %c0_i32, %c0_i32_0, %c0_i32_1 : i32, i32, i32
  }
  func.func @transform_21(%arg0: i32) -> (i32, i32) {
    %c0_i32 = arith.constant 0 : i32
    %c0_i32_0 = arith.constant 0 : i32
    %c0_i32_1 = arith.constant 0 : i32
    return %c0_i32, %c0_i32_0 : i32, i32
  }
  func.func @transform_22(%arg0: i32) -> (i32, i32) {
    %c0_i32 = arith.constant 0 : i32
    %c0_i32_0 = arith.constant 0 : i32
    %c0_i32_1 = arith.constant 0 : i32
    return %c0_i32, %c0_i32_0 : i32, i32
  }
  func.func @transform_23(%arg0: i32) -> (i32, i32, i32) {
    %c0_i32 = arith.constant 0 : i32
    %c0_i32_0 = arith.constant 0 : i32
    %c0_i32_1 = arith.constant 0 : i32
    %c0_i32_2 = arith.constant 0 : i32
    return %c0_i32, %c0_i32_0, %c0_i32_1 : i32, i32, i32
  }
  func.func @transform_24(%arg0: i32) -> (i32, i32) {
    %c0_i32 = arith.constant 0 : i32
    %c0_i32_0 = arith.constant 0 : i32
    %c0_i32_1 = arith.constant 0 : i32
    return %c0_i32, %c0_i32_0 : i32, i32
  }
  func.func @transform_25(%arg0: i32) -> (i32, i32) {
    %c0_i32 = arith.constant 0 : i32
    %c0_i32_0 = arith.constant 0 : i32
    %c0_i32_1 = arith.constant 0 : i32
    return %c0_i32, %c0_i32_0 : i32, i32
  }
  func.func @transform_26(%arg0: i32) -> (i32, i32) {
    %c0_i32 = arith.constant 0 : i32
    %c0_i32_0 = arith.constant 0 : i32
    return %arg0, %c0_i32 : i32, i32
  }
}

</mosaic_0001>

<llo_original>
// kernel: tile.33
$region0: #{tile.33}
  #allocation0 [shape = 's32[1]{0}', space=sflag, size = 0x4, scoped, tag = 'scoped memory for tile.33']
  %s0 = inlined_call_operand.vmem [shape: f32[8], index: 0, kind: input, shape index: {}]
  %s1 = inlined_call_operand.vmem [shape: f32[16,8], index: 1, kind: output, shape index: {}]
  // Predicated region
  $region2: #{tile.33} parent=0 // pred_check
    _
  $region3: #{tile.33} parent=0 // pred_check_branch
    %3 = sbr.rel (0) target = $region5
  $region4: #{tile.33} parent=0 // pred_region
    _
  $region5: #{tile.33} parent=0 // pred_fallthru
    _
  %v4 = vld [vmem:[%s0] ss:$0 sm:$0xff]
  %5 = vst [vmem:[%s1] sm:$0xff] %v4
  %s6 = scalar_lea.vmem %s1, 8
  %7 = vst [vmem:[%s6] sm:$0xff] %v4

// kernel: tile.34
$region0: #{tile.34}
  %s0 = inlined_call_operand.vmem [shape: f32[16,8], index: 0, kind: input, shape index: {}]
  %s1 = inlined_call_operand.vmem [shape: f32[1,128], index: 1, kind: output, shape index: {}]
  $region1: #{tile.34} parent=0
    #allocation0 [shape = 'u8[4096]{0}', space=vmem, size = 0x1000, scoped, tag = 'scoped mem for output reshape']
    %v2 = vld [vmem:[%s0] sm:$0x1]
    %vm3 = vcmask 64512
    %4 = vst.msk [vmem:[#allocation0] sm:$0x1] %vm3, %v2
    %s5 = scalar_lea.vmem %s0, 15
    %v6 = vld [vmem:[%s5] sm:$0x1]
    %7 = vrot.lane.b32.xlu0 %v6, 120
    %v8 = vpop.permute.xlu0 %7
    %vm9 = vcmask 1048512
    %10 = vst.msk [vmem:[#allocation0] sm:$0x1] %vm9, %v8
    %s11 = scalar_lea.vmem %s0, 14
    %v12 = vld [vmem:[%s11] sm:$0x1]
    %13 = vrot.lane.b32.xlu0 %v12, 112
    %v14 = vpop.permute.xlu0 %13
    %vm15 = vcmask 982912
    %16 = vst.msk [vmem:[#allocation0] sm:$0x1] %vm15, %v14
    %s17 = scalar_lea.vmem %s0, 13
    %v18 = vld [vmem:[%s17] sm:$0x1]
    %19 = vrot.lane.b32.xlu0 %v18, 104
    %v20 = vpop.permute.xlu0 %19
    %vm21 = vcmask 917312
    %22 = vst.msk [vmem:[#allocation0] sm:$0x1] %vm21, %v20
    %s23 = scalar_lea.vmem %s0, 12
    %v24 = vld [vmem:[%s23] sm:$0x1]
    %25 = vrot.lane.b32.xlu0 %v24, 96
    %v26 = vpop.permute.xlu0 %25
    %vm27 = vcmask 851712
    %28 = vst.msk [vmem:[#allocation0] sm:$0x1] %vm27, %v26
    %s29 = scalar_lea.vmem %s0, 11
    %v30 = vld [vmem:[%s29] sm:$0x1]
    %31 = vrot.lane.b32.xlu0 %v30, 88
    %v32 = vpop.permute.xlu0 %31
    %vm33 = vcmask 786112
    %34 = vst.msk [vmem:[#allocation0] sm:$0x1] %vm33, %v32
    %s35 = scalar_lea.vmem %s0, 10
    %v36 = vld [vmem:[%s35] sm:$0x1]
    %37 = vrot.lane.b32.xlu0 %v36, 80
    %v38 = vpop.permute.xlu0 %37
    %vm39 = vcmask 720512
    %40 = vst.msk [vmem:[#allocation0] sm:$0x1] %vm39, %v38
    %s41 = scalar_lea.vmem %s0, 9
    %v42 = vld [vmem:[%s41] sm:$0x1]
    %43 = vrot.lane.b32.xlu0 %v42, 72
    %v44 = vpop.permute.xlu0 %43
    %vm45 = vcmask 654912
    %46 = vst.msk [vmem:[#allocation0] sm:$0x1] %vm45, %v44
    %s47 = scalar_lea.vmem %s0, 8
    %v48 = vld [vmem:[%s47] sm:$0x1]
    %49 = vrot.lane.b32.xlu0 %v48, 64
    %v50 = vpop.permute.xlu0 %49
    %vm51 = vcmask 589312
    %52 = vst.msk [vmem:[#allocation0] sm:$0x1] %vm51, %v50
    %s53 = scalar_lea.vmem %s0, 7
    %v54 = vld [vmem:[%s53] sm:$0x1]
    %55 = vrot.lane.b32.xlu0 %v54, 56
    %v56 = vpop.permute.xlu0 %55
    %vm57 = vcmask 523712
    %58 = vst.msk [vmem:[#allocation0] sm:$0x1] %vm57, %v56
    %s59 = scalar_lea.vmem %s0, 6
    %v60 = vld [vmem:[%s59] sm:$0x1]
    %61 = vrot.lane.b32.xlu0 %v60, 48
    %v62 = vpop.permute.xlu0 %61
    %vm63 = vcmask 458112
    %64 = vst.msk [vmem:[#allocation0] sm:$0x1] %vm63, %v62
    %s65 = scalar_lea.vmem %s0, 5
    %v66 = vld [vmem:[%s65] sm:$0x1]
    %67 = vrot.lane.b32.xlu0 %v66, 40
    %v68 = vpop.permute.xlu0 %67
    %vm69 = vcmask 392512
    %70 = vst.msk [vmem:[#allocation0] sm:$0x1] %vm69, %v68
    %s71 = scalar_lea.vmem %s0, 4
    %v72 = vld [vmem:[%s71] sm:$0x1]
    %73 = vrot.lane.b32.xlu0 %v72, 32
    %v74 = vpop.permute.xlu0 %73
    %vm75 = vcmask 326912
    %76 = vst.msk [vmem:[#allocation0] sm:$0x1] %vm75, %v74
    %s77 = scalar_lea.vmem %s0, 3
    %v78 = vld [vmem:[%s77] sm:$0x1]
    %79 = vrot.lane.b32.xlu0 %v78, 24
    %v80 = vpop.permute.xlu0 %79
    %vm81 = vcmask 261312
    %82 = vst.msk [vmem:[#allocation0] sm:$0x1] %vm81, %v80
    %s83 = scalar_lea.vmem %s0, 2
    %v84 = vld [vmem:[%s83] sm:$0x1]
    %85 = vrot.lane.b32.xlu0 %v84, 16
    %v86 = vpop.permute.xlu0 %85
    %vm87 = vcmask 195712
    %88 = vst.msk [vmem:[#allocation0] sm:$0x1] %vm87, %v86
    %s89 = scalar_lea.vmem %s0, 1
    %v90 = vld [vmem:[%s89] sm:$0x1]
    %91 = vrot.lane.b32.xlu0 %v90, 8
    %v92 = vpop.permute.xlu0 %91
    %vm93 = vcmask 130112
    %94 = vst.msk [vmem:[#allocation0] sm:$0x1] %vm93, %v92
    %s96 = sshll.u32 1, 1
    %s97 = ssub.s32 %s96, 1
    %v99 = vld [vmem:[#allocation0] sm:%s97]
    %s100 = sshll.u32 1, 1
    %s101 = ssub.s32 %s100, 1
    %102 = vst [vmem:[%s1] sm:%s101] %v99

// kernel: tile.38
$region0: #{tile.38}
  #allocation0 [shape = 's32[1]{0}', space=sflag, size = 0x4, scoped, tag = 'scoped memory for tile.38']
  %s0 = inlined_call_operand.vmem [shape: f32[8], index: 0, kind: input, shape index: {}]
  %s1 = inlined_call_operand.vmem [shape: f32[8,8], index: 1, kind: output, shape index: {}]
  // Predicated region
  $region2: #{tile.38} parent=0 // pred_check
    _
  $region3: #{tile.38} parent=0 // pred_check_branch
    %3 = sbr.rel (0) target = $region5
  $region4: #{tile.38} parent=0 // pred_region
    _
  $region5: #{tile.38} parent=0 // pred_fallthru
    _
  %v4 = vld [vmem:[%s0] ss:$0 sm:$0xff]
  %5 = vst [vmem:[%s1] sm:$0xff] %v4

// kernel: tile.39
$region0: #{tile.39}
  %s0 = inlined_call_operand.vmem [shape: f32[8,8], index: 0, kind: input, shape index: {}]
  %s1 = inlined_call_operand.vmem [shape: f32[1,64], index: 1, kind: output, shape index: {}]
  $region1: #{tile.39} parent=0
    #allocation0 [shape = 'u8[4096]{0}', space=vmem, size = 0x1000, scoped, tag = 'scoped mem for output reshape']
    %v2 = vld [vmem:[%s0] sm:$0x1]
    %vm3 = vcmask 64512
    %4 = vst.msk [vmem:[#allocation0] sm:$0x1] %vm3, %v2
    %s5 = scalar_lea.vmem %s0, 7
    %v6 = vld [vmem:[%s5] sm:$0x1]
    %7 = vrot.lane.b32.xlu0 %v6, 56
    %v8 = vpop.permute.xlu0 %7
    %vm9 = vcmask 523712
    %10 = vst.msk [vmem:[#allocation0] sm:$0x1] %vm9, %v8
    %s11 = scalar_lea.vmem %s0, 6
    %v12 = vld [vmem:[%s11] sm:$0x1]
    %13 = vrot.lane.b32.xlu0 %v12, 48
    %v14 = vpop.permute.xlu0 %13
    %vm15 = vcmask 458112
    %16 = vst.msk [vmem:[#allocation0] sm:$0x1] %vm15, %v14
    %s17 = scalar_lea.vmem %s0, 5
    %v18 = vld [vmem:[%s17] sm:$0x1]
    %19 = vrot.lane.b32.xlu0 %v18, 40
    %v20 = vpop.permute.xlu0 %19
    %vm21 = vcmask 392512
    %22 = vst.msk [vmem:[#allocation0] sm:$0x1] %vm21, %v20
    %s23 = scalar_lea.vmem %s0, 4
    %v24 = vld [vmem:[%s23] sm:$0x1]
    %25 = vrot.lane.b32.xlu0 %v24, 32
    %v26 = vpop.permute.xlu0 %25
    %vm27 = vcmask 326912
    %28 = vst.msk [vmem:[#allocation0] sm:$0x1] %vm27, %v26
    %s29 = scalar_lea.vmem %s0, 3
    %v30 = vld [vmem:[%s29] sm:$0x1]
    %31 = vrot.lane.b32.xlu0 %v30, 24
    %v32 = vpop.permute.xlu0 %31
    %vm33 = vcmask 261312
    %34 = vst.msk [vmem:[#allocation0] sm:$0x1] %vm33, %v32
    %s35 = scalar_lea.vmem %s0, 2
    %v36 = vld [vmem:[%s35] sm:$0x1]
    %37 = vrot.lane.b32.xlu0 %v36, 16
    %v38 = vpop.permute.xlu0 %37
    %vm39 = vcmask 195712
    %40 = vst.msk [vmem:[#allocation0] sm:$0x1] %vm39, %v38
    %s41 = scalar_lea.vmem %s0, 1
    %v42 = vld [vmem:[%s41] sm:$0x1]
    %43 = vrot.lane.b32.xlu0 %v42, 8
    %v44 = vpop.permute.xlu0 %43
    %vm45 = vcmask 130112
    %46 = vst.msk [vmem:[#allocation0] sm:$0x1] %vm45, %v44
    %s48 = sshll.u32 1, 1
    %s49 = ssub.s32 %s48, 1
    %v51 = vld [vmem:[#allocation0] sm:%s49]
    %s52 = sshll.u32 1, 1
    %s53 = ssub.s32 %s52, 1
    %54 = vst [vmem:[%s1] sm:%s53] %v51

// kernel: tile.48
$region0: #{tile.48}
  #allocation0 [shape = 's32[1]{0}', space=sflag, size = 0x4, scoped, tag = 'scoped memory for tile.48']
  %s0 = inlined_call_operand.vmem [shape: f32[8], index: 0, kind: input, shape index: {}]
  %s1 = inlined_call_operand.vmem [shape: f32[4,8], index: 1, kind: output, shape index: {}]
  // Predicated region
  $region2: #{tile.48} parent=0 // pred_check
    _
  $region3: #{tile.48} parent=0 // pred_check_branch
    %3 = sbr.rel (0) target = $region5
  $region4: #{tile.48} parent=0 // pred_region
    _
  $region5: #{tile.48} parent=0 // pred_fallthru
    _
  %v4 = vld [vmem:[%s0] ss:$0 sm:$0xff]
  %5 = vst [vmem:[%s1] sm:$0xf] %v4

// kernel: tile.49
$region0: #{tile.49}
  %s0 = inlined_call_operand.vmem [shape: f32[4,8], index: 0, kind: input, shape index: {}]
  %s1 = inlined_call_operand.vmem [shape: f32[1,32], index: 1, kind: output, shape index: {}]
  $region1: #{tile.49} parent=0
    #allocation0 [shape = 'u8[4096]{0}', space=vmem, size = 0x1000, scoped, tag = 'scoped mem for output reshape']
    #allocation1 [shape = 'u8[4096]{0}', space=vmem, size = 0x1000, scoped, tag = 'scoped mem for input reshape']
    %s3 = sshll.u32 1, 4
    %s4 = ssub.s32 %s3, 1
    %v5 = vld [vmem:[%s0] sm:%s4]
    %6 = vst [vmem:[#allocation1] sm:%s4] %v5
    %v7 = vld [vmem:[#allocation1] sm:$0x1]
    %vm8 = vcmask 64512
    %9 = vst.msk [vmem:[#allocation0] sm:$0x1] %vm8, %v7
    %s10 = scalar_lea.vmem [#allocation1], 3
    %v11 = vld [vmem:[%s10] sm:$0x1]
    %12 = vrot.lane.b32.xlu0 %v11, 24
    %v13 = vpop.permute.xlu0 %12
    %vm14 = vcmask 261312
    %15 = vst.msk [vmem:[#allocation0] sm:$0x1] %vm14, %v13
    %s16 = scalar_lea.vmem [#allocation1], 2
    %v17 = vld [vmem:[%s16] sm:$0x1]
    %18 = vrot.lane.b32.xlu0 %v17, 16
    %v19 = vpop.permute.xlu0 %18
    %vm20 = vcmask 195712
    %21 = vst.msk [vmem:[#allocation0] sm:$0x1] %vm20, %v19
    %s22 = scalar_lea.vmem [#allocation1], 1
    %v23 = vld [vmem:[%s22] sm:$0x1]
    %24 = vrot.lane.b32.xlu0 %v23, 8
    %v25 = vpop.permute.xlu0 %24
    %vm26 = vcmask 130112
    %27 = vst.msk [vmem:[#allocation0] sm:$0x1] %vm26, %v25
    %s29 = sshll.u32 1, 1
    %s30 = ssub.s32 %s29, 1
    %v32 = vld [vmem:[#allocation0] sm:%s30]
    %s33 = sshll.u32 1, 1
    %s34 = ssub.s32 %s33, 1
    %35 = vst [vmem:[%s1] sm:%s34] %v32

// kernel: tile.58
$region0: #{tile.58}
  #allocation0 [shape = 's32[1]{0}', space=sflag, size = 0x4, scoped, tag = 'scoped memory for tile.58']
  %s0 = inlined_call_operand.vmem [shape: f32[4], index: 0, kind: input, shape index: {}]
  %s1 = inlined_call_operand.vmem [shape: f32[16,4], index: 1, kind: output, shape index: {}]
  // Predicated region
  $region2: #{tile.58} parent=0 // pred_check
    _
  $region3: #{tile.58} parent=0 // pred_check_branch
    %3 = sbr.rel (0) target = $region5
  $region4: #{tile.58} parent=0 // pred_region
    _
  $region5: #{tile.58} parent=0 // pred_fallthru
    _
  %v4 = vld [vmem:[%s0] ss:$0 sm:$0xff]
  %5 = vst [vmem:[%s1] sm:$0xff] %v4
  %s6 = scalar_lea.vmem %s1, 8
  %7 = vst [vmem:[%s6] sm:$0xff] %v4

// kernel: tile.59
$region0: #{tile.59}
  %s0 = inlined_call_operand.vmem [shape: f32[16,4], index: 0, kind: input, shape index: {}]
  %s1 = inlined_call_operand.vmem [shape: f32[1,64], index: 1, kind: output, shape index: {}]
  $region1: #{tile.59} parent=0
    #allocation0 [shape = 'u8[4096]{0}', space=vmem, size = 0x1000, scoped, tag = 'scoped mem for output reshape']
    %v2 = vld [vmem:[%s0] sm:$0x1]
    %vm3 = vcmask 31744
    %4 = vst.msk [vmem:[#allocation0] sm:$0x1] %vm3, %v2
    %s5 = scalar_lea.vmem %s0, 15
    %v6 = vld [vmem:[%s5] sm:$0x1]
    %7 = vrot.lane.b32.xlu0 %v6, 60
    %v8 = vpop.permute.xlu0 %7
    %vm9 = vcmask 523744
    %10 = vst.msk [vmem:[#allocation0] sm:$0x1] %vm9, %v8
    %s11 = scalar_lea.vmem %s0, 14
    %v12 = vld [vmem:[%s11] sm:$0x1]
    %13 = vrot.lane.b32.xlu0 %v12, 56
    %v14 = vpop.permute.xlu0 %13
    %vm15 = vcmask 490944
    %16 = vst.msk [vmem:[#allocation0] sm:$0x1] %vm15, %v14
    %s17 = scalar_lea.vmem %s0, 13
    %v18 = vld [vmem:[%s17] sm:$0x1]
    %19 = vrot.lane.b32.xlu0 %v18, 52
    %v20 = vpop.permute.xlu0 %19
    %vm21 = vcmask 458144
    %22 = vst.msk [vmem:[#allocation0] sm:$0x1] %vm21, %v20
    %s23 = scalar_lea.vmem %s0, 12
    %v24 = vld [vmem:[%s23] sm:$0x1]
    %25 = vrot.lane.b32.xlu0 %v24, 48
    %v26 = vpop.permute.xlu0 %25
    %vm27 = vcmask 425344
    %28 = vst.msk [vmem:[#allocation0] sm:$0x1] %vm27, %v26
    %s29 = scalar_lea.vmem %s0, 11
    %v30 = vld [vmem:[%s29] sm:$0x1]
    %31 = vrot.lane.b32.xlu0 %v30, 44
    %v32 = vpop.permute.xlu0 %31
    %vm33 = vcmask 392544
    %34 = vst.msk [vmem:[#allocation0] sm:$0x1] %vm33, %v32
    %s35 = scalar_lea.vmem %s0, 10
    %v36 = vld [vmem:[%s35] sm:$0x1]
    %37 = vrot.lane.b32.xlu0 %v36, 40
    %v38 = vpop.permute.xlu0 %37
    %vm39 = vcmask 359744
    %40 = vst.msk [vmem:[#allocation0] sm:$0x1] %vm39, %v38
    %s41 = scalar_lea.vmem %s0, 9
    %v42 = vld [vmem:[%s41] sm:$0x1]
    %43 = vrot.lane.b32.xlu0 %v42, 36
    %v44 = vpop.permute.xlu0 %43
    %vm45 = vcmask 326944
    %46 = vst.msk [vmem:[#allocation0] sm:$0x1] %vm45, %v44
    %s47 = scalar_lea.vmem %s0, 8
    %v48 = vld [vmem:[%s47] sm:$0x1]
    %49 = vrot.lane.b32.xlu0 %v48, 32
    %v50 = vpop.permute.xlu0 %49
    %vm51 = vcmask 294144
    %52 = vst.msk [vmem:[#allocation0] sm:$0x1] %vm51, %v50
    %s53 = scalar_lea.vmem %s0, 7
    %v54 = vld [vmem:[%s53] sm:$0x1]
    %55 = vrot.lane.b32.xlu0 %v54, 28
    %v56 = vpop.permute.xlu0 %55
    %vm57 = vcmask 261344
    %58 = vst.msk [vmem:[#allocation0] sm:$0x1] %vm57, %v56
    %s59 = scalar_lea.vmem %s0, 6
    %v60 = vld [vmem:[%s59] sm:$0x1]
    %61 = vrot.lane.b32.xlu0 %v60, 24
    %v62 = vpop.permute.xlu0 %61
    %vm63 = vcmask 228544
    %64 = vst.msk [vmem:[#allocation0] sm:$0x1] %vm63, %v62
    %s65 = scalar_lea.vmem %s0, 5
    %v66 = vld [vmem:[%s65] sm:$0x1]
    %67 = vrot.lane.b32.xlu0 %v66, 20
    %v68 = vpop.permute.xlu0 %67
    %vm69 = vcmask 195744
    %70 = vst.msk [vmem:[#allocation0] sm:$0x1] %vm69, %v68
    %s71 = scalar_lea.vmem %s0, 4
    %v72 = vld [vmem:[%s71] sm:$0x1]
    %73 = vrot.lane.b32.xlu0 %v72, 16
    %v74 = vpop.permute.xlu0 %73
    %vm75 = vcmask 162944
    %76 = vst.msk [vmem:[#allocation0] sm:$0x1] %vm75, %v74
    %s77 = scalar_lea.vmem %s0, 3
    %v78 = vld [vmem:[%s77] sm:$0x1]
    %79 = vrot.lane.b32.xlu0 %v78, 12
    %v80 = vpop.permute.xlu0 %79
    %vm81 = vcmask 130144
    %82 = vst.msk [vmem:[#allocation0] sm:$0x1] %vm81, %v80
    %s83 = scalar_lea.vmem %s0, 2
    %v84 = vld [vmem:[%s83] sm:$0x1]
    %85 = vrot.lane.b32.xlu0 %v84, 8
    %v86 = vpop.permute.xlu0 %85
    %vm87 = vcmask 97344
    %88 = vst.msk [vmem:[#allocation0] sm:$0x1] %vm87, %v86
    %s89 = scalar_lea.vmem %s0, 1
    %v90 = vld [vmem:[%s89] sm:$0x1]
    %91 = vrot.lane.b32.xlu0 %v90, 4
    %v92 = vpop.permute.xlu0 %91
    %vm93 = vcmask 64544
    %94 = vst.msk [vmem:[#allocation0] sm:$0x1] %vm93, %v92
    %s96 = sshll.u32 1, 1
    %s97 = ssub.s32 %s96, 1
    %v99 = vld [vmem:[#allocation0] sm:%s97]
    %s100 = sshll.u32 1, 1
    %s101 = ssub.s32 %s100, 1
    %102 = vst [vmem:[%s1] sm:%s101] %v99

// kernel: autoencoder_forward.1
$region0: #{autoencoder_forward.1}
  #allocation0 [shape = 'u32[]', space=smem, size = 0x4, offset = 0x4, fixed_abs, tag = 'smem constant byte address 0x4 - core index']
  #allocation1 [shape = 'u32[144,128]{1,0:T(1,128)}', space=vmem, size = 0x12000, scoped, tag = 'internal scratch']
  %s0 = inlined_call_operand.vmem [shape: f32[128,64], index: 0, kind: input, shape index: {}]
  %s1 = inlined_call_operand.vmem [shape: bf16[80,64], index: 1, kind: input, shape index: {}]
  %s2 = inlined_call_operand.vmem [shape: bf16[5,64,128], index: 2, kind: input, shape index: {}]
  %s3 = inlined_call_operand.vmem [shape: f32[1,128], index: 3, kind: input, shape index: {}]
  %s4 = inlined_call_operand.vmem [shape: bf16[128,64], index: 4, kind: input, shape index: {}]
  %s5 = inlined_call_operand.vmem [shape: bf16[128,64], index: 5, kind: input, shape index: {}]
  %s6 = inlined_call_operand.vmem [shape: bf16[40,76], index: 6, kind: input, shape index: {}]
  %s7 = inlined_call_operand.vmem [shape: bf16[40,76], index: 7, kind: input, shape index: {}]
  %s8 = inlined_call_operand.vmem [shape: bf16[3,64,64], index: 8, kind: input, shape index: {}]
  %s9 = inlined_call_operand.vmem [shape: f32[1,64], index: 9, kind: input, shape index: {}]
  %s10 = inlined_call_operand.vmem [shape: bf16[64,32], index: 10, kind: input, shape index: {}]
  %s11 = inlined_call_operand.vmem [shape: bf16[64,32], index: 11, kind: input, shape index: {}]
  %s12 = inlined_call_operand.vmem [shape: bf16[24,38], index: 12, kind: input, shape index: {}]
  %s13 = inlined_call_operand.vmem [shape: bf16[24,38], index: 13, kind: input, shape index: {}]
  %s14 = inlined_call_operand.vmem [shape: bf16[3,32,4], index: 14, kind: input, shape index: {}]
  %s15 = inlined_call_operand.vmem [shape: f32[1,4], index: 15, kind: input, shape index: {}]
  %s16 = inlined_call_operand.vmem [shape: bf16[32,22], index: 16, kind: input, shape index: {}]
  %s17 = inlined_call_operand.vmem [shape: bf16[5,4,32], index: 17, kind: input, shape index: {}]
  %s18 = inlined_call_operand.vmem [shape: f32[1,32], index: 18, kind: input, shape index: {}]
  %s19 = inlined_call_operand.vmem [shape: bf16[40,28], index: 19, kind: input, shape index: {}]
  %s20 = inlined_call_operand.vmem [shape: bf16[3,32,64], index: 20, kind: input, shape index: {}]
  %s21 = inlined_call_operand.vmem [shape: f32[1,64], index: 21, kind: input, shape index: {}]
  %s22 = inlined_call_operand.vmem [shape: bf16[72,38], index: 22, kind: input, shape index: {}]
  %s23 = inlined_call_operand.vmem [shape: bf16[3,64,64], index: 23, kind: input, shape index: {}]
  %s24 = inlined_call_operand.vmem [shape: f32[1,64], index: 24, kind: input, shape index: {}]
  %s25 = inlined_call_operand.vmem [shape: bf16[64,70], index: 25, kind: input, shape index: {}]
  %s26 = inlined_call_operand.vmem [shape: f32[128,64], index: 26, kind: output, shape index: {}]
  %s27 = sld [smem:[#allocation0]]
  $region137: #{autoencoder_forward.1} parent=0
    _
  %s29 = ssub.s32 1, %s27
  %s30 = scalar_select 0, %s29, %s27
  loop: start=0, step=1, limit=4
  $region2: #{autoencoder_forward.1} parent=0 // loop_pre_header
    _
  $region3: #{autoencoder_forward.1} parent=0 // loop_header
    %s32 = sphi 0, %s36
    %p33 = scmp.ge.s32.totalorder %s32, 4
    %s42 = sphi 0, %s44
    %s45 = sphi 0, %s42
    %s46 = sphi 0, %s45
    %s62 = sphi 0, %s46
    %s66 = sphi 0, %s66
    %s68 = sphi 0, %s66
    %s69 = sphi 0, %s68
    %s83 = sphi 0, %s69
    %s87 = sphi 0, %s87
    %s89 = sphi 0, %s87
    %s90 = sphi 0, %s89
    %s104 = sphi 0, %s90
    %s108 = sphi 0, %s108
    %s110 = sphi 0, %s108
    %s111 = sphi 0, %s110
    %s125 = sphi 0, %s111
    %s129 = sphi 0, %s129
    %s131 = sphi 0, %s129
    %s132 = sphi 0, %s131
    %s146 = sphi 0, %s132
    %s150 = sphi 0, %s150
    %s152 = sphi 0, %s150
    %s153 = sphi 0, %s152
    %s167 = sphi 0, %s153
    %s171 = sphi 0, %s171
    %s173 = sphi 0, %s171
    %s174 = sphi 0, %s173
    %s188 = sphi 0, %s174
    %s192 = sphi 0, %s192
    %s194 = sphi 0, %s192
    %s195 = sphi 0, %s194
    %s209 = sphi 0, %s195
    %s213 = sphi 0, %s213
    %s215 = sphi 0, %s213
    %s216 = sphi 0, %s215
    %s230 = sphi 0, %s216
    %s234 = sphi 0, %s234
    %s236 = sphi 0, %s234
    %s237 = sphi 0, %s236
    %s251 = sphi 0, %s237
    %s255 = sphi 0, %s255
    %s257 = sphi 0, %s255
    %s258 = sphi 0, %s257
    %s272 = sphi 0, %s258
    %s276 = sphi 0, %s276
    %s278 = sphi 0, %s276
    %s279 = sphi 0, %s278
    %s293 = sphi 0, %s279
    %s297 = sphi 0, %s297
    %s299 = sphi 0, %s297
    %s300 = sphi 0, %s299
    %s314 = sphi 0, %s300
    %s318 = sphi 0, %s318
    %s320 = sphi 0, %s318
    %s321 = sphi 0, %s320
    %s335 = sphi 0, %s321
    %s339 = sphi 0, %s339
    %s341 = sphi 0, %s339
    %s342 = sphi 0, %s341
    %s356 = sphi 0, %s342
    %s360 = sphi 0, %s360
    %s362 = sphi 0, %s360
    %s363 = sphi 0, %s362
    %s377 = sphi 0, %s363
    %s381 = sphi 0, %s381
    %s383 = sphi 0, %s381
    %s384 = sphi 0, %s383
    %s398 = sphi 0, %s384
    %s402 = sphi 0, %s402
    %s404 = sphi 0, %s402
    %s405 = sphi 0, %s404
    %s419 = sphi 0, %s405
    %s423 = sphi 0, %s423
    %s425 = sphi 0, %s423
    %s426 = sphi 0, %s425
    %s440 = sphi 0, %s426
    %s444 = sphi 0, %s444
    %s446 = sphi 0, %s444
    %s447 = sphi 0, %s446
    %s461 = sphi 0, %s447
    %s465 = sphi 0, %s465
    %s467 = sphi 0, %s465
    %s468 = sphi 0, %s467
    %s482 = sphi 0, %s468
    %s486 = sphi 0, %s486
    %s488 = sphi 0, %s486
    %s489 = sphi 0, %s488
    %s503 = sphi 0, %s489
    %s507 = sphi 0, %s507
    %s509 = sphi 0, %s507
    %s510 = sphi 0, %s509
    %s524 = sphi 0, %s510
    %s528 = sphi 0, %s528
    %s530 = sphi 0, %s528
    %s531 = sphi 0, %s530
    %s545 = sphi 0, %s531
    %s549 = sphi 0, %s549
    %s551 = sphi 0, %s549
    %s552 = sphi 0, %s551
    %s566 = sphi 0, %s552
    %s570 = sphi 0, %s570
    %s572 = sphi 0, %s570
    %s573 = sphi 0, %s572
    %s587 = sphi 0, %s573
    %s593 = sphi 0, %s595
    %s596 = sphi 0, %s593
    %s597 = sphi 0, %s596
    %s613 = sphi 0, %s597
  $region4: #{autoencoder_forward.1} parent=0 // loop_header_branch
    %35 = sbr.rel (%p33) target = $region8
  $region5: #{autoencoder_forward.1} parent=0 // loop_body
    %s37 = ssub.s32 %s32, 1
    %s38 = ssub.s32 %s32, 2
    %s39 = sadd.s32 %s32, 1
    %s40 = ssub.s32 %s32, %s39
    %p41 = scmp.eq.s32.totalorder %s40, 0
    %s43 = sadd.s32 %s42, 1
    %s44 = scalar_select %p41, %s42, %s43
    %p47 = pneg %p41
    %p48 = scmp.eq.s32.totalorder %s32, 1
    %p49 = por %p47, %p48
    %p50 = scmp.ne.s32.totalorder %s42, %s45
    %p51 = scmp.eq.s32.totalorder %s32, 0
    %p52 = por %p50, %p51
    %p53 = scmp.ne.s32.totalorder %s42, %s45
    %p54 = scmp.eq.s32.totalorder %s37, 1
    %p55 = por %p53, %p54
    %p56 = scmp.ne.s32.totalorder %s45, %s46
    %p57 = scmp.eq.s32.totalorder %s37, 0
    %p58 = por %p56, %p57
    %p59 = scmp.ne.s32.totalorder %s45, %s46
    %p60 = scmp.eq.s32.totalorder %s38, 1
    %p61 = por %p59, %p60
    %p63 = scmp.ne.s32.totalorder %s46, %s62
    %p64 = scmp.eq.s32.totalorder %s38, 0
    %p65 = por %p63, %p64
    %s67 = sadd.s32 %s66, 1
    %p70 = scmp.eq.s32.totalorder %s32, 1
    %p71 = scmp.ne.s32.totalorder %s66, %s68
    %p72 = scmp.eq.s32.totalorder %s32, 0
    %p73 = por %p71, %p72
    %p74 = scmp.ne.s32.totalorder %s66, %s68
    %p75 = scmp.eq.s32.totalorder %s37, 1
    %p76 = por %p74, %p75
    %p77 = scmp.ne.s32.totalorder %s68, %s69
    %p78 = scmp.eq.s32.totalorder %s37, 0
    %p79 = por %p77, %p78
    %p80 = scmp.ne.s32.totalorder %s68, %s69
    %p81 = scmp.eq.s32.totalorder %s38, 1
    %p82 = por %p80, %p81
    %p84 = scmp.ne.s32.totalorder %s69, %s83
    %p85 = scmp.eq.s32.totalorder %s38, 0
    %p86 = por %p84, %p85
    %s88 = sadd.s32 %s87, 1
    %p91 = scmp.eq.s32.totalorder %s32, 1
    %p92 = scmp.ne.s32.totalorder %s87, %s89
    %p93 = scmp.eq.s32.totalorder %s32, 0
    %p94 = por %p92, %p93
    %p95 = scmp.ne.s32.totalorder %s87, %s89
    %p96 = scmp.eq.s32.totalorder %s37, 1
    %p97 = por %p95, %p96
    %p98 = scmp.ne.s32.totalorder %s89, %s90
    %p99 = scmp.eq.s32.totalorder %s37, 0
    %p100 = por %p98, %p99
    %p101 = scmp.ne.s32.totalorder %s89, %s90
    %p102 = scmp.eq.s32.totalorder %s38, 1
    %p103 = por %p101, %p102
    %p105 = scmp.ne.s32.totalorder %s90, %s104
    %p106 = scmp.eq.s32.totalorder %s38, 0
    %p107 = por %p105, %p106
    %s109 = sadd.s32 %s108, 1
    %p112 = scmp.eq.s32.totalorder %s32, 1
    %p113 = scmp.ne.s32.totalorder %s108, %s110
    %p114 = scmp.eq.s32.totalorder %s32, 0
    %p115 = por %p113, %p114
    %p116 = scmp.ne.s32.totalorder %s108, %s110
    %p117 = scmp.eq.s32.totalorder %s37, 1
    %p118 = por %p116, %p117
    %p119 = scmp.ne.s32.totalorder %s110, %s111
    %p120 = scmp.eq.s32.totalorder %s37, 0
    %p121 = por %p119, %p120
    %p122 = scmp.ne.s32.totalorder %s110, %s111
    %p123 = scmp.eq.s32.totalorder %s38, 1
    %p124 = por %p122, %p123
    %p126 = scmp.ne.s32.totalorder %s111, %s125
    %p127 = scmp.eq.s32.totalorder %s38, 0
    %p128 = por %p126, %p127
    %s130 = sadd.s32 %s129, 1
    %p133 = scmp.eq.s32.totalorder %s32, 1
    %p134 = scmp.ne.s32.totalorder %s129, %s131
    %p135 = scmp.eq.s32.totalorder %s32, 0
    %p136 = por %p134, %p135
    %p137 = scmp.ne.s32.totalorder %s129, %s131
    %p138 = scmp.eq.s32.totalorder %s37, 1
    %p139 = por %p137, %p138
    %p140 = scmp.ne.s32.totalorder %s131, %s132
    %p141 = scmp.eq.s32.totalorder %s37, 0
    %p142 = por %p140, %p141
    %p143 = scmp.ne.s32.totalorder %s131, %s132
    %p144 = scmp.eq.s32.totalorder %s38, 1
    %p145 = por %p143, %p144
    %p147 = scmp.ne.s32.totalorder %s132, %s146
    %p148 = scmp.eq.s32.totalorder %s38, 0
    %p149 = por %p147, %p148
    %s151 = sadd.s32 %s150, 1
    %p154 = scmp.eq.s32.totalorder %s32, 1
    %p155 = scmp.ne.s32.totalorder %s150, %s152
    %p156 = scmp.eq.s32.totalorder %s32, 0
    %p157 = por %p155, %p156
    %p158 = scmp.ne.s32.totalorder %s150, %s152
    %p159 = scmp.eq.s32.totalorder %s37, 1
    %p160 = por %p158, %p159
    %p161 = scmp.ne.s32.totalorder %s152, %s153
    %p162 = scmp.eq.s32.totalorder %s37, 0
    %p163 = por %p161, %p162
    %p164 = scmp.ne.s32.totalorder %s152, %s153
    %p165 = scmp.eq.s32.totalorder %s38, 1
    %p166 = por %p164, %p165
    %p168 = scmp.ne.s32.totalorder %s153, %s167
    %p169 = scmp.eq.s32.totalorder %s38, 0
    %p170 = por %p168, %p169
    %s172 = sadd.s32 %s171, 1
    %p175 = scmp.eq.s32.totalorder %s32, 1
    %p176 = scmp.ne.s32.totalorder %s171, %s173
    %p177 = scmp.eq.s32.totalorder %s32, 0
    %p178 = por %p176, %p177
    %p179 = scmp.ne.s32.totalorder %s171, %s173
    %p180 = scmp.eq.s32.totalorder %s37, 1
    %p181 = por %p179, %p180
    %p182 = scmp.ne.s32.totalorder %s173, %s174
    %p183 = scmp.eq.s32.totalorder %s37, 0
    %p184 = por %p182, %p183
    %p185 = scmp.ne.s32.totalorder %s173, %s174
    %p186 = scmp.eq.s32.totalorder %s38, 1
    %p187 = por %p185, %p186
    %p189 = scmp.ne.s32.totalorder %s174, %s188
    %p190 = scmp.eq.s32.totalorder %s38, 0
    %p191 = por %p189, %p190
    %s193 = sadd.s32 %s192, 1
    %p196 = scmp.eq.s32.totalorder %s32, 1
    %p197 = scmp.ne.s32.totalorder %s192, %s194
    %p198 = scmp.eq.s32.totalorder %s32, 0
    %p199 = por %p197, %p198
    %p200 = scmp.ne.s32.totalorder %s192, %s194
    %p201 = scmp.eq.s32.totalorder %s37, 1
    %p202 = por %p200, %p201
    %p203 = scmp.ne.s32.totalorder %s194, %s195
    %p204 = scmp.eq.s32.totalorder %s37, 0
    %p205 = por %p203, %p204
    %p206 = scmp.ne.s32.totalorder %s194, %s195
    %p207 = scmp.eq.s32.totalorder %s38, 1
    %p208 = por %p206, %p207
    %p210 = scmp.ne.s32.totalorder %s195, %s209
    %p211 = scmp.eq.s32.totalorder %s38, 0
    %p212 = por %p210, %p211
    %s214 = sadd.s32 %s213, 1
    %p217 = scmp.eq.s32.totalorder %s32, 1
    %p218 = scmp.ne.s32.totalorder %s213, %s215
    %p219 = scmp.eq.s32.totalorder %s32, 0
    %p220 = por %p218, %p219
    %p221 = scmp.ne.s32.totalorder %s213, %s215
    %p222 = scmp.eq.s32.totalorder %s37, 1
    %p223 = por %p221, %p222
    %p224 = scmp.ne.s32.totalorder %s215, %s216
    %p225 = scmp.eq.s32.totalorder %s37, 0
    %p226 = por %p224, %p225
    %p227 = scmp.ne.s32.totalorder %s215, %s216
    %p228 = scmp.eq.s32.totalorder %s38, 1
    %p229 = por %p227, %p228
    %p231 = scmp.ne.s32.totalorder %s216, %s230
    %p232 = scmp.eq.s32.totalorder %s38, 0
    %p233 = por %p231, %p232
    %s235 = sadd.s32 %s234, 1
    %p238 = scmp.eq.s32.totalorder %s32, 1
    %p239 = scmp.ne.s32.totalorder %s234, %s236
    %p240 = scmp.eq.s32.totalorder %s32, 0
    %p241 = por %p239, %p240
    %p242 = scmp.ne.s32.totalorder %s234, %s236
    %p243 = scmp.eq.s32.totalorder %s37, 1
    %p244 = por %p242, %p243
    %p245 = scmp.ne.s32.totalorder %s236, %s237
    %p246 = scmp.eq.s32.totalorder %s37, 0
    %p247 = por %p245, %p246
    %p248 = scmp.ne.s32.totalorder %s236, %s237
    %p249 = scmp.eq.s32.totalorder %s38, 1
    %p250 = por %p248, %p249
    %p252 = scmp.ne.s32.totalorder %s237, %s251
    %p253 = scmp.eq.s32.totalorder %s38, 0
    %p254 = por %p252, %p253
    %s256 = sadd.s32 %s255, 1
    %p259 = scmp.eq.s32.totalorder %s32, 1
    %p260 = scmp.ne.s32.totalorder %s255, %s257
    %p261 = scmp.eq.s32.totalorder %s32, 0
    %p262 = por %p260, %p261
    %p263 = scmp.ne.s32.totalorder %s255, %s257
    %p264 = scmp.eq.s32.totalorder %s37, 1
    %p265 = por %p263, %p264
    %p266 = scmp.ne.s32.totalorder %s257, %s258
    %p267 = scmp.eq.s32.totalorder %s37, 0
    %p268 = por %p266, %p267
    %p269 = scmp.ne.s32.totalorder %s257, %s258
    %p270 = scmp.eq.s32.totalorder %s38, 1
    %p271 = por %p269, %p270
    %p273 = scmp.ne.s32.totalorder %s258, %s272
    %p274 = scmp.eq.s32.totalorder %s38, 0
    %p275 = por %p273, %p274
    %s277 = sadd.s32 %s276, 1
    %p280 = scmp.eq.s32.totalorder %s32, 1
    %p281 = scmp.ne.s32.totalorder %s276, %s278
    %p282 = scmp.eq.s32.totalorder %s32, 0
    %p283 = por %p281, %p282
    %p284 = scmp.ne.s32.totalorder %s276, %s278
    %p285 = scmp.eq.s32.totalorder %s37, 1
    %p286 = por %p284, %p285
    %p287 = scmp.ne.s32.totalorder %s278, %s279
    %p288 = scmp.eq.s32.totalorder %s37, 0
    %p289 = por %p287, %p288
    %p290 = scmp.ne.s32.totalorder %s278, %s279
    %p291 = scmp.eq.s32.totalorder %s38, 1
    %p292 = por %p290, %p291
    %p294 = scmp.ne.s32.totalorder %s279, %s293
    %p295 = scmp.eq.s32.totalorder %s38, 0
    %p296 = por %p294, %p295
    %s298 = sadd.s32 %s297, 1
    %p301 = scmp.eq.s32.totalorder %s32, 1
    %p302 = scmp.ne.s32.totalorder %s297, %s299
    %p303 = scmp.eq.s32.totalorder %s32, 0
    %p304 = por %p302, %p303
    %p305 = scmp.ne.s32.totalorder %s297, %s299
    %p306 = scmp.eq.s32.totalorder %s37, 1
    %p307 = por %p305, %p306
    %p308 = scmp.ne.s32.totalorder %s299, %s300
    %p309 = scmp.eq.s32.totalorder %s37, 0
    %p310 = por %p308, %p309
    %p311 = scmp.ne.s32.totalorder %s299, %s300
    %p312 = scmp.eq.s32.totalorder %s38, 1
    %p313 = por %p311, %p312
    %p315 = scmp.ne.s32.totalorder %s300, %s314
    %p316 = scmp.eq.s32.totalorder %s38, 0
    %p317 = por %p315, %p316
    %s319 = sadd.s32 %s318, 1
    %p322 = scmp.eq.s32.totalorder %s32, 1
    %p323 = scmp.ne.s32.totalorder %s318, %s320
    %p324 = scmp.eq.s32.totalorder %s32, 0
    %p325 = por %p323, %p324
    %p326 = scmp.ne.s32.totalorder %s318, %s320
    %p327 = scmp.eq.s32.totalorder %s37, 1
    %p328 = por %p326, %p327
    %p329 = scmp.ne.s32.totalorder %s320, %s321
    %p330 = scmp.eq.s32.totalorder %s37, 0
    %p331 = por %p329, %p330
    %p332 = scmp.ne.s32.totalorder %s320, %s321
    %p333 = scmp.eq.s32.totalorder %s38, 1
    %p334 = por %p332, %p333
    %p336 = scmp.ne.s32.totalorder %s321, %s335
    %p337 = scmp.eq.s32.totalorder %s38, 0
    %p338 = por %p336, %p337
    %s340 = sadd.s32 %s339, 1
    %p343 = scmp.eq.s32.totalorder %s32, 1
    %p344 = scmp.ne.s32.totalorder %s339, %s341
    %p345 = scmp.eq.s32.totalorder %s32, 0
    %p346 = por %p344, %p345
    %p347 = scmp.ne.s32.totalorder %s339, %s341
    %p348 = scmp.eq.s32.totalorder %s37, 1
    %p349 = por %p347, %p348
    %p350 = scmp.ne.s32.totalorder %s341, %s342
    %p351 = scmp.eq.s32.totalorder %s37, 0
    %p352 = por %p350, %p351
    %p353 = scmp.ne.s32.totalorder %s341, %s342
    %p354 = scmp.eq.s32.totalorder %s38, 1
    %p355 = por %p353, %p354
    %p357 = scmp.ne.s32.totalorder %s342, %s356
    %p358 = scmp.eq.s32.totalorder %s38, 0
    %p359 = por %p357, %p358
    %s361 = sadd.s32 %s360, 1
    %p364 = scmp.eq.s32.totalorder %s32, 1
    %p365 = scmp.ne.s32.totalorder %s360, %s362
    %p366 = scmp.eq.s32.totalorder %s32, 0
    %p367 = por %p365, %p366
    %p368 = scmp.ne.s32.totalorder %s360, %s362
    %p369 = scmp.eq.s32.totalorder %s37, 1
    %p370 = por %p368, %p369
    %p371 = scmp.ne.s32.totalorder %s362, %s363
    %p372 = scmp.eq.s32.totalorder %s37, 0
    %p373 = por %p371, %p372
    %p374 = scmp.ne.s32.totalorder %s362, %s363
    %p375 = scmp.eq.s32.totalorder %s38, 1
    %p376 = por %p374, %p375
    %p378 = scmp.ne.s32.totalorder %s363, %s377
    %p379 = scmp.eq.s32.totalorder %s38, 0
    %p380 = por %p378, %p379
    %s382 = sadd.s32 %s381, 1
    %p385 = scmp.eq.s32.totalorder %s32, 1
    %p386 = scmp.ne.s32.totalorder %s381, %s383
    %p387 = scmp.eq.s32.totalorder %s32, 0
    %p388 = por %p386, %p387
    %p389 = scmp.ne.s32.totalorder %s381, %s383
    %p390 = scmp.eq.s32.totalorder %s37, 1
    %p391 = por %p389, %p390
    %p392 = scmp.ne.s32.totalorder %s383, %s384
    %p393 = scmp.eq.s32.totalorder %s37, 0
    %p394 = por %p392, %p393
    %p395 = scmp.ne.s32.totalorder %s383, %s384
    %p396 = scmp.eq.s32.totalorder %s38, 1
    %p397 = por %p395, %p396
    %p399 = scmp.ne.s32.totalorder %s384, %s398
    %p400 = scmp.eq.s32.totalorder %s38, 0
    %p401 = por %p399, %p400
    %s403 = sadd.s32 %s402, 1
    %p406 = scmp.eq.s32.totalorder %s32, 1
    %p407 = scmp.ne.s32.totalorder %s402, %s404
    %p408 = scmp.eq.s32.totalorder %s32, 0
    %p409 = por %p407, %p408
    %p410 = scmp.ne.s32.totalorder %s402, %s404
    %p411 = scmp.eq.s32.totalorder %s37, 1
    %p412 = por %p410, %p411
    %p413 = scmp.ne.s32.totalorder %s404, %s405
    %p414 = scmp.eq.s32.totalorder %s37, 0
    %p415 = por %p413, %p414
    %p416 = scmp.ne.s32.totalorder %s404, %s405
    %p417 = scmp.eq.s32.totalorder %s38, 1
    %p418 = por %p416, %p417
    %p420 = scmp.ne.s32.totalorder %s405, %s419
    %p421 = scmp.eq.s32.totalorder %s38, 0
    %p422 = por %p420, %p421
    %s424 = sadd.s32 %s423, 1
    %p427 = scmp.eq.s32.totalorder %s32, 1
    %p428 = scmp.ne.s32.totalorder %s423, %s425
    %p429 = scmp.eq.s32.totalorder %s32, 0
    %p430 = por %p428, %p429
    %p431 = scmp.ne.s32.totalorder %s423, %s425
    %p432 = scmp.eq.s32.totalorder %s37, 1
    %p433 = por %p431, %p432
    %p434 = scmp.ne.s32.totalorder %s425, %s426
    %p435 = scmp.eq.s32.totalorder %s37, 0
    %p436 = por %p434, %p435
    %p437 = scmp.ne.s32.totalorder %s425, %s426
    %p438 = scmp.eq.s32.totalorder %s38, 1
    %p439 = por %p437, %p438
    %p441 = scmp.ne.s32.totalorder %s426, %s440
    %p442 = scmp.eq.s32.totalorder %s38, 0
    %p443 = por %p441, %p442
    %s445 = sadd.s32 %s444, 1
    %p448 = scmp.eq.s32.totalorder %s32, 1
    %p449 = scmp.ne.s32.totalorder %s444, %s446
    %p450 = scmp.eq.s32.totalorder %s32, 0
    %p451 = por %p449, %p450
    %p452 = scmp.ne.s32.totalorder %s444, %s446
    %p453 = scmp.eq.s32.totalorder %s37, 1
    %p454 = por %p452, %p453
    %p455 = scmp.ne.s32.totalorder %s446, %s447
    %p456 = scmp.eq.s32.totalorder %s37, 0
    %p457 = por %p455, %p456
    %p458 = scmp.ne.s32.totalorder %s446, %s447
    %p459 = scmp.eq.s32.totalorder %s38, 1
    %p460 = por %p458, %p459
    %p462 = scmp.ne.s32.totalorder %s447, %s461
    %p463 = scmp.eq.s32.totalorder %s38, 0
    %p464 = por %p462, %p463
    %s466 = sadd.s32 %s465, 1
    %p469 = scmp.eq.s32.totalorder %s32, 1
    %p470 = scmp.ne.s32.totalorder %s465, %s467
    %p471 = scmp.eq.s32.totalorder %s32, 0
    %p472 = por %p470, %p471
    %p473 = scmp.ne.s32.totalorder %s465, %s467
    %p474 = scmp.eq.s32.totalorder %s37, 1
    %p475 = por %p473, %p474
    %p476 = scmp.ne.s32.totalorder %s467, %s468
    %p477 = scmp.eq.s32.totalorder %s37, 0
    %p478 = por %p476, %p477
    %p479 = scmp.ne.s32.totalorder %s467, %s468
    %p480 = scmp.eq.s32.totalorder %s38, 1
    %p481 = por %p479, %p480
    %p483 = scmp.ne.s32.totalorder %s468, %s482
    %p484 = scmp.eq.s32.totalorder %s38, 0
    %p485 = por %p483, %p484
    %s487 = sadd.s32 %s486, 1
    %p490 = scmp.eq.s32.totalorder %s32, 1
    %p491 = scmp.ne.s32.totalorder %s486, %s488
    %p492 = scmp.eq.s32.totalorder %s32, 0
    %p493 = por %p491, %p492
    %p494 = scmp.ne.s32.totalorder %s486, %s488
    %p495 = scmp.eq.s32.totalorder %s37, 1
    %p496 = por %p494, %p495
    %p497 = scmp.ne.s32.totalorder %s488, %s489
    %p498 = scmp.eq.s32.totalorder %s37, 0
    %p499 = por %p497, %p498
    %p500 = scmp.ne.s32.totalorder %s488, %s489
    %p501 = scmp.eq.s32.totalorder %s38, 1
    %p502 = por %p500, %p501
    %p504 = scmp.ne.s32.totalorder %s489, %s503
    %p505 = scmp.eq.s32.totalorder %s38, 0
    %p506 = por %p504, %p505
    %s508 = sadd.s32 %s507, 1
    %p511 = scmp.eq.s32.totalorder %s32, 1
    %p512 = scmp.ne.s32.totalorder %s507, %s509
    %p513 = scmp.eq.s32.totalorder %s32, 0
    %p514 = por %p512, %p513
    %p515 = scmp.ne.s32.totalorder %s507, %s509
    %p516 = scmp.eq.s32.totalorder %s37, 1
    %p517 = por %p515, %p516
    %p518 = scmp.ne.s32.totalorder %s509, %s510
    %p519 = scmp.eq.s32.totalorder %s37, 0
    %p520 = por %p518, %p519
    %p521 = scmp.ne.s32.totalorder %s509, %s510
    %p522 = scmp.eq.s32.totalorder %s38, 1
    %p523 = por %p521, %p522
    %p525 = scmp.ne.s32.totalorder %s510, %s524
    %p526 = scmp.eq.s32.totalorder %s38, 0
    %p527 = por %p525, %p526
    %s529 = sadd.s32 %s528, 1
    %p532 = scmp.eq.s32.totalorder %s32, 1
    %p533 = scmp.ne.s32.totalorder %s528, %s530
    %p534 = scmp.eq.s32.totalorder %s32, 0
    %p535 = por %p533, %p534
    %p536 = scmp.ne.s32.totalorder %s528, %s530
    %p537 = scmp.eq.s32.totalorder %s37, 1
    %p538 = por %p536, %p537
    %p539 = scmp.ne.s32.totalorder %s530, %s531
    %p540 = scmp.eq.s32.totalorder %s37, 0
    %p541 = por %p539, %p540
    %p542 = scmp.ne.s32.totalorder %s530, %s531
    %p543 = scmp.eq.s32.totalorder %s38, 1
    %p544 = por %p542, %p543
    %p546 = scmp.ne.s32.totalorder %s531, %s545
    %p547 = scmp.eq.s32.totalorder %s38, 0
    %p548 = por %p546, %p547
    %s550 = sadd.s32 %s549, 1
    %p553 = scmp.eq.s32.totalorder %s32, 1
    %p554 = scmp.ne.s32.totalorder %s549, %s551
    %p555 = scmp.eq.s32.totalorder %s32, 0
    %p556 = por %p554, %p555
    %p557 = scmp.ne.s32.totalorder %s549, %s551
    %p558 = scmp.eq.s32.totalorder %s37, 1
    %p559 = por %p557, %p558
    %p560 = scmp.ne.s32.totalorder %s551, %s552
    %p561 = scmp.eq.s32.totalorder %s37, 0
    %p562 = por %p560, %p561
    %p563 = scmp.ne.s32.totalorder %s551, %s552
    %p564 = scmp.eq.s32.totalorder %s38, 1
    %p565 = por %p563, %p564
    %p567 = scmp.ne.s32.totalorder %s552, %s566
    %p568 = scmp.eq.s32.totalorder %s38, 0
    %p569 = por %p567, %p568
    %s571 = sadd.s32 %s570, 1
    %p574 = scmp.eq.s32.totalorder %s32, 1
    %p575 = scmp.ne.s32.totalorder %s570, %s572
    %p576 = scmp.eq.s32.totalorder %s32, 0
    %p577 = por %p575, %p576
    %p578 = scmp.ne.s32.totalorder %s570, %s572
    %p579 = scmp.eq.s32.totalorder %s37, 1
    %p580 = por %p578, %p579
    %p581 = scmp.ne.s32.totalorder %s572, %s573
    %p582 = scmp.eq.s32.totalorder %s37, 0
    %p583 = por %p581, %p582
    %p584 = scmp.ne.s32.totalorder %s572, %s573
    %p585 = scmp.eq.s32.totalorder %s38, 1
    %p586 = por %p584, %p585
    %p588 = scmp.ne.s32.totalorder %s573, %s587
    %p589 = scmp.eq.s32.totalorder %s38, 0
    %p590 = por %p588, %p589
    %s591 = ssub.s32 %s32, %s39
    %p592 = scmp.eq.s32.totalorder %s591, 0
    %s594 = sadd.s32 %s593, 1
    %s595 = scalar_select %p592, %s593, %s594
    %p598 = pneg %p592
    %p599 = scmp.eq.s32.totalorder %s32, 1
    %p600 = por %p598, %p599
    %p601 = scmp.ne.s32.totalorder %s593, %s596
    %p602 = scmp.eq.s32.totalorder %s32, 0
    %p603 = por %p601, %p602
    %p604 = scmp.ne.s32.totalorder %s593, %s596
    %p605 = scmp.eq.s32.totalorder %s37, 1
    %p606 = por %p604, %p605
    %p607 = scmp.ne.s32.totalorder %s596, %s597
    %p608 = scmp.eq.s32.totalorder %s37, 0
    %p609 = por %p607, %p608
    %p610 = scmp.ne.s32.totalorder %s596, %s597
    %p611 = scmp.eq.s32.totalorder %s38, 1
    %p612 = por %p610, %p611
    %p614 = scmp.ne.s32.totalorder %s597, %s613
    %p615 = scmp.eq.s32.totalorder %s38, 0
    %p616 = por %p614, %p615
    %p617 = scmp.le.s32.totalorder 1, %s32
    %p618 = scmp.lt.s32.totalorder %s32, 3
    %p619 = pnand %p617, %p618
    %p620 = pneg %p619
    // Predicated region
    $region9: #{autoencoder_forward.1} parent=5 // pred_check
      _
    $region10: #{autoencoder_forward.1} parent=5 // pred_check_branch
      %622 = sbr.rel (%p619) target = $region12
    $region11: #{autoencoder_forward.1} parent=5 // pred_region
      %s623 = ssub.s32 %s32, 1
      // Predicated region
      $region13: #{autoencoder_forward.1} parent=11 // pred_check
        %p624 = pneg %p79
      $region14: #{autoencoder_forward.1} parent=11 // pred_check_branch
        %626 = sbr.rel (%p624) target = $region16
      $region15: #{autoencoder_forward.1} parent=11 // pred_region
        _
      $region16: #{autoencoder_forward.1} parent=11 // pred_fallthru
        _
      // Predicated region
      $region17: #{autoencoder_forward.1} parent=11 // pred_check
        %p627 = pneg %p100
      $region18: #{autoencoder_forward.1} parent=11 // pred_check_branch
        %629 = sbr.rel (%p627) target = $region20
      $region19: #{autoencoder_forward.1} parent=11 // pred_region
        _
      $region20: #{autoencoder_forward.1} parent=11 // pred_fallthru
        _
      // Predicated region
      $region21: #{autoencoder_forward.1} parent=11 // pred_check
        %p630 = pneg %p121
      $region22: #{autoencoder_forward.1} parent=11 // pred_check_branch
        %632 = sbr.rel (%p630) target = $region24
      $region23: #{autoencoder_forward.1} parent=11 // pred_region
        _
      $region24: #{autoencoder_forward.1} parent=11 // pred_fallthru
        _
      // Predicated region
      $region25: #{autoencoder_forward.1} parent=11 // pred_check
        %p633 = pneg %p142
      $region26: #{autoencoder_forward.1} parent=11 // pred_check_branch
        %635 = sbr.rel (%p633) target = $region28
      $region27: #{autoencoder_forward.1} parent=11 // pred_region
        _
      $region28: #{autoencoder_forward.1} parent=11 // pred_fallthru
        _
      // Predicated region
      $region29: #{autoencoder_forward.1} parent=11 // pred_check
        %p636 = pneg %p163
      $region30: #{autoencoder_forward.1} parent=11 // pred_check_branch
        %638 = sbr.rel (%p636) target = $region32
      $region31: #{autoencoder_forward.1} parent=11 // pred_region
        _
      $region32: #{autoencoder_forward.1} parent=11 // pred_fallthru
        _
      // Predicated region
      $region33: #{autoencoder_forward.1} parent=11 // pred_check
        %p639 = pneg %p184
      $region34: #{autoencoder_forward.1} parent=11 // pred_check_branch
        %641 = sbr.rel (%p639) target = $region36
      $region35: #{autoencoder_forward.1} parent=11 // pred_region
        _
      $region36: #{autoencoder_forward.1} parent=11 // pred_fallthru
        _
      // Predicated region
      $region37: #{autoencoder_forward.1} parent=11 // pred_check
        %p642 = pneg %p205
      $region38: #{autoencoder_forward.1} parent=11 // pred_check_branch
        %644 = sbr.rel (%p642) target = $region40
      $region39: #{autoencoder_forward.1} parent=11 // pred_region
        _
      $region40: #{autoencoder_forward.1} parent=11 // pred_fallthru
        _
      // Predicated region
      $region41: #{autoencoder_forward.1} parent=11 // pred_check
        %p645 = pneg %p226
      $region42: #{autoencoder_forward.1} parent=11 // pred_check_branch
        %647 = sbr.rel (%p645) target = $region44
      $region43: #{autoencoder_forward.1} parent=11 // pred_region
        _
      $region44: #{autoencoder_forward.1} parent=11 // pred_fallthru
        _
      // Predicated region
      $region45: #{autoencoder_forward.1} parent=11 // pred_check
        %p648 = pneg %p247
      $region46: #{autoencoder_forward.1} parent=11 // pred_check_branch
        %650 = sbr.rel (%p648) target = $region48
      $region47: #{autoencoder_forward.1} parent=11 // pred_region
        _
      $region48: #{autoencoder_forward.1} parent=11 // pred_fallthru
        _
      // Predicated region
      $region49: #{autoencoder_forward.1} parent=11 // pred_check
        %p651 = pneg %p268
      $region50: #{autoencoder_forward.1} parent=11 // pred_check_branch
        %653 = sbr.rel (%p651) target = $region52
      $region51: #{autoencoder_forward.1} parent=11 // pred_region
        _
      $region52: #{autoencoder_forward.1} parent=11 // pred_fallthru
        _
      // Predicated region
      $region53: #{autoencoder_forward.1} parent=11 // pred_check
        %p654 = pneg %p289
      $region54: #{autoencoder_forward.1} parent=11 // pred_check_branch
        %656 = sbr.rel (%p654) target = $region56
      $region55: #{autoencoder_forward.1} parent=11 // pred_region
        _
      $region56: #{autoencoder_forward.1} parent=11 // pred_fallthru
        _
      // Predicated region
      $region57: #{autoencoder_forward.1} parent=11 // pred_check
        %p657 = pneg %p310
      $region58: #{autoencoder_forward.1} parent=11 // pred_check_branch
        %659 = sbr.rel (%p657) target = $region60
      $region59: #{autoencoder_forward.1} parent=11 // pred_region
        _
      $region60: #{autoencoder_forward.1} parent=11 // pred_fallthru
        _
      // Predicated region
      $region61: #{autoencoder_forward.1} parent=11 // pred_check
        %p660 = pneg %p331
      $region62: #{autoencoder_forward.1} parent=11 // pred_check_branch
        %662 = sbr.rel (%p660) target = $region64
      $region63: #{autoencoder_forward.1} parent=11 // pred_region
        _
      $region64: #{autoencoder_forward.1} parent=11 // pred_fallthru
        _
      // Predicated region
      $region65: #{autoencoder_forward.1} parent=11 // pred_check
        %p663 = pneg %p352
      $region66: #{autoencoder_forward.1} parent=11 // pred_check_branch
        %665 = sbr.rel (%p663) target = $region68
      $region67: #{autoencoder_forward.1} parent=11 // pred_region
        _
      $region68: #{autoencoder_forward.1} parent=11 // pred_fallthru
        _
      // Predicated region
      $region69: #{autoencoder_forward.1} parent=11 // pred_check
        %p666 = pneg %p373
      $region70: #{autoencoder_forward.1} parent=11 // pred_check_branch
        %668 = sbr.rel (%p666) target = $region72
      $region71: #{autoencoder_forward.1} parent=11 // pred_region
        _
      $region72: #{autoencoder_forward.1} parent=11 // pred_fallthru
        _
      // Predicated region
      $region73: #{autoencoder_forward.1} parent=11 // pred_check
        %p669 = pneg %p394
      $region74: #{autoencoder_forward.1} parent=11 // pred_check_branch
        %671 = sbr.rel (%p669) target = $region76
      $region75: #{autoencoder_forward.1} parent=11 // pred_region
        _
      $region76: #{autoencoder_forward.1} parent=11 // pred_fallthru
        _
      // Predicated region
      $region77: #{autoencoder_forward.1} parent=11 // pred_check
        %p672 = pneg %p415
      $region78: #{autoencoder_forward.1} parent=11 // pred_check_branch
        %674 = sbr.rel (%p672) target = $region80
      $region79: #{autoencoder_forward.1} parent=11 // pred_region
        _
      $region80: #{autoencoder_forward.1} parent=11 // pred_fallthru
        _
      // Predicated region
      $region81: #{autoencoder_forward.1} parent=11 // pred_check
        %p675 = pneg %p436
      $region82: #{autoencoder_forward.1} parent=11 // pred_check_branch
        %677 = sbr.rel (%p675) target = $region84
      $region83: #{autoencoder_forward.1} parent=11 // pred_region
        _
      $region84: #{autoencoder_forward.1} parent=11 // pred_fallthru
        _
      // Predicated region
      $region85: #{autoencoder_forward.1} parent=11 // pred_check
        %p678 = pneg %p457
      $region86: #{autoencoder_forward.1} parent=11 // pred_check_branch
        %680 = sbr.rel (%p678) target = $region88
      $region87: #{autoencoder_forward.1} parent=11 // pred_region
        _
      $region88: #{autoencoder_forward.1} parent=11 // pred_fallthru
        _
      // Predicated region
      $region89: #{autoencoder_forward.1} parent=11 // pred_check
        %p681 = pneg %p478
      $region90: #{autoencoder_forward.1} parent=11 // pred_check_branch
        %683 = sbr.rel (%p681) target = $region92
      $region91: #{autoencoder_forward.1} parent=11 // pred_region
        _
      $region92: #{autoencoder_forward.1} parent=11 // pred_fallthru
        _
      // Predicated region
      $region93: #{autoencoder_forward.1} parent=11 // pred_check
        %p684 = pneg %p499
      $region94: #{autoencoder_forward.1} parent=11 // pred_check_branch
        %686 = sbr.rel (%p684) target = $region96
      $region95: #{autoencoder_forward.1} parent=11 // pred_region
        _
      $region96: #{autoencoder_forward.1} parent=11 // pred_fallthru
        _
      // Predicated region
      $region97: #{autoencoder_forward.1} parent=11 // pred_check
        %p687 = pneg %p520
      $region98: #{autoencoder_forward.1} parent=11 // pred_check_branch
        %689 = sbr.rel (%p687) target = $region100
      $region99: #{autoencoder_forward.1} parent=11 // pred_region
        _
      $region100: #{autoencoder_forward.1} parent=11 // pred_fallthru
        _
      // Predicated region
      $region101: #{autoencoder_forward.1} parent=11 // pred_check
        %p690 = pneg %p541
      $region102: #{autoencoder_forward.1} parent=11 // pred_check_branch
        %692 = sbr.rel (%p690) target = $region104
      $region103: #{autoencoder_forward.1} parent=11 // pred_region
        _
      $region104: #{autoencoder_forward.1} parent=11 // pred_fallthru
        _
      // Predicated region
      $region105: #{autoencoder_forward.1} parent=11 // pred_check
        %p693 = pneg %p562
      $region106: #{autoencoder_forward.1} parent=11 // pred_check_branch
        %695 = sbr.rel (%p693) target = $region108
      $region107: #{autoencoder_forward.1} parent=11 // pred_region
        _
      $region108: #{autoencoder_forward.1} parent=11 // pred_fallthru
        _
      // Predicated region
      $region109: #{autoencoder_forward.1} parent=11 // pred_check
        %p696 = pneg %p583
      $region110: #{autoencoder_forward.1} parent=11 // pred_check_branch
        %698 = sbr.rel (%p696) target = $region112
      $region111: #{autoencoder_forward.1} parent=11 // pred_region
        _
      $region112: #{autoencoder_forward.1} parent=11 // pred_fallthru
        _
    $region12: #{autoencoder_forward.1} parent=5 // pred_fallthru
      _
    %p699 = scmp.lt.s32.totalorder %s32, 2
    // Predicated region
    $region113: #{autoencoder_forward.1} parent=5 // pred_check
      %p700 = pneg %p699
    $region114: #{autoencoder_forward.1} parent=5 // pred_check_branch
      %702 = sbr.rel (%p700) target = $region116
    $region115: #{autoencoder_forward.1} parent=5 // pred_region
      // Predicated region
      $region117: #{autoencoder_forward.1} parent=115 // pred_check
        %p703 = pneg %p52
      $region118: #{autoencoder_forward.1} parent=115 // pred_check_branch
        %705 = sbr.rel (%p703) target = $region120
      $region119: #{autoencoder_forward.1} parent=115 // pred_region
        %s706 = smul.u32 8, %s32
        %p707 = scmp.lt.s32.totalorder %s706, 15
        %s708 = scalar_select %p707, %s706, 15
        %s709 = smul.addr %s708, 8
        %s710 = scalar_lea.vmem %s0, %s709
        %s711 = smul.u32 8, %s32
      $region120: #{autoencoder_forward.1} parent=115 // pred_fallthru
        _
    $region116: #{autoencoder_forward.1} parent=5 // pred_fallthru
      _
    %p712 = scmp.le.s32.totalorder 1, %s32
    %p713 = scmp.lt.s32.totalorder %s32, 3
    %p714 = pnand %p712, %p713
    %p715 = pneg %p714
    // Predicated region
    $region121: #{autoencoder_forward.1} parent=5 // pred_check
      _
    $region122: #{autoencoder_forward.1} parent=5 // pred_check_branch
      %717 = sbr.rel (%p714) target = $region124
    $region123: #{autoencoder_forward.1} parent=5 // pred_region
      %s718 = ssub.s32 %s32, 1
      %s719 = smul.u32 8, %s37
      %p720 = scmp.lt.s32.totalorder %s719, 15
      %s721 = scalar_select %p720, %s719, 15
      %s722 = smul.addr %s721, 8
      %s723 = scalar_lea.vmem %s0, %s722
      %p724 = pneg %p58
      %p725 = pneg %p55
      %p726 = pneg %p79
      %p727 = pneg %p76
      %p728 = pneg %p100
      %p729 = pneg %p97
      %p730 = pneg %p121
      %p731 = pneg %p118
      %p732 = pneg %p142
      %p733 = pneg %p139
      %p734 = pneg %p163
      %p735 = pneg %p160
      %p736 = pneg %p184
      %p737 = pneg %p181
      %p738 = pneg %p205
      %p739 = pneg %p202
      %p740 = pneg %p226
      %p741 = pneg %p223
      %p742 = pneg %p247
      %p743 = pneg %p244
      %p744 = pneg %p268
      %p745 = pneg %p265
      %p746 = pneg %p289
      %p747 = pneg %p286
      %p748 = pneg %p310
      %p749 = pneg %p307
      %p750 = pneg %p331
      %p751 = pneg %p328
      %p752 = pneg %p352
      %p753 = pneg %p349
      %p754 = pneg %p373
      %p755 = pneg %p370
      %p756 = pneg %p394
      %p757 = pneg %p391
      %p758 = pneg %p415
      %p759 = pneg %p412
      %p760 = pneg %p436
      %p761 = pneg %p433
      %p762 = pneg %p457
      %p763 = pneg %p454
      %p764 = pneg %p478
      %p765 = pneg %p475
      %p766 = pneg %p499
      %p767 = pneg %p496
      %p768 = pneg %p520
      %p769 = pneg %p517
      %p770 = pneg %p541
      %p771 = pneg %p538
      %p772 = pneg %p562
      %p773 = pneg %p559
      %p774 = pneg %p583
      %p775 = pneg %p580
      %p776 = pneg %p609
      %p777 = pneg %p606
      %s778 = smul.u32 8, %s37
      %p779 = scmp.lt.s32.totalorder %s778, 15
      %s780 = scalar_select %p779, %s778, 15
      %s781 = smul.addr %s780, 8
      %s782 = scalar_lea.vmem %s26, %s781
      %s783 = smul.u32 8, %s37
      %p784 = scmp.lt.s32.totalorder %s783, 15
      %s785 = scalar_select %p784, %s783, 15
      %s786 = smul.addr %s785, 8
      %s787 = scalar_lea.vmem %s0, %s786
      %s788 = smul.u32 8, %s37
      %s789 = smul.u32 8, %s37
      %p790 = scmp.lt.s32.totalorder %s789, 15
      %s791 = scalar_select %p790, %s789, 15
      %s792 = smul.addr %s791, 8
      %s793 = scalar_lea.vmem %s26, %s792
      %s794 = smul.u32 8, %s37
      %v796 = vld [vmem:[%s787] sm:$0xff]
      %v797 = vld [vmem:[%s787 + $0x8] sm:$0xff]
      %v798 = vld [vmem:[%s787 + $0x10] sm:$0xff]
      %v799 = vld [vmem:[%s787 + $0x18] sm:$0xff]
      %v800 = vld [vmem:[%s787 + $0x20] sm:$0xff]
      %v801 = vld [vmem:[%s787 + $0x28] sm:$0xff]
      %v802 = vld [vmem:[%s787 + $0x30] sm:$0xff]
      %v803 = vld [vmem:[%s787 + $0x38] sm:$0xff]
      %v804 = vld [vmem:[%s1] sm:$0xf]
      %v805 = vld [vmem:[%s1 + $0x4] sm:$0xf]
      %v806 = vld [vmem:[%s1 + $0x8] sm:$0xf]
      %v807 = vld [vmem:[%s1 + $0xc] sm:$0xf]
      %v808 = vld [vmem:[%s1 + $0x10] sm:$0xf]
      %v809 = vld [vmem:[%s1 + $0x14] sm:$0xf]
      %v810 = vld [vmem:[%s1 + $0x18] sm:$0xf]
      %v811 = vld [vmem:[%s1 + $0x1c] sm:$0xf]
      %v812 = vld [vmem:[%s1 + $0x20] sm:$0xf]
      %v813 = vld [vmem:[%s1 + $0x24] sm:$0xf]
      %v814 = vpack.c.bf16 %v797, %v796
      %v815 = vpack.c.bf16 %v799, %v798
      %v816 = vpack.c.bf16 %v801, %v800
      %v817 = vpack.c.bf16 %v803, %v802
      %v828 = vunpack.c.l.b16 %v804
      %v829 = vunpack.c.l.b16 %v805
      %v830 = vunpack.c.l.b16 %v806
      %v831 = vunpack.c.l.b16 %v807
      %v832 = vunpack.c.l.b16 %v808
      %v833 = vunpack.c.l.b16 %v809
      %v834 = vunpack.c.l.b16 %v810
      %v835 = vunpack.c.l.b16 %v811
      %v836 = vunpack.c.l.b16 %v812
      %v837 = vunpack.c.l.b16 %v813
      %v838 = vpack.c.b16 %v829, %v828
      %v839 = vpack.c.b16 %v831, %v830
      %v840 = vpack.c.b16 %v833, %v832
      %v841 = vpack.c.b16 %v835, %v834
      %v842 = vpack.c.b16 %v837, %v836
      %vm843 = vcmask 523264
      %v845 = vsel %vm843, %v838, 0
      %v848 = vsel %vm843, %v839, 0
      %v851 = vsel %vm843, %v840, 0
      %v854 = vsel %vm843, %v841, 0
      %v857 = vsel %vm843, %v842, 0
      %859 = vmatprep.subr.bf16.mxu0 0
      %860 = vmatpush1.bf16.msra.mxu0 0
      %861 = vmatprep.subr.bf16.mxu0 0
      %862 = vmatpush1.bf16.msra.mxu0 0
      %863 = vmatprep.subr.bf16.mxu0 0
      %864 = vmatpush1.bf16.msra.mxu0 0
      %865 = vmatprep.subr.bf16.mxu0 0
      %866 = vmatpush1.bf16.msra.mxu0 0
      %867 = vmatprep.subr.bf16.mxu0 0
      %868 = vmatpush1.bf16.msra.mxu0 %v817
      %869 = vmatprep.subr.bf16.mxu0 0
      %870 = vmatpush1.bf16.msra.mxu0 %v816
      %871 = vmatprep.subr.bf16.mxu0 0
      %872 = vmatpush1.bf16.msra.mxu0 %v815
      %873 = vmatprep.subr.bf16.mxu0 0
      %874 = vmatpush1.bf16.msra.mxu0 %v814
      %875 = vmatprep.subr.bf16.mxu0 0
      %876 = vmatpush2.bf16.msra.mxu0 0
      %877 = vmatprep.subr.bf16.mxu0 0
      %878 = vmatpush2.bf16.msra.mxu0 0
      %879 = vmatprep.subr.bf16.mxu0 0
      %880 = vmatpush2.bf16.msra.mxu0 0
      %881 = vmatprep.subr.bf16.mxu0 0
      %882 = vmatpush2.bf16.msra.mxu0 0
      %883 = vmatprep.subr.bf16.mxu0 0
      %884 = vmatpush2.bf16.msra.mxu0 0
      %885 = vmatprep.subr.bf16.mxu0 0
      %886 = vmatpush2.bf16.msra.mxu0 0
      %887 = vmatprep.subr.bf16.mxu0 0
      %888 = vmatpush2.bf16.msra.mxu0 0
      %889 = vmatprep.subr.bf16.mxu0 0
      %890 = vmatpush2.bf16.msra.mxu0 0
      %891 = vmatprep.mubr.bf16.mxu0 0
      %892 = vmatmul.mubr.bf16.gmra.mxu0 %v845
      %v893 = vpop.f32.mrf.mxu0
      %v894 = vadd.f32 0.0, %v893
      %v895 = vpop.f32.mrf.mxu0
      %v896 = vpop.f32.mrf.mxu0
      %v897 = vadd.f32 0.0, %v896
      %v898 = vpop.f32.mrf.mxu0
      %899 = vmatprep.mubr.bf16.mxu0 0
      %900 = vmatmul.mubr.bf16.gmra.mxu0 %v848
      %v901 = vpop.f32.mrf.mxu0
      %v902 = vadd.f32 0.0, %v901
      %v903 = vpop.f32.mrf.mxu0
      %v904 = vpop.f32.mrf.mxu0
      %v905 = vadd.f32 0.0, %v904
      %v906 = vpop.f32.mrf.mxu0
      %907 = vmatprep.mubr.bf16.mxu0 0
      %908 = vmatmul.mubr.bf16.gmra.mxu0 %v851
      %v909 = vpop.f32.mrf.mxu0
      %v910 = vadd.f32 0.0, %v909
      %v911 = vpop.f32.mrf.mxu0
      %v912 = vpop.f32.mrf.mxu0
      %v913 = vadd.f32 0.0, %v912
      %v914 = vpop.f32.mrf.mxu0
      %915 = vmatprep.mubr.bf16.mxu0 0
      %916 = vmatmul.mubr.bf16.gmra.mxu0 %v854
      %v917 = vpop.f32.mrf.mxu0
      %v918 = vadd.f32 0.0, %v917
      %v919 = vpop.f32.mrf.mxu0
      %v920 = vpop.f32.mrf.mxu0
      %v921 = vadd.f32 0.0, %v920
      %v922 = vpop.f32.mrf.mxu0
      %923 = vmatprep.mubr.bf16.mxu0 0
      %924 = vmatmul.mubr.bf16.gmra.mxu0 %v857
      %v925 = vpop.f32.mrf.mxu0
      %v926 = vadd.f32 0.0, %v925
      %v927 = vpop.f32.mrf.mxu0
      %v928 = vpop.f32.mrf.mxu0
      %v929 = vadd.f32 0.0, %v928
      %v930 = vpop.f32.mrf.mxu0
      %931 = vdwg.mxu0
      %v932 = vpack.c.bf16 %v897, %v894
      %v933 = vpack.c.bf16 %v905, %v902
      %v934 = vpack.c.bf16 %v913, %v910
      %v935 = vpack.c.bf16 %v921, %v918
      %v936 = vpack.c.bf16 %v929, %v926
      %v937 = vld [vmem:[%s2] sm:$0xf]
      %v938 = vld [vmem:[%s2 + $0x4] sm:$0xf]
      %v939 = vld [vmem:[%s2 + $0x8] sm:$0xf]
      %v940 = vld [vmem:[%s2 + $0xc] sm:$0xf]
      %v941 = vld [vmem:[%s2 + $0x10] sm:$0xf]
      %v942 = vld [vmem:[%s2 + $0x14] sm:$0xf]
      %v943 = vld [vmem:[%s2 + $0x18] sm:$0xf]
      %v944 = vld [vmem:[%s2 + $0x1c] sm:$0xf]
      %s945 = scalar_lea.vmem %s2, 32
      %v946 = vld [vmem:[%s945] sm:$0xf]
      %v947 = vld [vmem:[%s945 + $0x4] sm:$0xf]
      %v948 = vld [vmem:[%s945 + $0x8] sm:$0xf]
      %v949 = vld [vmem:[%s945 + $0xc] sm:$0xf]
      %v950 = vld [vmem:[%s945 + $0x10] sm:$0xf]
      %v951 = vld [vmem:[%s945 + $0x14] sm:$0xf]
      %v952 = vld [vmem:[%s945 + $0x18] sm:$0xf]
      %v953 = vld [vmem:[%s945 + $0x1c] sm:$0xf]
      %vm954 = vsmask.f32 7424
      %v956 = vshrl.u32 %v932, 16
      %v958 = vshll.u32 %v932, 16
      %v960 = vrot.slane %v958, 1
      %v961 = vor.u32 %v956, %v960
      %v963 = vshll.u32 %v933, 16
      %v965 = vrot.slane %v963, 1
      %v966 = vsel %vm954, %v961, %v965
      %v967 = vshrl.u32 %v933, 16
      %v969 = vor.u32 %v967, %v965
      %v971 = vshll.u32 %v934, 16
      %v973 = vrot.slane %v971, 1
      %v974 = vsel %vm954, %v969, %v973
      %v975 = vshrl.u32 %v934, 16
      %v977 = vor.u32 %v975, %v973
      %v979 = vshll.u32 %v935, 16
      %v981 = vrot.slane %v979, 1
      %v982 = vsel %vm954, %v977, %v981
      %v983 = vshrl.u32 %v935, 16
      %v985 = vor.u32 %v983, %v981
      %v987 = vshll.u32 %v936, 16
      %v989 = vrot.slane %v987, 1
      %v990 = vsel %vm954, %v985, %v989
      %v991 = vshrl.u32 %v936, 16
      %v993 = vor.u32 %v991, %v989
      %v1002 = vunpack.c.l.b16 %v946
      %v1003 = vunpack.c.l.b16 %v947
      %v1004 = vunpack.c.l.b16 %v948
      %v1005 = vunpack.c.l.b16 %v949
      %v1006 = vunpack.c.l.b16 %v950
      %v1007 = vunpack.c.l.b16 %v951
      %v1008 = vunpack.c.l.b16 %v952
      %v1009 = vunpack.c.l.b16 %v953
      %v1010 = vpack.c.b16 %v1003, %v1002
      %v1011 = vpack.c.b16 %v1005, %v1004
      %v1012 = vpack.c.b16 %v1007, %v1006
      %v1013 = vpack.c.b16 %v1009, %v1008
      %v1019 = vsel %vm843, %v966, 0
      %v1022 = vsel %vm843, %v974, 0
      %v1025 = vsel %vm843, %v982, 0
      %v1028 = vsel %vm843, %v990, 0
      %v1031 = vsel %vm843, %v993, 0
      %1033 = vmatprep.subr.bf16.mxu0 0
      %1034 = vmatpush1.bf16.msra.mxu0 0
      %1035 = vmatprep.subr.bf16.mxu0 0
      %1036 = vmatpush1.bf16.msra.mxu0 0
      %1037 = vmatprep.subr.bf16.mxu0 0
      %1038 = vmatpush1.bf16.msra.mxu0 0
      %1039 = vmatprep.subr.bf16.mxu0 0
      %1040 = vmatpush1.bf16.msra.mxu0 0
      %1041 = vmatprep.subr.bf16.mxu0 0
      %1042 = vmatpush1.bf16.msra.mxu0 %v1013
      %1043 = vmatprep.subr.bf16.mxu0 0
      %1044 = vmatpush1.bf16.msra.mxu0 %v1012
      %1045 = vmatprep.subr.bf16.mxu0 0
      %1046 = vmatpush1.bf16.msra.mxu0 %v1011
      %1047 = vmatprep.subr.bf16.mxu0 0
      %1048 = vmatpush1.bf16.msra.mxu0 %v1010
      %1049 = vmatprep.subr.bf16.mxu0 0
      %1050 = vmatpush2.bf16.msra.mxu0 0
      %1051 = vmatprep.subr.bf16.mxu0 0
      %1052 = vmatpush2.bf16.msra.mxu0 0
      %1053 = vmatprep.subr.bf16.mxu0 0
      %1054 = vmatpush2.bf16.msra.mxu0 0
      %1055 = vmatprep.subr.bf16.mxu0 0
      %1056 = vmatpush2.bf16.msra.mxu0 0
      %1057 = vmatprep.subr.bf16.mxu0 0
      %1058 = vmatpush2.bf16.msra.mxu0 0
      %1059 = vmatprep.subr.bf16.mxu0 0
      %1060 = vmatpush2.bf16.msra.mxu0 0
      %1061 = vmatprep.subr.bf16.mxu0 0
      %1062 = vmatpush2.bf16.msra.mxu0 0
      %1063 = vmatprep.subr.bf16.mxu0 0
      %1064 = vmatpush2.bf16.msra.mxu0 0
      %1065 = vmatprep.mubr.bf16.mxu0 0
      %1066 = vmatmul.mubr.bf16.gmra.mxu0 %v1019
      %v1067 = vpop.f32.mrf.mxu0
      %v1068 = vadd.f32 0.0, %v1067
      %v1069 = vpop.f32.mrf.mxu0
      %v1070 = vpop.f32.mrf.mxu0
      %v1071 = vadd.f32 0.0, %v1070
      %v1072 = vpop.f32.mrf.mxu0
      %1073 = vmatprep.mubr.bf16.mxu0 0
      %1074 = vmatmul.mubr.bf16.gmra.mxu0 %v1022
      %v1075 = vpop.f32.mrf.mxu0
      %v1076 = vadd.f32 0.0, %v1075
      %v1077 = vpop.f32.mrf.mxu0
      %v1078 = vpop.f32.mrf.mxu0
      %v1079 = vadd.f32 0.0, %v1078
      %v1080 = vpop.f32.mrf.mxu0
      %1081 = vmatprep.mubr.bf16.mxu0 0
      %1082 = vmatmul.mubr.bf16.gmra.mxu0 %v1025
      %v1083 = vpop.f32.mrf.mxu0
      %v1084 = vadd.f32 0.0, %v1083
      %v1085 = vpop.f32.mrf.mxu0
      %v1086 = vpop.f32.mrf.mxu0
      %v1087 = vadd.f32 0.0, %v1086
      %v1088 = vpop.f32.mrf.mxu0
      %1089 = vmatprep.mubr.bf16.mxu0 0
      %1090 = vmatmul.mubr.bf16.gmra.mxu0 %v1028
      %v1091 = vpop.f32.mrf.mxu0
      %v1092 = vadd.f32 0.0, %v1091
      %v1093 = vpop.f32.mrf.mxu0
      %v1094 = vpop.f32.mrf.mxu0
      %v1095 = vadd.f32 0.0, %v1094
      %v1096 = vpop.f32.mrf.mxu0
      %1097 = vmatprep.mubr.bf16.mxu0 0
      %1098 = vmatmul.mubr.bf16.gmra.mxu0 %v1031
      %v1099 = vpop.f32.mrf.mxu0
      %v1100 = vadd.f32 0.0, %v1099
      %v1101 = vpop.f32.mrf.mxu0
      %v1102 = vpop.f32.mrf.mxu0
      %v1103 = vadd.f32 0.0, %v1102
      %v1104 = vpop.f32.mrf.mxu0
      %1105 = vdwg.mxu0
      %v1114 = vunpack.c.l.b16 %v937
      %v1115 = vunpack.c.l.b16 %v938
      %v1116 = vunpack.c.l.b16 %v939
      %v1117 = vunpack.c.l.b16 %v940
      %v1118 = vunpack.c.l.b16 %v941
      %v1119 = vunpack.c.l.b16 %v942
      %v1120 = vunpack.c.l.b16 %v943
      %v1121 = vunpack.c.l.b16 %v944
      %v1122 = vpack.c.b16 %v1115, %v1114
      %v1123 = vpack.c.b16 %v1117, %v1116
      %v1124 = vpack.c.b16 %v1119, %v1118
      %v1125 = vpack.c.b16 %v1121, %v1120
      %v1130 = vsel %vm843, %v932, 0
      %v1132 = vsel %vm843, %v933, 0
      %v1134 = vsel %vm843, %v934, 0
      %v1136 = vsel %vm843, %v935, 0
      %v1138 = vsel %vm843, %v936, 0
      %1140 = vmatprep.subr.bf16.mxu0 0
      %1141 = vmatpush1.bf16.msra.mxu0 0
      %1142 = vmatprep.subr.bf16.mxu0 0
      %1143 = vmatpush1.bf16.msra.mxu0 0
      %1144 = vmatprep.subr.bf16.mxu0 0
      %1145 = vmatpush1.bf16.msra.mxu0 0
      %1146 = vmatprep.subr.bf16.mxu0 0
      %1147 = vmatpush1.bf16.msra.mxu0 0
      %1148 = vmatprep.subr.bf16.mxu0 0
      %1149 = vmatpush1.bf16.msra.mxu0 %v1125
      %1150 = vmatprep.subr.bf16.mxu0 0
      %1151 = vmatpush1.bf16.msra.mxu0 %v1124
      %1152 = vmatprep.subr.bf16.mxu0 0
      %1153 = vmatpush1.bf16.msra.mxu0 %v1123
      %1154 = vmatprep.subr.bf16.mxu0 0
      %1155 = vmatpush1.bf16.msra.mxu0 %v1122
      %1156 = vmatprep.subr.bf16.mxu0 0
      %1157 = vmatpush2.bf16.msra.mxu0 0
      %1158 = vmatprep.subr.bf16.mxu0 0
      %1159 = vmatpush2.bf16.msra.mxu0 0
      %1160 = vmatprep.subr.bf16.mxu0 0
      %1161 = vmatpush2.bf16.msra.mxu0 0
      %1162 = vmatprep.subr.bf16.mxu0 0
      %1163 = vmatpush2.bf16.msra.mxu0 0
      %1164 = vmatprep.subr.bf16.mxu0 0
      %1165 = vmatpush2.bf16.msra.mxu0 0
      %1166 = vmatprep.subr.bf16.mxu0 0
      %1167 = vmatpush2.bf16.msra.mxu0 0
      %1168 = vmatprep.subr.bf16.mxu0 0
      %1169 = vmatpush2.bf16.msra.mxu0 0
      %1170 = vmatprep.subr.bf16.mxu0 0
      %1171 = vmatpush2.bf16.msra.mxu0 0
      %1172 = vmatprep.mubr.bf16.mxu0 0
      %1173 = vmatmul.mubr.bf16.gmra.mxu0 %v1130
      %v1174 = vpop.f32.mrf.mxu0
      %v1175 = vadd.f32 %v1068, %v1174
      %v1176 = vpop.f32.mrf.mxu0
      %v1177 = vpop.f32.mrf.mxu0
      %v1178 = vadd.f32 %v1071, %v1177
      %v1179 = vpop.f32.mrf.mxu0
      %1180 = vmatprep.mubr.bf16.mxu0 0
      %1181 = vmatmul.mubr.bf16.gmra.mxu0 %v1132
      %v1182 = vpop.f32.mrf.mxu0
      %v1183 = vadd.f32 %v1076, %v1182
      %v1184 = vpop.f32.mrf.mxu0
      %v1185 = vpop.f32.mrf.mxu0
      %v1186 = vadd.f32 %v1079, %v1185
      %v1187 = vpop.f32.mrf.mxu0
      %1188 = vmatprep.mubr.bf16.mxu0 0
      %1189 = vmatmul.mubr.bf16.gmra.mxu0 %v1134
      %v1190 = vpop.f32.mrf.mxu0
      %v1191 = vadd.f32 %v1084, %v1190
      %v1192 = vpop.f32.mrf.mxu0
      %v1193 = vpop.f32.mrf.mxu0
      %v1194 = vadd.f32 %v1087, %v1193
      %v1195 = vpop.f32.mrf.mxu0
      %1196 = vmatprep.mubr.bf16.mxu0 0
      %1197 = vmatmul.mubr.bf16.gmra.mxu0 %v1136
      %v1198 = vpop.f32.mrf.mxu0
      %v1199 = vadd.f32 %v1092, %v1198
      %v1200 = vpop.f32.mrf.mxu0
      %v1201 = vpop.f32.mrf.mxu0
      %v1202 = vadd.f32 %v1095, %v1201
      %v1203 = vpop.f32.mrf.mxu0
      %1204 = vmatprep.mubr.bf16.mxu0 0
      %1205 = vmatmul.mubr.bf16.gmra.mxu0 %v1138
      %v1206 = vpop.f32.mrf.mxu0
      %v1207 = vadd.f32 %v1100, %v1206
      %v1208 = vpop.f32.mrf.mxu0
      %v1209 = vpop.f32.mrf.mxu0
      %v1210 = vadd.f32 %v1103, %v1209
      %v1211 = vpop.f32.mrf.mxu0
      %1212 = vdwg.mxu0
      %s1213 = scalar_lea.vmem %s2, 64
      %v1214 = vld [vmem:[%s1213] sm:$0xf]
      %v1215 = vld [vmem:[%s1213 + $0x4] sm:$0xf]
      %v1216 = vld [vmem:[%s1213 + $0x8] sm:$0xf]
      %v1217 = vld [vmem:[%s1213 + $0xc] sm:$0xf]
      %v1218 = vld [vmem:[%s1213 + $0x10] sm:$0xf]
      %v1219 = vld [vmem:[%s1213 + $0x14] sm:$0xf]
      %v1220 = vld [vmem:[%s1213 + $0x18] sm:$0xf]
      %v1221 = vld [vmem:[%s1213 + $0x1c] sm:$0xf]
      %vm1227 = vcmask 1046528
      %v1228 = vrot.slane %v932, 1
      %v1229 = vrot.slane %v933, 1
      %v1230 = vsel %vm1227, %v1228, %v1229
      %v1231 = vrot.slane %v934, 1
      %v1232 = vsel %vm1227, %v1229, %v1231
      %v1233 = vrot.slane %v935, 1
      %v1234 = vsel %vm1227, %v1231, %v1233
      %v1235 = vrot.slane %v936, 1
      %v1236 = vsel %vm1227, %v1233, %v1235
      %v1245 = vunpack.c.l.b16 %v1214
      %v1246 = vunpack.c.l.b16 %v1215
      %v1247 = vunpack.c.l.b16 %v1216
      %v1248 = vunpack.c.l.b16 %v1217
      %v1249 = vunpack.c.l.b16 %v1218
      %v1250 = vunpack.c.l.b16 %v1219
      %v1251 = vunpack.c.l.b16 %v1220
      %v1252 = vunpack.c.l.b16 %v1221
      %v1253 = vpack.c.b16 %v1246, %v1245
      %v1254 = vpack.c.b16 %v1248, %v1247
      %v1255 = vpack.c.b16 %v1250, %v1249
      %v1256 = vpack.c.b16 %v1252, %v1251
      %v1262 = vsel %vm843, %v1230, 0
      %v1265 = vsel %vm843, %v1232, 0
      %v1268 = vsel %vm843, %v1234, 0
      %v1271 = vsel %vm843, %v1236, 0
      %v1274 = vsel %vm843, %v1235, 0
      %1276 = vmatprep.subr.bf16.mxu0 0
      %1277 = vmatpush1.bf16.msra.mxu0 0
      %1278 = vmatprep.subr.bf16.mxu0 0
      %1279 = vmatpush1.bf16.msra.mxu0 0
      %1280 = vmatprep.subr.bf16.mxu0 0
      %1281 = vmatpush1.bf16.msra.mxu0 0
      %1282 = vmatprep.subr.bf16.mxu0 0
      %1283 = vmatpush1.bf16.msra.mxu0 0
      %1284 = vmatprep.subr.bf16.mxu0 0
      %1285 = vmatpush1.bf16.msra.mxu0 %v1256
      %1286 = vmatprep.subr.bf16.mxu0 0
      %1287 = vmatpush1.bf16.msra.mxu0 %v1255
      %1288 = vmatprep.subr.bf16.mxu0 0
      %1289 = vmatpush1.bf16.msra.mxu0 %v1254
      %1290 = vmatprep.subr.bf16.mxu0 0
      %1291 = vmatpush1.bf16.msra.mxu0 %v1253
      %1292 = vmatprep.subr.bf16.mxu0 0
      %1293 = vmatpush2.bf16.msra.mxu0 0
      %1294 = vmatprep.subr.bf16.mxu0 0
      %1295 = vmatpush2.bf16.msra.mxu0 0
      %1296 = vmatprep.subr.bf16.mxu0 0
      %1297 = vmatpush2.bf16.msra.mxu0 0
      %1298 = vmatprep.subr.bf16.mxu0 0
      %1299 = vmatpush2.bf16.msra.mxu0 0
      %1300 = vmatprep.subr.bf16.mxu0 0
      %1301 = vmatpush2.bf16.msra.mxu0 0
      %1302 = vmatprep.subr.bf16.mxu0 0
      %1303 = vmatpush2.bf16.msra.mxu0 0
      %1304 = vmatprep.subr.bf16.mxu0 0
      %1305 = vmatpush2.bf16.msra.mxu0 0
      %1306 = vmatprep.subr.bf16.mxu0 0
      %1307 = vmatpush2.bf16.msra.mxu0 0
      %1308 = vmatprep.mubr.bf16.mxu0 0
      %1309 = vmatmul.mubr.bf16.gmra.mxu0 %v1262
      %v1310 = vpop.f32.mrf.mxu0
      %v1311 = vadd.f32 0.0, %v1310
      %v1312 = vpop.f32.mrf.mxu0
      %v1313 = vpop.f32.mrf.mxu0
      %v1314 = vadd.f32 0.0, %v1313
      %v1315 = vpop.f32.mrf.mxu0
      %1316 = vmatprep.mubr.bf16.mxu0 0
      %1317 = vmatmul.mubr.bf16.gmra.mxu0 %v1265
      %v1318 = vpop.f32.mrf.mxu0
      %v1319 = vadd.f32 0.0, %v1318
      %v1320 = vpop.f32.mrf.mxu0
      %v1321 = vpop.f32.mrf.mxu0
      %v1322 = vadd.f32 0.0, %v1321
      %v1323 = vpop.f32.mrf.mxu0
      %1324 = vmatprep.mubr.bf16.mxu0 0
      %1325 = vmatmul.mubr.bf16.gmra.mxu0 %v1268
      %v1326 = vpop.f32.mrf.mxu0
      %v1327 = vadd.f32 0.0, %v1326
      %v1328 = vpop.f32.mrf.mxu0
      %v1329 = vpop.f32.mrf.mxu0
      %v1330 = vadd.f32 0.0, %v1329
      %v1331 = vpop.f32.mrf.mxu0
      %1332 = vmatprep.mubr.bf16.mxu0 0
      %1333 = vmatmul.mubr.bf16.gmra.mxu0 %v1271
      %v1334 = vpop.f32.mrf.mxu0
      %v1335 = vadd.f32 0.0, %v1334
      %v1336 = vpop.f32.mrf.mxu0
      %v1337 = vpop.f32.mrf.mxu0
      %v1338 = vadd.f32 0.0, %v1337
      %v1339 = vpop.f32.mrf.mxu0
      %1340 = vmatprep.mubr.bf16.mxu0 0
      %1341 = vmatmul.mubr.bf16.gmra.mxu0 %v1274
      %v1342 = vpop.f32.mrf.mxu0
      %v1343 = vadd.f32 0.0, %v1342
      %v1344 = vpop.f32.mrf.mxu0
      %v1345 = vpop.f32.mrf.mxu0
      %v1346 = vadd.f32 0.0, %v1345
      %v1347 = vpop.f32.mrf.mxu0
      %1348 = vdwg.mxu0
      %v1349 = vadd.f32 %v1175, %v1311
      %v1350 = vadd.f32 %v1178, %v1314
      %v1351 = vadd.f32 %v1183, %v1319
      %v1352 = vadd.f32 %v1186, %v1322
      %v1353 = vadd.f32 %v1191, %v1327
      %v1354 = vadd.f32 %v1194, %v1330
      %v1355 = vadd.f32 %v1199, %v1335
      %v1356 = vadd.f32 %v1202, %v1338
      %v1357 = vadd.f32 %v1207, %v1343
      %v1358 = vadd.f32 %v1210, %v1346
      %s1359 = scalar_lea.vmem %s2, 96
      %v1360 = vld [vmem:[%s1359] sm:$0xf]
      %v1361 = vld [vmem:[%s1359 + $0x4] sm:$0xf]
      %v1362 = vld [vmem:[%s1359 + $0x8] sm:$0xf]
      %v1363 = vld [vmem:[%s1359 + $0xc] sm:$0xf]
      %v1364 = vld [vmem:[%s1359 + $0x10] sm:$0xf]
      %v1365 = vld [vmem:[%s1359 + $0x14] sm:$0xf]
      %v1366 = vld [vmem:[%s1359 + $0x18] sm:$0xf]
      %v1367 = vld [vmem:[%s1359 + $0x1c] sm:$0xf]
      %vm1368 = vsmask.f32 6400
      %v1369 = vrot.slane %v956, 1
      %v1370 = vrot.slane %v958, 2
      %v1371 = vor.u32 %v1369, %v1370
      %v1372 = vrot.slane %v967, 1
      %v1373 = vrot.slane %v963, 2
      %v1374 = vor.u32 %v1372, %v1373
      %v1375 = vsel %vm1368, %v1371, %v1374
      %v1376 = vrot.slane %v975, 1
      %v1377 = vrot.slane %v971, 2
      %v1378 = vor.u32 %v1376, %v1377
      %v1379 = vsel %vm1368, %v1374, %v1378
      %v1380 = vrot.slane %v983, 1
      %v1381 = vrot.slane %v979, 2
      %v1382 = vor.u32 %v1380, %v1381
      %v1383 = vsel %vm1368, %v1378, %v1382
      %v1384 = vrot.slane %v991, 1
      %v1385 = vrot.slane %v987, 2
      %v1386 = vor.u32 %v1384, %v1385
      %v1387 = vsel %vm1368, %v1382, %v1386
      %v1396 = vunpack.c.l.b16 %v1360
      %v1397 = vunpack.c.l.b16 %v1361
      %v1398 = vunpack.c.l.b16 %v1362
      %v1399 = vunpack.c.l.b16 %v1363
      %v1400 = vunpack.c.l.b16 %v1364
      %v1401 = vunpack.c.l.b16 %v1365
      %v1402 = vunpack.c.l.b16 %v1366
      %v1403 = vunpack.c.l.b16 %v1367
      %v1404 = vpack.c.b16 %v1397, %v1396
      %v1405 = vpack.c.b16 %v1399, %v1398
      %v1406 = vpack.c.b16 %v1401, %v1400
      %v1407 = vpack.c.b16 %v1403, %v1402
      %v1413 = vsel %vm843, %v1375, 0
      %v1416 = vsel %vm843, %v1379, 0
      %v1419 = vsel %vm843, %v1383, 0
      %v1422 = vsel %vm843, %v1387, 0
      %v1425 = vsel %vm843, %v1386, 0
      %1427 = vmatprep.subr.bf16.mxu0 0
      %1428 = vmatpush1.bf16.msra.mxu0 0
      %1429 = vmatprep.subr.bf16.mxu0 0
      %1430 = vmatpush1.bf16.msra.mxu0 0
      %1431 = vmatprep.subr.bf16.mxu0 0
      %1432 = vmatpush1.bf16.msra.mxu0 0
      %1433 = vmatprep.subr.bf16.mxu0 0
      %1434 = vmatpush1.bf16.msra.mxu0 0
      %1435 = vmatprep.subr.bf16.mxu0 0
      %1436 = vmatpush1.bf16.msra.mxu0 %v1407
      %1437 = vmatprep.subr.bf16.mxu0 0
      %1438 = vmatpush1.bf16.msra.mxu0 %v1406
      %1439 = vmatprep.subr.bf16.mxu0 0
      %1440 = vmatpush1.bf16.msra.mxu0 %v1405
      %1441 = vmatprep.subr.bf16.mxu0 0
      %1442 = vmatpush1.bf16.msra.mxu0 %v1404
      %1443 = vmatprep.subr.bf16.mxu0 0
      %1444 = vmatpush2.bf16.msra.mxu0 0
      %1445 = vmatprep.subr.bf16.mxu0 0
      %1446 = vmatpush2.bf16.msra.mxu0 0
      %1447 = vmatprep.subr.bf16.mxu0 0
      %1448 = vmatpush2.bf16.msra.mxu0 0
      %1449 = vmatprep.subr.bf16.mxu0 0
      %1450 = vmatpush2.bf16.msra.mxu0 0
      %1451 = vmatprep.subr.bf16.mxu0 0
      %1452 = vmatpush2.bf16.msra.mxu0 0
      %1453 = vmatprep.subr.bf16.mxu0 0
      %1454 = vmatpush2.bf16.msra.mxu0 0
      %1455 = vmatprep.subr.bf16.mxu0 0
      %1456 = vmatpush2.bf16.msra.mxu0 0
      %1457 = vmatprep.subr.bf16.mxu0 0
      %1458 = vmatpush2.bf16.msra.mxu0 0
      %1459 = vmatprep.mubr.bf16.mxu0 0
      %1460 = vmatmul.mubr.bf16.gmra.mxu0 %v1413
      %v1461 = vpop.f32.mrf.mxu0
      %v1462 = vadd.f32 0.0, %v1461
      %v1463 = vpop.f32.mrf.mxu0
      %v1464 = vpop.f32.mrf.mxu0
      %v1465 = vadd.f32 0.0, %v1464
      %v1466 = vpop.f32.mrf.mxu0
      %1467 = vmatprep.mubr.bf16.mxu0 0
      %1468 = vmatmul.mubr.bf16.gmra.mxu0 %v1416
      %v1469 = vpop.f32.mrf.mxu0
      %v1470 = vadd.f32 0.0, %v1469
      %v1471 = vpop.f32.mrf.mxu0
      %v1472 = vpop.f32.mrf.mxu0
      %v1473 = vadd.f32 0.0, %v1472
      %v1474 = vpop.f32.mrf.mxu0
      %1475 = vmatprep.mubr.bf16.mxu0 0
      %1476 = vmatmul.mubr.bf16.gmra.mxu0 %v1419
      %v1477 = vpop.f32.mrf.mxu0
      %v1478 = vadd.f32 0.0, %v1477
      %v1479 = vpop.f32.mrf.mxu0
      %v1480 = vpop.f32.mrf.mxu0
      %v1481 = vadd.f32 0.0, %v1480
      %v1482 = vpop.f32.mrf.mxu0
      %1483 = vmatprep.mubr.bf16.mxu0 0
      %1484 = vmatmul.mubr.bf16.gmra.mxu0 %v1422
      %v1485 = vpop.f32.mrf.mxu0
      %v1486 = vadd.f32 0.0, %v1485
      %v1487 = vpop.f32.mrf.mxu0
      %v1488 = vpop.f32.mrf.mxu0
      %v1489 = vadd.f32 0.0, %v1488
      %v1490 = vpop.f32.mrf.mxu0
      %1491 = vmatprep.mubr.bf16.mxu0 0
      %1492 = vmatmul.mubr.bf16.gmra.mxu0 %v1425
      %v1493 = vpop.f32.mrf.mxu0
      %v1494 = vadd.f32 0.0, %v1493
      %v1495 = vpop.f32.mrf.mxu0
      %v1496 = vpop.f32.mrf.mxu0
      %v1497 = vadd.f32 0.0, %v1496
      %v1498 = vpop.f32.mrf.mxu0
      %1499 = vdwg.mxu0
      %v1500 = vadd.f32 %v1349, %v1462
      %v1501 = vadd.f32 %v1350, %v1465
      %v1502 = vadd.f32 %v1351, %v1470
      %v1503 = vadd.f32 %v1352, %v1473
      %v1504 = vadd.f32 %v1353, %v1478
      %v1505 = vadd.f32 %v1354, %v1481
      %v1506 = vadd.f32 %v1355, %v1486
      %v1507 = vadd.f32 %v1356, %v1489
      %v1508 = vadd.f32 %v1357, %v1494
      %v1509 = vadd.f32 %v1358, %v1497
      %s1510 = scalar_lea.vmem %s2, 128
      %v1511 = vld [vmem:[%s1510] sm:$0xf]
      %v1512 = vld [vmem:[%s1510 + $0x4] sm:$0xf]
      %v1513 = vld [vmem:[%s1510 + $0x8] sm:$0xf]
      %v1514 = vld [vmem:[%s1510 + $0xc] sm:$0xf]
      %v1515 = vld [vmem:[%s1510 + $0x10] sm:$0xf]
      %v1516 = vld [vmem:[%s1510 + $0x14] sm:$0xf]
      %v1517 = vld [vmem:[%s1510 + $0x18] sm:$0xf]
      %v1518 = vld [vmem:[%s1510 + $0x1c] sm:$0xf]
      %vm1519 = vcmask 1045504
      %v1520 = vrot.slane %v932, 2
      %v1521 = vrot.slane %v933, 2
      %v1522 = vsel %vm1519, %v1520, %v1521
      %v1523 = vrot.slane %v934, 2
      %v1524 = vsel %vm1519, %v1521, %v1523
      %v1525 = vrot.slane %v935, 2
      %v1526 = vsel %vm1519, %v1523, %v1525
      %v1527 = vrot.slane %v936, 2
      %v1528 = vsel %vm1519, %v1525, %v1527
      %v1537 = vunpack.c.l.b16 %v1511
      %v1538 = vunpack.c.l.b16 %v1512
      %v1539 = vunpack.c.l.b16 %v1513
      %v1540 = vunpack.c.l.b16 %v1514
      %v1541 = vunpack.c.l.b16 %v1515
      %v1542 = vunpack.c.l.b16 %v1516
      %v1543 = vunpack.c.l.b16 %v1517
      %v1544 = vunpack.c.l.b16 %v1518
      %v1545 = vpack.c.b16 %v1538, %v1537
      %v1546 = vpack.c.b16 %v1540, %v1539
      %v1547 = vpack.c.b16 %v1542, %v1541
      %v1548 = vpack.c.b16 %v1544, %v1543
      %v1554 = vsel %vm843, %v1522, 0
      %v1557 = vsel %vm843, %v1524, 0
      %v1560 = vsel %vm843, %v1526, 0
      %v1563 = vsel %vm843, %v1528, 0
      %v1566 = vsel %vm843, %v1527, 0
      %1568 = vmatprep.subr.bf16.mxu0 0
      %1569 = vmatpush1.bf16.msra.mxu0 0
      %1570 = vmatprep.subr.bf16.mxu0 0
      %1571 = vmatpush1.bf16.msra.mxu0 0
      %1572 = vmatprep.subr.bf16.mxu0 0
      %1573 = vmatpush1.bf16.msra.mxu0 0
      %1574 = vmatprep.subr.bf16.mxu0 0
      %1575 = vmatpush1.bf16.msra.mxu0 0
      %1576 = vmatprep.subr.bf16.mxu0 0
      %1577 = vmatpush1.bf16.msra.mxu0 %v1548
      %1578 = vmatprep.subr.bf16.mxu0 0
      %1579 = vmatpush1.bf16.msra.mxu0 %v1547
      %1580 = vmatprep.subr.bf16.mxu0 0
      %1581 = vmatpush1.bf16.msra.mxu0 %v1546
      %1582 = vmatprep.subr.bf16.mxu0 0
      %1583 = vmatpush1.bf16.msra.mxu0 %v1545
      %1584 = vmatprep.subr.bf16.mxu0 0
      %1585 = vmatpush2.bf16.msra.mxu0 0
      %1586 = vmatprep.subr.bf16.mxu0 0
      %1587 = vmatpush2.bf16.msra.mxu0 0
      %1588 = vmatprep.subr.bf16.mxu0 0
      %1589 = vmatpush2.bf16.msra.mxu0 0
      %1590 = vmatprep.subr.bf16.mxu0 0
      %1591 = vmatpush2.bf16.msra.mxu0 0
      %1592 = vmatprep.subr.bf16.mxu0 0
      %1593 = vmatpush2.bf16.msra.mxu0 0
      %1594 = vmatprep.subr.bf16.mxu0 0
      %1595 = vmatpush2.bf16.msra.mxu0 0
      %1596 = vmatprep.subr.bf16.mxu0 0
      %1597 = vmatpush2.bf16.msra.mxu0 0
      %1598 = vmatprep.subr.bf16.mxu0 0
      %1599 = vmatpush2.bf16.msra.mxu0 0
      %1600 = vmatprep.mubr.bf16.mxu0 0
      %1601 = vmatmul.mubr.bf16.gmra.mxu0 %v1554
      %v1602 = vpop.f32.mrf.mxu0
      %v1603 = vadd.f32 0.0, %v1602
      %v1604 = vpop.f32.mrf.mxu0
      %v1605 = vpop.f32.mrf.mxu0
      %v1606 = vadd.f32 0.0, %v1605
      %v1607 = vpop.f32.mrf.mxu0
      %1608 = vmatprep.mubr.bf16.mxu0 0
      %1609 = vmatmul.mubr.bf16.gmra.mxu0 %v1557
      %v1610 = vpop.f32.mrf.mxu0
      %v1611 = vadd.f32 0.0, %v1610
      %v1612 = vpop.f32.mrf.mxu0
      %v1613 = vpop.f32.mrf.mxu0
      %v1614 = vadd.f32 0.0, %v1613
      %v1615 = vpop.f32.mrf.mxu0
      %1616 = vmatprep.mubr.bf16.mxu0 0
      %1617 = vmatmul.mubr.bf16.gmra.mxu0 %v1560
      %v1618 = vpop.f32.mrf.mxu0
      %v1619 = vadd.f32 0.0, %v1618
      %v1620 = vpop.f32.mrf.mxu0
      %v1621 = vpop.f32.mrf.mxu0
      %v1622 = vadd.f32 0.0, %v1621
      %v1623 = vpop.f32.mrf.mxu0
      %1624 = vmatprep.mubr.bf16.mxu0 0
      %1625 = vmatmul.mubr.bf16.gmra.mxu0 %v1563
      %v1626 = vpop.f32.mrf.mxu0
      %v1627 = vadd.f32 0.0, %v1626
      %v1628 = vpop.f32.mrf.mxu0
      %v1629 = vpop.f32.mrf.mxu0
      %v1630 = vadd.f32 0.0, %v1629
      %v1631 = vpop.f32.mrf.mxu0
      %1632 = vmatprep.mubr.bf16.mxu0 0
      %1633 = vmatmul.mubr.bf16.gmra.mxu0 %v1566
      %v1634 = vpop.f32.mrf.mxu0
      %v1635 = vadd.f32 0.0, %v1634
      %v1636 = vpop.f32.mrf.mxu0
      %v1637 = vpop.f32.mrf.mxu0
      %v1638 = vadd.f32 0.0, %v1637
      %v1639 = vpop.f32.mrf.mxu0
      %1640 = vdwg.mxu0
      %v1641 = vadd.f32 %v1500, %v1603
      %v1642 = vadd.f32 %v1501, %v1606
      %v1643 = vadd.f32 %v1502, %v1611
      %v1644 = vadd.f32 %v1503, %v1614
      %v1645 = vadd.f32 %v1504, %v1619
      %v1646 = vadd.f32 %v1505, %v1622
      %v1647 = vadd.f32 %v1506, %v1627
      %v1648 = vadd.f32 %v1507, %v1630
      %v1649 = vadd.f32 %v1508, %v1635
      %v1650 = vadd.f32 %v1509, %v1638
      %v1651 = vld [vmem:[%s3] sm:$0x1]
      %v1653 = vlaneseq
      %v1654 = vshrl.u32 %v1653, 7
      %v1655 = vsub.s32 0, %v1654
      %v1656 = vrot.slane %v1651, %v1655
      %v1658 = vadd.f32 %v1641, %v1656
      %v1659 = vadd.f32 %v1642, %v1656
      %v1660 = vadd.f32 %v1643, %v1656
      %v1661 = vadd.f32 %v1644, %v1656
      %v1662 = vadd.f32 %v1645, %v1656
      %v1663 = vadd.f32 %v1646, %v1656
      %v1664 = vadd.f32 %v1647, %v1656
      %v1665 = vadd.f32 %v1648, %v1656
      %v1666 = vadd.f32 %v1649, %v1656
      %v1667 = vadd.f32 %v1650, %v1656
      %v1668 = vmax.f32 %v1658, 0.0
      %v1669 = vmax.f32 %v1659, 0.0
      %v1670 = vmax.f32 %v1660, 0.0
      %v1671 = vmax.f32 %v1661, 0.0
      %v1672 = vmax.f32 %v1662, 0.0
      %v1673 = vmax.f32 %v1663, 0.0
      %v1674 = vmax.f32 %v1664, 0.0
      %v1675 = vmax.f32 %v1665, 0.0
      %v1676 = vmax.f32 %v1666, 0.0
      %v1677 = vmax.f32 %v1667, 0.0
      %v1678 = vld [vmem:[%s4] sm:$0xf]
      %v1679 = vld [vmem:[%s4 + $0x4] sm:$0xf]
      %v1680 = vld [vmem:[%s4 + $0x8] sm:$0xf]
      %v1681 = vld [vmem:[%s4 + $0xc] sm:$0xf]
      %v1682 = vld [vmem:[%s4 + $0x10] sm:$0xf]
      %v1683 = vld [vmem:[%s4 + $0x14] sm:$0xf]
      %v1684 = vld [vmem:[%s4 + $0x18] sm:$0xf]
      %v1685 = vld [vmem:[%s4 + $0x1c] sm:$0xf]
      %v1686 = vld [vmem:[%s4 + $0x20] sm:$0xf]
      %v1687 = vld [vmem:[%s4 + $0x24] sm:$0xf]
      %v1688 = vld [vmem:[%s4 + $0x28] sm:$0xf]
      %v1689 = vld [vmem:[%s4 + $0x2c] sm:$0xf]
      %v1690 = vld [vmem:[%s4 + $0x30] sm:$0xf]
      %v1691 = vld [vmem:[%s4 + $0x34] sm:$0xf]
      %v1692 = vld [vmem:[%s4 + $0x38] sm:$0xf]
      %v1693 = vld [vmem:[%s4 + $0x3c] sm:$0xf]
      %v1694 = vpack.c.bf16 %v1669, %v1668
      %v1695 = vpack.c.bf16 %v1671, %v1670
      %v1696 = vpack.c.bf16 %v1673, %v1672
      %v1697 = vpack.c.bf16 %v1675, %v1674
      %v1698 = vpack.c.bf16 %v1677, %v1676
      %v1715 = vunpack.c.l.b16 %v1678
      %v1716 = vunpack.c.l.b16 %v1679
      %v1717 = vunpack.c.l.b16 %v1680
      %v1718 = vunpack.c.l.b16 %v1681
      %v1719 = vunpack.c.l.b16 %v1682
      %v1720 = vunpack.c.l.b16 %v1683
      %v1721 = vunpack.c.l.b16 %v1684
      %v1722 = vunpack.c.l.b16 %v1685
      %v1723 = vunpack.c.l.b16 %v1686
      %v1724 = vunpack.c.l.b16 %v1687
      %v1725 = vunpack.c.l.b16 %v1688
      %v1726 = vunpack.c.l.b16 %v1689
      %v1727 = vunpack.c.l.b16 %v1690
      %v1728 = vunpack.c.l.b16 %v1691
      %v1729 = vunpack.c.l.b16 %v1692
      %v1730 = vunpack.c.l.b16 %v1693
      %v1731 = vpack.c.b16 %v1716, %v1715
      %v1732 = vpack.c.b16 %v1718, %v1717
      %v1733 = vpack.c.b16 %v1720, %v1719
      %v1734 = vpack.c.b16 %v1722, %v1721
      %v1735 = vpack.c.b16 %v1724, %v1723
      %v1736 = vpack.c.b16 %v1726, %v1725
      %v1737 = vpack.c.b16 %v1728, %v1727
      %v1738 = vpack.c.b16 %v1730, %v1729
      %1747 = vmatprep.subr.bf16.mxu0 0
      %1748 = vmatpush1.bf16.msra.mxu0 %v1738
      %1749 = vmatprep.subr.bf16.mxu0 0
      %1750 = vmatpush1.bf16.msra.mxu0 %v1737
      %1751 = vmatprep.subr.bf16.mxu0 0
      %1752 = vmatpush1.bf16.msra.mxu0 %v1736
      %1753 = vmatprep.subr.bf16.mxu0 0
      %1754 = vmatpush1.bf16.msra.mxu0 %v1735
      %1755 = vmatprep.subr.bf16.mxu0 0
      %1756 = vmatpush1.bf16.msra.mxu0 %v1734
      %1757 = vmatprep.subr.bf16.mxu0 0
      %1758 = vmatpush1.bf16.msra.mxu0 %v1733
      %1759 = vmatprep.subr.bf16.mxu0 0
      %1760 = vmatpush1.bf16.msra.mxu0 %v1732
      %1761 = vmatprep.subr.bf16.mxu0 0
      %1762 = vmatpush1.bf16.msra.mxu0 %v1731
      %1763 = vmatprep.subr.bf16.mxu0 0
      %1764 = vmatpush2.bf16.msra.mxu0 0
      %1765 = vmatprep.subr.bf16.mxu0 0
      %1766 = vmatpush2.bf16.msra.mxu0 0
      %1767 = vmatprep.subr.bf16.mxu0 0
      %1768 = vmatpush2.bf16.msra.mxu0 0
      %1769 = vmatprep.subr.bf16.mxu0 0
      %1770 = vmatpush2.bf16.msra.mxu0 0
      %1771 = vmatprep.subr.bf16.mxu0 0
      %1772 = vmatpush2.bf16.msra.mxu0 0
      %1773 = vmatprep.subr.bf16.mxu0 0
      %1774 = vmatpush2.bf16.msra.mxu0 0
      %1775 = vmatprep.subr.bf16.mxu0 0
      %1776 = vmatpush2.bf16.msra.mxu0 0
      %1777 = vmatprep.subr.bf16.mxu0 0
      %1778 = vmatpush2.bf16.msra.mxu0 0
      %1779 = vmatprep.mubr.bf16.mxu0 0
      %1780 = vmatmul.mubr.bf16.gmra.mxu0 %v1694
      %v1781 = vpop.f32.mrf.mxu0
      %v1782 = vadd.f32 0.0, %v1781
      %v1783 = vpop.f32.mrf.mxu0
      %v1784 = vpop.f32.mrf.mxu0
      %v1785 = vadd.f32 0.0, %v1784
      %v1786 = vpop.f32.mrf.mxu0
      %1787 = vmatprep.mubr.bf16.mxu0 0
      %1788 = vmatmul.mubr.bf16.gmra.mxu0 %v1695
      %v1789 = vpop.f32.mrf.mxu0
      %v1790 = vadd.f32 0.0, %v1789
      %v1791 = vpop.f32.mrf.mxu0
      %v1792 = vpop.f32.mrf.mxu0
      %v1793 = vadd.f32 0.0, %v1792
      %v1794 = vpop.f32.mrf.mxu0
      %1795 = vmatprep.mubr.bf16.mxu0 0
      %1796 = vmatmul.mubr.bf16.gmra.mxu0 %v1696
      %v1797 = vpop.f32.mrf.mxu0
      %v1798 = vadd.f32 0.0, %v1797
      %v1799 = vpop.f32.mrf.mxu0
      %v1800 = vpop.f32.mrf.mxu0
      %v1801 = vadd.f32 0.0, %v1800
      %v1802 = vpop.f32.mrf.mxu0
      %1803 = vmatprep.mubr.bf16.mxu0 0
      %1804 = vmatmul.mubr.bf16.gmra.mxu0 %v1697
      %v1805 = vpop.f32.mrf.mxu0
      %v1806 = vadd.f32 0.0, %v1805
      %v1807 = vpop.f32.mrf.mxu0
      %v1808 = vpop.f32.mrf.mxu0
      %v1809 = vadd.f32 0.0, %v1808
      %v1810 = vpop.f32.mrf.mxu0
      %1811 = vmatprep.mubr.bf16.mxu0 0
      %1812 = vmatmul.mubr.bf16.gmra.mxu0 %v1698
      %v1813 = vpop.f32.mrf.mxu0
      %v1814 = vadd.f32 0.0, %v1813
      %v1815 = vpop.f32.mrf.mxu0
      %v1816 = vpop.f32.mrf.mxu0
      %v1817 = vadd.f32 0.0, %v1816
      %v1818 = vpop.f32.mrf.mxu0
      %1819 = vdwg.mxu0
      %v1820 = vld [vmem:[%s5] sm:$0xf]
      %v1821 = vld [vmem:[%s5 + $0x4] sm:$0xf]
      %v1822 = vld [vmem:[%s5 + $0x8] sm:$0xf]
      %v1823 = vld [vmem:[%s5 + $0xc] sm:$0xf]
      %v1824 = vld [vmem:[%s5 + $0x10] sm:$0xf]
      %v1825 = vld [vmem:[%s5 + $0x14] sm:$0xf]
      %v1826 = vld [vmem:[%s5 + $0x18] sm:$0xf]
      %v1827 = vld [vmem:[%s5 + $0x1c] sm:$0xf]
      %v1828 = vld [vmem:[%s5 + $0x20] sm:$0xf]
      %v1829 = vld [vmem:[%s5 + $0x24] sm:$0xf]
      %v1830 = vld [vmem:[%s5 + $0x28] sm:$0xf]
      %v1831 = vld [vmem:[%s5 + $0x2c] sm:$0xf]
      %v1832 = vld [vmem:[%s5 + $0x30] sm:$0xf]
      %v1833 = vld [vmem:[%s5 + $0x34] sm:$0xf]
      %v1834 = vld [vmem:[%s5 + $0x38] sm:$0xf]
      %v1835 = vld [vmem:[%s5 + $0x3c] sm:$0xf]
      %v1852 = vunpack.c.l.b16 %v1820
      %v1853 = vunpack.c.l.b16 %v1821
      %v1854 = vunpack.c.l.b16 %v1822
      %v1855 = vunpack.c.l.b16 %v1823
      %v1856 = vunpack.c.l.b16 %v1824
      %v1857 = vunpack.c.l.b16 %v1825
      %v1858 = vunpack.c.l.b16 %v1826
      %v1859 = vunpack.c.l.b16 %v1827
      %v1860 = vunpack.c.l.b16 %v1828
      %v1861 = vunpack.c.l.b16 %v1829
      %v1862 = vunpack.c.l.b16 %v1830
      %v1863 = vunpack.c.l.b16 %v1831
      %v1864 = vunpack.c.l.b16 %v1832
      %v1865 = vunpack.c.l.b16 %v1833
      %v1866 = vunpack.c.l.b16 %v1834
      %v1867 = vunpack.c.l.b16 %v1835
      %v1868 = vpack.c.b16 %v1853, %v1852
      %v1869 = vpack.c.b16 %v1855, %v1854
      %v1870 = vpack.c.b16 %v1857, %v1856
      %v1871 = vpack.c.b16 %v1859, %v1858
      %v1872 = vpack.c.b16 %v1861, %v1860
      %v1873 = vpack.c.b16 %v1863, %v1862
      %v1874 = vpack.c.b16 %v1865, %v1864
      %v1875 = vpack.c.b16 %v1867, %v1866
      %1884 = vmatprep.subr.bf16.mxu0 0
      %1885 = vmatpush1.bf16.msra.mxu0 %v1875
      %1886 = vmatprep.subr.bf16.mxu0 0
      %1887 = vmatpush1.bf16.msra.mxu0 %v1874
      %1888 = vmatprep.subr.bf16.mxu0 0
      %1889 = vmatpush1.bf16.msra.mxu0 %v1873
      %1890 = vmatprep.subr.bf16.mxu0 0
      %1891 = vmatpush1.bf16.msra.mxu0 %v1872
      %1892 = vmatprep.subr.bf16.mxu0 0
      %1893 = vmatpush1.bf16.msra.mxu0 %v1871
      %1894 = vmatprep.subr.bf16.mxu0 0
      %1895 = vmatpush1.bf16.msra.mxu0 %v1870
      %1896 = vmatprep.subr.bf16.mxu0 0
      %1897 = vmatpush1.bf16.msra.mxu0 %v1869
      %1898 = vmatprep.subr.bf16.mxu0 0
      %1899 = vmatpush1.bf16.msra.mxu0 %v1868
      %1900 = vmatprep.subr.bf16.mxu0 0
      %1901 = vmatpush2.bf16.msra.mxu0 0
      %1902 = vmatprep.subr.bf16.mxu0 0
      %1903 = vmatpush2.bf16.msra.mxu0 0
      %1904 = vmatprep.subr.bf16.mxu0 0
      %1905 = vmatpush2.bf16.msra.mxu0 0
      %1906 = vmatprep.subr.bf16.mxu0 0
      %1907 = vmatpush2.bf16.msra.mxu0 0
      %1908 = vmatprep.subr.bf16.mxu0 0
      %1909 = vmatpush2.bf16.msra.mxu0 0
      %1910 = vmatprep.subr.bf16.mxu0 0
      %1911 = vmatpush2.bf16.msra.mxu0 0
      %1912 = vmatprep.subr.bf16.mxu0 0
      %1913 = vmatpush2.bf16.msra.mxu0 0
      %1914 = vmatprep.subr.bf16.mxu0 0
      %1915 = vmatpush2.bf16.msra.mxu0 0
      %1916 = vmatprep.mubr.bf16.mxu0 0
      %1917 = vmatmul.mubr.bf16.gmra.mxu0 %v1694
      %v1918 = vpop.f32.mrf.mxu0
      %v1919 = vadd.f32 0.0, %v1918
      %v1920 = vpop.f32.mrf.mxu0
      %v1921 = vpop.f32.mrf.mxu0
      %v1922 = vadd.f32 0.0, %v1921
      %v1923 = vpop.f32.mrf.mxu0
      %1924 = vmatprep.mubr.bf16.mxu0 0
      %1925 = vmatmul.mubr.bf16.gmra.mxu0 %v1695
      %v1926 = vpop.f32.mrf.mxu0
      %v1927 = vadd.f32 0.0, %v1926
      %v1928 = vpop.f32.mrf.mxu0
      %v1929 = vpop.f32.mrf.mxu0
      %v1930 = vadd.f32 0.0, %v1929
      %v1931 = vpop.f32.mrf.mxu0
      %1932 = vmatprep.mubr.bf16.mxu0 0
      %1933 = vmatmul.mubr.bf16.gmra.mxu0 %v1696
      %v1934 = vpop.f32.mrf.mxu0
      %v1935 = vadd.f32 0.0, %v1934
      %v1936 = vpop.f32.mrf.mxu0
      %v1937 = vpop.f32.mrf.mxu0
      %v1938 = vadd.f32 0.0, %v1937
      %v1939 = vpop.f32.mrf.mxu0
      %1940 = vmatprep.mubr.bf16.mxu0 0
      %1941 = vmatmul.mubr.bf16.gmra.mxu0 %v1697
      %v1942 = vpop.f32.mrf.mxu0
      %v1943 = vadd.f32 0.0, %v1942
      %v1944 = vpop.f32.mrf.mxu0
      %v1945 = vpop.f32.mrf.mxu0
      %v1946 = vadd.f32 0.0, %v1945
      %v1947 = vpop.f32.mrf.mxu0
      %1948 = vmatprep.mubr.bf16.mxu0 0
      %1949 = vmatmul.mubr.bf16.gmra.mxu0 %v1698
      %v1950 = vpop.f32.mrf.mxu0
      %v1951 = vadd.f32 0.0, %v1950
      %v1952 = vpop.f32.mrf.mxu0
      %v1953 = vpop.f32.mrf.mxu0
      %v1954 = vadd.f32 0.0, %v1953
      %v1955 = vpop.f32.mrf.mxu0
      %1956 = vdwg.mxu0
      %v1957 = vmax.f32 %v1782, %v1919
      %v1958 = vmax.f32 %v1785, %v1922
      %v1959 = vmax.f32 %v1790, %v1927
      %v1960 = vmax.f32 %v1793, %v1930
      %v1961 = vmax.f32 %v1798, %v1935
      %v1962 = vmax.f32 %v1801, %v1938
      %v1963 = vmax.f32 %v1806, %v1943
      %v1964 = vmax.f32 %v1809, %v1946
      %v1965 = vmax.f32 %v1814, %v1951
      %v1966 = vmax.f32 %v1817, %v1954
      %v1967 = vld [vmem:[%s6] sm:$0xf]
      %v1968 = vld [vmem:[%s6 + $0x4] sm:$0xf]
      %v1969 = vld [vmem:[%s6 + $0x8] sm:$0xf]
      %v1970 = vld [vmem:[%s6 + $0xc] sm:$0xf]
      %v1971 = vld [vmem:[%s6 + $0x10] sm:$0xf]
      %v1972 = vpack.c.bf16 %v1958, %v1957
      %v1973 = vpack.c.bf16 %v1960, %v1959
      %v1974 = vpack.c.bf16 %v1962, %v1961
      %v1975 = vpack.c.bf16 %v1964, %v1963
      %v1976 = vpack.c.bf16 %v1966, %v1965
      %v1982 = vunpack.c.l.b16 %v1967
      %v1983 = vunpack.c.l.b16 %v1968
      %v1984 = vunpack.c.l.b16 %v1969
      %v1985 = vunpack.c.l.b16 %v1970
      %v1986 = vunpack.c.l.b16 %v1971
      %v1987 = vpack.c.b16 %v1983, %v1982
      %v1988 = vpack.c.b16 %v1985, %v1984
      %v1989 = vpack.c.b16 %v1986, %v1986
      %vm1990 = vcmask 621568
      %v1992 = vsel %vm1990, %v1987, 0
      %v1995 = vsel %vm1990, %v1988, 0
      %v1998 = vsel %vm1990, %v1989, 0
      %vm2000 = vcmask 1045504
      %v2002 = vsel %vm2000, %v1976, 0
      %2004 = vmatprep.subr.bf16.mxu0 0
      %2005 = vmatpush1.bf16.msra.mxu0 0
      %2006 = vmatprep.subr.bf16.mxu0 0
      %2007 = vmatpush1.bf16.msra.mxu0 0
      %2008 = vmatprep.subr.bf16.mxu0 0
      %2009 = vmatpush1.bf16.msra.mxu0 0
      %2010 = vmatprep.subr.bf16.mxu0 0
      %2011 = vmatpush1.bf16.msra.mxu0 %v2002
      %2012 = vmatprep.subr.bf16.mxu0 0
      %2013 = vmatpush1.bf16.msra.mxu0 %v1975
      %2014 = vmatprep.subr.bf16.mxu0 0
      %2015 = vmatpush1.bf16.msra.mxu0 %v1974
      %2016 = vmatprep.subr.bf16.mxu0 0
      %2017 = vmatpush1.bf16.msra.mxu0 %v1973
      %2018 = vmatprep.subr.bf16.mxu0 0
      %2019 = vmatpush1.bf16.msra.mxu0 %v1972
      %2020 = vmatprep.subr.bf16.mxu0 0
      %2021 = vmatpush2.bf16.msra.mxu0 0
      %2022 = vmatprep.subr.bf16.mxu0 0
      %2023 = vmatpush2.bf16.msra.mxu0 0
      %2024 = vmatprep.subr.bf16.mxu0 0
      %2025 = vmatpush2.bf16.msra.mxu0 0
      %2026 = vmatprep.subr.bf16.mxu0 0
      %2027 = vmatpush2.bf16.msra.mxu0 0
      %2028 = vmatprep.subr.bf16.mxu0 0
      %2029 = vmatpush2.bf16.msra.mxu0 0
      %2030 = vmatprep.subr.bf16.mxu0 0
      %2031 = vmatpush2.bf16.msra.mxu0 0
      %2032 = vmatprep.subr.bf16.mxu0 0
      %2033 = vmatpush2.bf16.msra.mxu0 0
      %2034 = vmatprep.subr.bf16.mxu0 0
      %2035 = vmatpush2.bf16.msra.mxu0 0
      %2036 = vmatprep.mubr.bf16.mxu0 0
      %2037 = vmatmul.mubr.bf16.gmra.mxu0 %v1992
      %v2038 = vpop.f32.mrf.mxu0
      %v2039 = vadd.f32 0.0, %v2038
      %v2040 = vpop.f32.mrf.mxu0
      %v2041 = vpop.f32.mrf.mxu0
      %v2042 = vadd.f32 0.0, %v2041
      %v2043 = vpop.f32.mrf.mxu0
      %2044 = vmatprep.mubr.bf16.mxu0 0
      %2045 = vmatmul.mubr.bf16.gmra.mxu0 %v1995
      %v2046 = vpop.f32.mrf.mxu0
      %v2047 = vadd.f32 0.0, %v2046
      %v2048 = vpop.f32.mrf.mxu0
      %v2049 = vpop.f32.mrf.mxu0
      %v2050 = vadd.f32 0.0, %v2049
      %v2051 = vpop.f32.mrf.mxu0
      %2052 = vmatprep.mubr.bf16.mxu0 0
      %2053 = vmatmul.mubr.bf16.gmra.mxu0 %v1998
      %v2054 = vpop.f32.mrf.mxu0
      %v2055 = vadd.f32 0.0, %v2054
      %v2056 = vpop.f32.mrf.mxu0
      %v2057 = vpop.f32.mrf.mxu0
      %v2058 = vpop.f32.mrf.mxu0
      %2059 = vdwg.mxu0
      %v2060 = vld [vmem:[%s7] sm:$0xf]
      %v2061 = vld [vmem:[%s7 + $0x4] sm:$0xf]
      %v2062 = vld [vmem:[%s7 + $0x8] sm:$0xf]
      %v2063 = vld [vmem:[%s7 + $0xc] sm:$0xf]
      %v2064 = vld [vmem:[%s7 + $0x10] sm:$0xf]
      %v2070 = vunpack.c.l.b16 %v2060
      %v2071 = vunpack.c.l.b16 %v2061
      %v2072 = vunpack.c.l.b16 %v2062
      %v2073 = vunpack.c.l.b16 %v2063
      %v2074 = vunpack.c.l.b16 %v2064
      %v2075 = vpack.c.b16 %v2071, %v2070
      %v2076 = vpack.c.b16 %v2073, %v2072
      %v2077 = vpack.c.b16 %v2074, %v2074
      %v2079 = vsel %vm1990, %v2075, 0
      %v2082 = vsel %vm1990, %v2076, 0
      %v2085 = vsel %vm1990, %v2077, 0
      %2087 = vmatprep.subr.bf16.mxu0 0
      %2088 = vmatpush1.bf16.msra.mxu0 0
      %2089 = vmatprep.subr.bf16.mxu0 0
      %2090 = vmatpush1.bf16.msra.mxu0 0
      %2091 = vmatprep.subr.bf16.mxu0 0
      %2092 = vmatpush1.bf16.msra.mxu0 0
      %2093 = vmatprep.subr.bf16.mxu0 0
      %2094 = vmatpush1.bf16.msra.mxu0 %v2002
      %2095 = vmatprep.subr.bf16.mxu0 0
      %2096 = vmatpush1.bf16.msra.mxu0 %v1975
      %2097 = vmatprep.subr.bf16.mxu0 0
      %2098 = vmatpush1.bf16.msra.mxu0 %v1974
      %2099 = vmatprep.subr.bf16.mxu0 0
      %2100 = vmatpush1.bf16.msra.mxu0 %v1973
      %2101 = vmatprep.subr.bf16.mxu0 0
      %2102 = vmatpush1.bf16.msra.mxu0 %v1972
      %2103 = vmatprep.subr.bf16.mxu0 0
      %2104 = vmatpush2.bf16.msra.mxu0 0
      %2105 = vmatprep.subr.bf16.mxu0 0
      %2106 = vmatpush2.bf16.msra.mxu0 0
      %2107 = vmatprep.subr.bf16.mxu0 0
      %2108 = vmatpush2.bf16.msra.mxu0 0
      %2109 = vmatprep.subr.bf16.mxu0 0
      %2110 = vmatpush2.bf16.msra.mxu0 0
      %2111 = vmatprep.subr.bf16.mxu0 0
      %2112 = vmatpush2.bf16.msra.mxu0 0
      %2113 = vmatprep.subr.bf16.mxu0 0
      %2114 = vmatpush2.bf16.msra.mxu0 0
      %2115 = vmatprep.subr.bf16.mxu0 0
      %2116 = vmatpush2.bf16.msra.mxu0 0
      %2117 = vmatprep.subr.bf16.mxu0 0
      %2118 = vmatpush2.bf16.msra.mxu0 0
      %2119 = vmatprep.mubr.bf16.mxu0 0
      %2120 = vmatmul.mubr.bf16.gmra.mxu0 %v2079
      %v2121 = vpop.f32.mrf.mxu0
      %v2122 = vadd.f32 0.0, %v2121
      %v2123 = vpop.f32.mrf.mxu0
      %v2124 = vpop.f32.mrf.mxu0
      %v2125 = vadd.f32 0.0, %v2124
      %v2126 = vpop.f32.mrf.mxu0
      %2127 = vmatprep.mubr.bf16.mxu0 0
      %2128 = vmatmul.mubr.bf16.gmra.mxu0 %v2082
      %v2129 = vpop.f32.mrf.mxu0
      %v2130 = vadd.f32 0.0, %v2129
      %v2131 = vpop.f32.mrf.mxu0
      %v2132 = vpop.f32.mrf.mxu0
      %v2133 = vadd.f32 0.0, %v2132
      %v2134 = vpop.f32.mrf.mxu0
      %2135 = vmatprep.mubr.bf16.mxu0 0
      %2136 = vmatmul.mubr.bf16.gmra.mxu0 %v2085
      %v2137 = vpop.f32.mrf.mxu0
      %v2138 = vadd.f32 0.0, %v2137
      %v2139 = vpop.f32.mrf.mxu0
      %v2140 = vpop.f32.mrf.mxu0
      %v2141 = vpop.f32.mrf.mxu0
      %2142 = vdwg.mxu0
      %v2143 = vmax.f32 %v2039, %v2122
      %v2144 = vmax.f32 %v2042, %v2125
      %v2145 = vmax.f32 %v2047, %v2130
      %v2146 = vmax.f32 %v2050, %v2133
      %v2147 = vmax.f32 %v2055, %v2138
      %v2148 = vpack.c.bf16 %v2144, %v2143
      %v2149 = vpack.c.bf16 %v2146, %v2145
      %v2150 = vpack.c.bf16 %v2147, %v2147
      %v2151 = vld [vmem:[%s8] sm:$0xf]
      %v2152 = vld [vmem:[%s8 + $0x4] sm:$0xf]
      %v2153 = vld [vmem:[%s8 + $0x8] sm:$0xf]
      %v2154 = vld [vmem:[%s8 + $0xc] sm:$0xf]
      %v2155 = vld [vmem:[%s8 + $0x10] sm:$0xf]
      %v2156 = vld [vmem:[%s8 + $0x14] sm:$0xf]
      %v2157 = vld [vmem:[%s8 + $0x18] sm:$0xf]
      %v2158 = vld [vmem:[%s8 + $0x1c] sm:$0xf]
      %s2159 = scalar_lea.vmem %s8, 32
      %v2160 = vld [vmem:[%s2159] sm:$0xf]
      %v2161 = vld [vmem:[%s2159 + $0x4] sm:$0xf]
      %v2162 = vld [vmem:[%s2159 + $0x8] sm:$0xf]
      %v2163 = vld [vmem:[%s2159 + $0xc] sm:$0xf]
      %v2164 = vld [vmem:[%s2159 + $0x10] sm:$0xf]
      %v2165 = vld [vmem:[%s2159 + $0x14] sm:$0xf]
      %v2166 = vld [vmem:[%s2159 + $0x18] sm:$0xf]
      %v2167 = vld [vmem:[%s2159 + $0x1c] sm:$0xf]
      %v2169 = vshrl.u32 %v2148, 16
      %v2171 = vshll.u32 %v2148, 16
      %v2173 = vrot.slane %v2171, 1
      %v2174 = vor.u32 %v2169, %v2173
      %v2176 = vshll.u32 %v2149, 16
      %v2178 = vrot.slane %v2176, 1
      %v2179 = vsel %vm954, %v2174, %v2178
      %v2180 = vshrl.u32 %v2149, 16
      %v2182 = vor.u32 %v2180, %v2178
      %v2184 = vshll.u32 %v2150, 16
      %v2186 = vrot.slane %v2184, 1
      %v2187 = vsel %vm954, %v2182, %v2186
      %v2188 = vshrl.u32 %v2150, 16
      %v2190 = vor.u32 %v2188, %v2186
      %v2199 = vunpack.c.l.b16 %v2160
      %v2200 = vunpack.c.l.b16 %v2161
      %v2201 = vunpack.c.l.b16 %v2162
      %v2202 = vunpack.c.l.b16 %v2163
      %v2203 = vunpack.c.l.b16 %v2164
      %v2204 = vunpack.c.l.b16 %v2165
      %v2205 = vunpack.c.l.b16 %v2166
      %v2206 = vunpack.c.l.b16 %v2167
      %v2207 = vpack.c.b16 %v2200, %v2199
      %v2208 = vpack.c.b16 %v2202, %v2201
      %v2209 = vpack.c.b16 %v2204, %v2203
      %v2210 = vpack.c.b16 %v2206, %v2205
      %v2216 = vsel %vm843, %v2179, 0
      %v2219 = vsel %vm843, %v2187, 0
      %v2222 = vsel %vm843, %v2190, 0
      %2224 = vmatprep.subr.bf16.mxu0 0
      %2225 = vmatpush1.bf16.msra.mxu0 0
      %2226 = vmatprep.subr.bf16.mxu0 0
      %2227 = vmatpush1.bf16.msra.mxu0 0
      %2228 = vmatprep.subr.bf16.mxu0 0
      %2229 = vmatpush1.bf16.msra.mxu0 0
      %2230 = vmatprep.subr.bf16.mxu0 0
      %2231 = vmatpush1.bf16.msra.mxu0 0
      %2232 = vmatprep.subr.bf16.mxu0 0
      %2233 = vmatpush1.bf16.msra.mxu0 %v2210
      %2234 = vmatprep.subr.bf16.mxu0 0
      %2235 = vmatpush1.bf16.msra.mxu0 %v2209
      %2236 = vmatprep.subr.bf16.mxu0 0
      %2237 = vmatpush1.bf16.msra.mxu0 %v2208
      %2238 = vmatprep.subr.bf16.mxu0 0
      %2239 = vmatpush1.bf16.msra.mxu0 %v2207
      %2240 = vmatprep.subr.bf16.mxu0 0
      %2241 = vmatpush2.bf16.msra.mxu0 0
      %2242 = vmatprep.subr.bf16.mxu0 0
      %2243 = vmatpush2.bf16.msra.mxu0 0
      %2244 = vmatprep.subr.bf16.mxu0 0
      %2245 = vmatpush2.bf16.msra.mxu0 0
      %2246 = vmatprep.subr.bf16.mxu0 0
      %2247 = vmatpush2.bf16.msra.mxu0 0
      %2248 = vmatprep.subr.bf16.mxu0 0
      %2249 = vmatpush2.bf16.msra.mxu0 0
      %2250 = vmatprep.subr.bf16.mxu0 0
      %2251 = vmatpush2.bf16.msra.mxu0 0
      %2252 = vmatprep.subr.bf16.mxu0 0
      %2253 = vmatpush2.bf16.msra.mxu0 0
      %2254 = vmatprep.subr.bf16.mxu0 0
      %2255 = vmatpush2.bf16.msra.mxu0 0
      %2256 = vmatprep.mubr.bf16.mxu0 0
      %2257 = vmatmul.mubr.bf16.gmra.mxu0 %v2216
      %v2258 = vpop.f32.mrf.mxu0
      %v2259 = vadd.f32 0.0, %v2258
      %v2260 = vpop.f32.mrf.mxu0
      %v2261 = vpop.f32.mrf.mxu0
      %v2262 = vadd.f32 0.0, %v2261
      %v2263 = vpop.f32.mrf.mxu0
      %2264 = vmatprep.mubr.bf16.mxu0 0
      %2265 = vmatmul.mubr.bf16.gmra.mxu0 %v2219
      %v2266 = vpop.f32.mrf.mxu0
      %v2267 = vadd.f32 0.0, %v2266
      %v2268 = vpop.f32.mrf.mxu0
      %v2269 = vpop.f32.mrf.mxu0
      %v2270 = vadd.f32 0.0, %v2269
      %v2271 = vpop.f32.mrf.mxu0
      %2272 = vmatprep.mubr.bf16.mxu0 0
      %2273 = vmatmul.mubr.bf16.gmra.mxu0 %v2222
      %v2274 = vpop.f32.mrf.mxu0
      %v2275 = vadd.f32 0.0, %v2274
      %v2276 = vpop.f32.mrf.mxu0
      %v2277 = vpop.f32.mrf.mxu0
      %v2278 = vpop.f32.mrf.mxu0
      %2279 = vdwg.mxu0
      %v2288 = vunpack.c.l.b16 %v2151
      %v2289 = vunpack.c.l.b16 %v2152
      %v2290 = vunpack.c.l.b16 %v2153
      %v2291 = vunpack.c.l.b16 %v2154
      %v2292 = vunpack.c.l.b16 %v2155
      %v2293 = vunpack.c.l.b16 %v2156
      %v2294 = vunpack.c.l.b16 %v2157
      %v2295 = vunpack.c.l.b16 %v2158
      %v2296 = vpack.c.b16 %v2289, %v2288
      %v2297 = vpack.c.b16 %v2291, %v2290
      %v2298 = vpack.c.b16 %v2293, %v2292
      %v2299 = vpack.c.b16 %v2295, %v2294
      %v2304 = vsel %vm843, %v2148, 0
      %v2306 = vsel %vm843, %v2149, 0
      %v2308 = vsel %vm843, %v2150, 0
      %2310 = vmatprep.subr.bf16.mxu0 0
      %2311 = vmatpush1.bf16.msra.mxu0 0
      %2312 = vmatprep.subr.bf16.mxu0 0
      %2313 = vmatpush1.bf16.msra.mxu0 0
      %2314 = vmatprep.subr.bf16.mxu0 0
      %2315 = vmatpush1.bf16.msra.mxu0 0
      %2316 = vmatprep.subr.bf16.mxu0 0
      %2317 = vmatpush1.bf16.msra.mxu0 0
      %2318 = vmatprep.subr.bf16.mxu0 0
      %2319 = vmatpush1.bf16.msra.mxu0 %v2299
      %2320 = vmatprep.subr.bf16.mxu0 0
      %2321 = vmatpush1.bf16.msra.mxu0 %v2298
      %2322 = vmatprep.subr.bf16.mxu0 0
      %2323 = vmatpush1.bf16.msra.mxu0 %v2297
      %2324 = vmatprep.subr.bf16.mxu0 0
      %2325 = vmatpush1.bf16.msra.mxu0 %v2296
      %2326 = vmatprep.subr.bf16.mxu0 0
      %2327 = vmatpush2.bf16.msra.mxu0 0
      %2328 = vmatprep.subr.bf16.mxu0 0
      %2329 = vmatpush2.bf16.msra.mxu0 0
      %2330 = vmatprep.subr.bf16.mxu0 0
      %2331 = vmatpush2.bf16.msra.mxu0 0
      %2332 = vmatprep.subr.bf16.mxu0 0
      %2333 = vmatpush2.bf16.msra.mxu0 0
      %2334 = vmatprep.subr.bf16.mxu0 0
      %2335 = vmatpush2.bf16.msra.mxu0 0
      %2336 = vmatprep.subr.bf16.mxu0 0
      %2337 = vmatpush2.bf16.msra.mxu0 0
      %2338 = vmatprep.subr.bf16.mxu0 0
      %2339 = vmatpush2.bf16.msra.mxu0 0
      %2340 = vmatprep.subr.bf16.mxu0 0
      %2341 = vmatpush2.bf16.msra.mxu0 0
      %2342 = vmatprep.mubr.bf16.mxu0 0
      %2343 = vmatmul.mubr.bf16.gmra.mxu0 %v2304
      %v2344 = vpop.f32.mrf.mxu0
      %v2345 = vadd.f32 %v2259, %v2344
      %v2346 = vpop.f32.mrf.mxu0
      %v2347 = vpop.f32.mrf.mxu0
      %v2348 = vadd.f32 %v2262, %v2347
      %v2349 = vpop.f32.mrf.mxu0
      %2350 = vmatprep.mubr.bf16.mxu0 0
      %2351 = vmatmul.mubr.bf16.gmra.mxu0 %v2306
      %v2352 = vpop.f32.mrf.mxu0
      %v2353 = vadd.f32 %v2267, %v2352
      %v2354 = vpop.f32.mrf.mxu0
      %v2355 = vpop.f32.mrf.mxu0
      %v2356 = vadd.f32 %v2270, %v2355
      %v2357 = vpop.f32.mrf.mxu0
      %2358 = vmatprep.mubr.bf16.mxu0 0
      %2359 = vmatmul.mubr.bf16.gmra.mxu0 %v2308
      %v2360 = vpop.f32.mrf.mxu0
      %v2361 = vadd.f32 %v2275, %v2360
      %v2362 = vpop.f32.mrf.mxu0
      %v2363 = vpop.f32.mrf.mxu0
      %v2364 = vpop.f32.mrf.mxu0
      %2365 = vdwg.mxu0
      %s2366 = scalar_lea.vmem %s8, 64
      %v2367 = vld [vmem:[%s2366] sm:$0xf]
      %v2368 = vld [vmem:[%s2366 + $0x4] sm:$0xf]
      %v2369 = vld [vmem:[%s2366 + $0x8] sm:$0xf]
      %v2370 = vld [vmem:[%s2366 + $0xc] sm:$0xf]
      %v2371 = vld [vmem:[%s2366 + $0x10] sm:$0xf]
      %v2372 = vld [vmem:[%s2366 + $0x14] sm:$0xf]
      %v2373 = vld [vmem:[%s2366 + $0x18] sm:$0xf]
      %v2374 = vld [vmem:[%s2366 + $0x1c] sm:$0xf]
      %v2378 = vrot.slane %v2148, 1
      %v2379 = vrot.slane %v2149, 1
      %v2380 = vsel %vm1227, %v2378, %v2379
      %v2381 = vrot.slane %v2150, 1
      %v2382 = vsel %vm1227, %v2379, %v2381
      %v2391 = vunpack.c.l.b16 %v2367
      %v2392 = vunpack.c.l.b16 %v2368
      %v2393 = vunpack.c.l.b16 %v2369
      %v2394 = vunpack.c.l.b16 %v2370
      %v2395 = vunpack.c.l.b16 %v2371
      %v2396 = vunpack.c.l.b16 %v2372
      %v2397 = vunpack.c.l.b16 %v2373
      %v2398 = vunpack.c.l.b16 %v2374
      %v2399 = vpack.c.b16 %v2392, %v2391
      %v2400 = vpack.c.b16 %v2394, %v2393
      %v2401 = vpack.c.b16 %v2396, %v2395
      %v2402 = vpack.c.b16 %v2398, %v2397
      %v2408 = vsel %vm843, %v2380, 0
      %v2411 = vsel %vm843, %v2382, 0
      %v2414 = vsel %vm843, %v2381, 0
      %2416 = vmatprep.subr.bf16.mxu0 0
      %2417 = vmatpush1.bf16.msra.mxu0 0
      %2418 = vmatprep.subr.bf16.mxu0 0
      %2419 = vmatpush1.bf16.msra.mxu0 0
      %2420 = vmatprep.subr.bf16.mxu0 0
      %2421 = vmatpush1.bf16.msra.mxu0 0
      %2422 = vmatprep.subr.bf16.mxu0 0
      %2423 = vmatpush1.bf16.msra.mxu0 0
      %2424 = vmatprep.subr.bf16.mxu0 0
      %2425 = vmatpush1.bf16.msra.mxu0 %v2402
      %2426 = vmatprep.subr.bf16.mxu0 0
      %2427 = vmatpush1.bf16.msra.mxu0 %v2401
      %2428 = vmatprep.subr.bf16.mxu0 0
      %2429 = vmatpush1.bf16.msra.mxu0 %v2400
      %2430 = vmatprep.subr.bf16.mxu0 0
      %2431 = vmatpush1.bf16.msra.mxu0 %v2399
      %2432 = vmatprep.subr.bf16.mxu0 0
      %2433 = vmatpush2.bf16.msra.mxu0 0
      %2434 = vmatprep.subr.bf16.mxu0 0
      %2435 = vmatpush2.bf16.msra.mxu0 0
      %2436 = vmatprep.subr.bf16.mxu0 0
      %2437 = vmatpush2.bf16.msra.mxu0 0
      %2438 = vmatprep.subr.bf16.mxu0 0
      %2439 = vmatpush2.bf16.msra.mxu0 0
      %2440 = vmatprep.subr.bf16.mxu0 0
      %2441 = vmatpush2.bf16.msra.mxu0 0
      %2442 = vmatprep.subr.bf16.mxu0 0
      %2443 = vmatpush2.bf16.msra.mxu0 0
      %2444 = vmatprep.subr.bf16.mxu0 0
      %2445 = vmatpush2.bf16.msra.mxu0 0
      %2446 = vmatprep.subr.bf16.mxu0 0
      %2447 = vmatpush2.bf16.msra.mxu0 0
      %2448 = vmatprep.mubr.bf16.mxu0 0
      %2449 = vmatmul.mubr.bf16.gmra.mxu0 %v2408
      %v2450 = vpop.f32.mrf.mxu0
      %v2451 = vadd.f32 0.0, %v2450
      %v2452 = vpop.f32.mrf.mxu0
      %v2453 = vpop.f32.mrf.mxu0
      %v2454 = vadd.f32 0.0, %v2453
      %v2455 = vpop.f32.mrf.mxu0
      %2456 = vmatprep.mubr.bf16.mxu0 0
      %2457 = vmatmul.mubr.bf16.gmra.mxu0 %v2411
      %v2458 = vpop.f32.mrf.mxu0
      %v2459 = vadd.f32 0.0, %v2458
      %v2460 = vpop.f32.mrf.mxu0
      %v2461 = vpop.f32.mrf.mxu0
      %v2462 = vadd.f32 0.0, %v2461
      %v2463 = vpop.f32.mrf.mxu0
      %2464 = vmatprep.mubr.bf16.mxu0 0
      %2465 = vmatmul.mubr.bf16.gmra.mxu0 %v2414
      %v2466 = vpop.f32.mrf.mxu0
      %v2467 = vadd.f32 0.0, %v2466
      %v2468 = vpop.f32.mrf.mxu0
      %v2469 = vpop.f32.mrf.mxu0
      %v2470 = vpop.f32.mrf.mxu0
      %2471 = vdwg.mxu0
      %v2472 = vadd.f32 %v2345, %v2451
      %v2473 = vadd.f32 %v2348, %v2454
      %v2474 = vadd.f32 %v2353, %v2459
      %v2475 = vadd.f32 %v2356, %v2462
      %v2476 = vadd.f32 %v2361, %v2467
      %v2477 = vld [vmem:[%s9] sm:$0x1]
      %v2479 = vlaneseq
      %v2480 = vshrl.u32 %v2479, 7
      %v2481 = vsub.s32 0, %v2480
      %v2482 = vrot.slane %v2477, %v2481
      %v2484 = vadd.f32 %v2472, %v2482
      %v2485 = vadd.f32 %v2473, %v2482
      %v2486 = vadd.f32 %v2474, %v2482
      %v2487 = vadd.f32 %v2475, %v2482
      %v2488 = vadd.f32 %v2476, %v2482
      %v2489 = vmax.f32 %v2484, 0.0
      %v2490 = vmax.f32 %v2485, 0.0
      %v2491 = vmax.f32 %v2486, 0.0
      %v2492 = vmax.f32 %v2487, 0.0
      %v2493 = vmax.f32 %v2488, 0.0
      %v2494 = vld [vmem:[%s10] sm:$0xf]
      %v2495 = vld [vmem:[%s10 + $0x4] sm:$0xf]
      %v2496 = vld [vmem:[%s10 + $0x8] sm:$0xf]
      %v2497 = vld [vmem:[%s10 + $0xc] sm:$0xf]
      %v2498 = vld [vmem:[%s10 + $0x10] sm:$0xf]
      %v2499 = vld [vmem:[%s10 + $0x14] sm:$0xf]
      %v2500 = vld [vmem:[%s10 + $0x18] sm:$0xf]
      %v2501 = vld [vmem:[%s10 + $0x1c] sm:$0xf]
      %v2502 = vpack.c.bf16 %v2490, %v2489
      %v2503 = vpack.c.bf16 %v2492, %v2491
      %v2504 = vpack.c.bf16 %v2493, %v2493
      %v2513 = vunpack.c.l.b16 %v2494
      %v2514 = vunpack.c.l.b16 %v2495
      %v2515 = vunpack.c.l.b16 %v2496
      %v2516 = vunpack.c.l.b16 %v2497
      %v2517 = vunpack.c.l.b16 %v2498
      %v2518 = vunpack.c.l.b16 %v2499
      %v2519 = vunpack.c.l.b16 %v2500
      %v2520 = vunpack.c.l.b16 %v2501
      %v2521 = vpack.c.b16 %v2514, %v2513
      %v2522 = vpack.c.b16 %v2516, %v2515
      %v2523 = vpack.c.b16 %v2518, %v2517
      %v2524 = vpack.c.b16 %v2520, %v2519
      %v2530 = vsel %vm843, %v2502, 0
      %v2533 = vsel %vm843, %v2503, 0
      %v2536 = vsel %vm843, %v2504, 0
      %2538 = vmatprep.subr.bf16.mxu0 0
      %2539 = vmatpush1.bf16.msra.mxu0 0
      %2540 = vmatprep.subr.bf16.mxu0 0
      %2541 = vmatpush1.bf16.msra.mxu0 0
      %2542 = vmatprep.subr.bf16.mxu0 0
      %2543 = vmatpush1.bf16.msra.mxu0 0
      %2544 = vmatprep.subr.bf16.mxu0 0
      %2545 = vmatpush1.bf16.msra.mxu0 0
      %2546 = vmatprep.subr.bf16.mxu0 0
      %2547 = vmatpush1.bf16.msra.mxu0 %v2524
      %2548 = vmatprep.subr.bf16.mxu0 0
      %2549 = vmatpush1.bf16.msra.mxu0 %v2523
      %2550 = vmatprep.subr.bf16.mxu0 0
      %2551 = vmatpush1.bf16.msra.mxu0 %v2522
      %2552 = vmatprep.subr.bf16.mxu0 0
      %2553 = vmatpush1.bf16.msra.mxu0 %v2521
      %2554 = vmatprep.subr.bf16.mxu0 0
      %2555 = vmatpush2.bf16.msra.mxu0 0
      %2556 = vmatprep.subr.bf16.mxu0 0
      %2557 = vmatpush2.bf16.msra.mxu0 0
      %2558 = vmatprep.subr.bf16.mxu0 0
      %2559 = vmatpush2.bf16.msra.mxu0 0
      %2560 = vmatprep.subr.bf16.mxu0 0
      %2561 = vmatpush2.bf16.msra.mxu0 0
      %2562 = vmatprep.subr.bf16.mxu0 0
      %2563 = vmatpush2.bf16.msra.mxu0 0
      %2564 = vmatprep.subr.bf16.mxu0 0
      %2565 = vmatpush2.bf16.msra.mxu0 0
      %2566 = vmatprep.subr.bf16.mxu0 0
      %2567 = vmatpush2.bf16.msra.mxu0 0
      %2568 = vmatprep.subr.bf16.mxu0 0
      %2569 = vmatpush2.bf16.msra.mxu0 0
      %2570 = vmatprep.mubr.bf16.mxu0 0
      %2571 = vmatmul.mubr.bf16.gmra.mxu0 %v2530
      %v2572 = vpop.f32.mrf.mxu0
      %v2573 = vadd.f32 0.0, %v2572
      %v2574 = vpop.f32.mrf.mxu0
      %v2575 = vpop.f32.mrf.mxu0
      %v2576 = vadd.f32 0.0, %v2575
      %v2577 = vpop.f32.mrf.mxu0
      %2578 = vmatprep.mubr.bf16.mxu0 0
      %2579 = vmatmul.mubr.bf16.gmra.mxu0 %v2533
      %v2580 = vpop.f32.mrf.mxu0
      %v2581 = vadd.f32 0.0, %v2580
      %v2582 = vpop.f32.mrf.mxu0
      %v2583 = vpop.f32.mrf.mxu0
      %v2584 = vadd.f32 0.0, %v2583
      %v2585 = vpop.f32.mrf.mxu0
      %2586 = vmatprep.mubr.bf16.mxu0 0
      %2587 = vmatmul.mubr.bf16.gmra.mxu0 %v2536
      %v2588 = vpop.f32.mrf.mxu0
      %v2589 = vadd.f32 0.0, %v2588
      %v2590 = vpop.f32.mrf.mxu0
      %v2591 = vpop.f32.mrf.mxu0
      %v2592 = vpop.f32.mrf.mxu0
      %2593 = vdwg.mxu0
      %v2594 = vld [vmem:[%s11] sm:$0xf]
      %v2595 = vld [vmem:[%s11 + $0x4] sm:$0xf]
      %v2596 = vld [vmem:[%s11 + $0x8] sm:$0xf]
      %v2597 = vld [vmem:[%s11 + $0xc] sm:$0xf]
      %v2598 = vld [vmem:[%s11 + $0x10] sm:$0xf]
      %v2599 = vld [vmem:[%s11 + $0x14] sm:$0xf]
      %v2600 = vld [vmem:[%s11 + $0x18] sm:$0xf]
      %v2601 = vld [vmem:[%s11 + $0x1c] sm:$0xf]
      %v2610 = vunpack.c.l.b16 %v2594
      %v2611 = vunpack.c.l.b16 %v2595
      %v2612 = vunpack.c.l.b16 %v2596
      %v2613 = vunpack.c.l.b16 %v2597
      %v2614 = vunpack.c.l.b16 %v2598
      %v2615 = vunpack.c.l.b16 %v2599
      %v2616 = vunpack.c.l.b16 %v2600
      %v2617 = vunpack.c.l.b16 %v2601
      %v2618 = vpack.c.b16 %v2611, %v2610
      %v2619 = vpack.c.b16 %v2613, %v2612
      %v2620 = vpack.c.b16 %v2615, %v2614
      %v2621 = vpack.c.b16 %v2617, %v2616
      %2626 = vmatprep.subr.bf16.mxu0 0
      %2627 = vmatpush1.bf16.msra.mxu0 0
      %2628 = vmatprep.subr.bf16.mxu0 0
      %2629 = vmatpush1.bf16.msra.mxu0 0
      %2630 = vmatprep.subr.bf16.mxu0 0
      %2631 = vmatpush1.bf16.msra.mxu0 0
      %2632 = vmatprep.subr.bf16.mxu0 0
      %2633 = vmatpush1.bf16.msra.mxu0 0
      %2634 = vmatprep.subr.bf16.mxu0 0
      %2635 = vmatpush1.bf16.msra.mxu0 %v2621
      %2636 = vmatprep.subr.bf16.mxu0 0
      %2637 = vmatpush1.bf16.msra.mxu0 %v2620
      %2638 = vmatprep.subr.bf16.mxu0 0
      %2639 = vmatpush1.bf16.msra.mxu0 %v2619
      %2640 = vmatprep.subr.bf16.mxu0 0
      %2641 = vmatpush1.bf16.msra.mxu0 %v2618
      %2642 = vmatprep.subr.bf16.mxu0 0
      %2643 = vmatpush2.bf16.msra.mxu0 0
      %2644 = vmatprep.subr.bf16.mxu0 0
      %2645 = vmatpush2.bf16.msra.mxu0 0
      %2646 = vmatprep.subr.bf16.mxu0 0
      %2647 = vmatpush2.bf16.msra.mxu0 0
      %2648 = vmatprep.subr.bf16.mxu0 0
      %2649 = vmatpush2.bf16.msra.mxu0 0
      %2650 = vmatprep.subr.bf16.mxu0 0
      %2651 = vmatpush2.bf16.msra.mxu0 0
      %2652 = vmatprep.subr.bf16.mxu0 0
      %2653 = vmatpush2.bf16.msra.mxu0 0
      %2654 = vmatprep.subr.bf16.mxu0 0
      %2655 = vmatpush2.bf16.msra.mxu0 0
      %2656 = vmatprep.subr.bf16.mxu0 0
      %2657 = vmatpush2.bf16.msra.mxu0 0
      %2658 = vmatprep.mubr.bf16.mxu0 0
      %2659 = vmatmul.mubr.bf16.gmra.mxu0 %v2530
      %v2660 = vpop.f32.mrf.mxu0
      %v2661 = vadd.f32 0.0, %v2660
      %v2662 = vpop.f32.mrf.mxu0
      %v2663 = vpop.f32.mrf.mxu0
      %v2664 = vadd.f32 0.0, %v2663
      %v2665 = vpop.f32.mrf.mxu0
      %2666 = vmatprep.mubr.bf16.mxu0 0
      %2667 = vmatmul.mubr.bf16.gmra.mxu0 %v2533
      %v2668 = vpop.f32.mrf.mxu0
      %v2669 = vadd.f32 0.0, %v2668
      %v2670 = vpop.f32.mrf.mxu0
      %v2671 = vpop.f32.mrf.mxu0
      %v2672 = vadd.f32 0.0, %v2671
      %v2673 = vpop.f32.mrf.mxu0
      %2674 = vmatprep.mubr.bf16.mxu0 0
      %2675 = vmatmul.mubr.bf16.gmra.mxu0 %v2536
      %v2676 = vpop.f32.mrf.mxu0
      %v2677 = vadd.f32 0.0, %v2676
      %v2678 = vpop.f32.mrf.mxu0
      %v2679 = vpop.f32.mrf.mxu0
      %v2680 = vpop.f32.mrf.mxu0
      %2681 = vdwg.mxu0
      %v2682 = vmax.f32 %v2573, %v2661
      %v2683 = vmax.f32 %v2576, %v2664
      %v2684 = vmax.f32 %v2581, %v2669
      %v2685 = vmax.f32 %v2584, %v2672
      %v2686 = vmax.f32 %v2589, %v2677
      %v2687 = vld [vmem:[%s12] sm:$0xf]
      %v2688 = vld [vmem:[%s12 + $0x4] sm:$0xf]
      %v2689 = vld [vmem:[%s12 + $0x8] sm:$0xf]
      %v2690 = vpack.c.bf16 %v2683, %v2682
      %v2691 = vpack.c.bf16 %v2685, %v2684
      %v2692 = vpack.c.bf16 %v2686, %v2686
      %v2696 = vunpack.c.l.b16 %v2687
      %v2697 = vunpack.c.l.b16 %v2688
      %v2698 = vunpack.c.l.b16 %v2689
      %v2699 = vpack.c.b16 %v2697, %v2696
      %v2700 = vpack.c.b16 %v2698, %v2698
      %vm2701 = vcmask 310272
      %v2703 = vsel %vm2701, %v2699, 0
      %v2706 = vsel %vm2701, %v2700, 0
      %vm2708 = vcmask 1042432
      %v2710 = vsel %vm2708, %v2692, 0
      %2712 = vmatprep.subr.bf16.mxu0 0
      %2713 = vmatpush1.bf16.msra.mxu0 0
      %2714 = vmatprep.subr.bf16.mxu0 0
      %2715 = vmatpush1.bf16.msra.mxu0 0
      %2716 = vmatprep.subr.bf16.mxu0 0
      %2717 = vmatpush1.bf16.msra.mxu0 0
      %2718 = vmatprep.subr.bf16.mxu0 0
      %2719 = vmatpush1.bf16.msra.mxu0 0
      %2720 = vmatprep.subr.bf16.mxu0 0
      %2721 = vmatpush1.bf16.msra.mxu0 0
      %2722 = vmatprep.subr.bf16.mxu0 0
      %2723 = vmatpush1.bf16.msra.mxu0 %v2710
      %2724 = vmatprep.subr.bf16.mxu0 0
      %2725 = vmatpush1.bf16.msra.mxu0 %v2691
      %2726 = vmatprep.subr.bf16.mxu0 0
      %2727 = vmatpush1.bf16.msra.mxu0 %v2690
      %2728 = vmatprep.subr.bf16.mxu0 0
      %2729 = vmatpush2.bf16.msra.mxu0 0
      %2730 = vmatprep.subr.bf16.mxu0 0
      %2731 = vmatpush2.bf16.msra.mxu0 0
      %2732 = vmatprep.subr.bf16.mxu0 0
      %2733 = vmatpush2.bf16.msra.mxu0 0
      %2734 = vmatprep.subr.bf16.mxu0 0
      %2735 = vmatpush2.bf16.msra.mxu0 0
      %2736 = vmatprep.subr.bf16.mxu0 0
      %2737 = vmatpush2.bf16.msra.mxu0 0
      %2738 = vmatprep.subr.bf16.mxu0 0
      %2739 = vmatpush2.bf16.msra.mxu0 0
      %2740 = vmatprep.subr.bf16.mxu0 0
      %2741 = vmatpush2.bf16.msra.mxu0 0
      %2742 = vmatprep.subr.bf16.mxu0 0
      %2743 = vmatpush2.bf16.msra.mxu0 0
      %2744 = vmatprep.mubr.bf16.mxu0 0
      %2745 = vmatmul.mubr.bf16.gmra.mxu0 %v2703
      %v2746 = vpop.f32.mrf.mxu0
      %v2747 = vadd.f32 0.0, %v2746
      %v2748 = vpop.f32.mrf.mxu0
      %v2749 = vpop.f32.mrf.mxu0
      %v2750 = vadd.f32 0.0, %v2749
      %v2751 = vpop.f32.mrf.mxu0
      %2752 = vmatprep.mubr.bf16.mxu0 0
      %2753 = vmatmul.mubr.bf16.gmra.mxu0 %v2706
      %v2754 = vpop.f32.mrf.mxu0
      %v2755 = vadd.f32 0.0, %v2754
      %v2756 = vpop.f32.mrf.mxu0
      %v2757 = vpop.f32.mrf.mxu0
      %v2758 = vpop.f32.mrf.mxu0
      %2759 = vdwg.mxu0
      %v2760 = vld [vmem:[%s13] sm:$0xf]
      %v2761 = vld [vmem:[%s13 + $0x4] sm:$0xf]
      %v2762 = vld [vmem:[%s13 + $0x8] sm:$0xf]
      %v2766 = vunpack.c.l.b16 %v2760
      %v2767 = vunpack.c.l.b16 %v2761
      %v2768 = vunpack.c.l.b16 %v2762
      %v2769 = vpack.c.b16 %v2767, %v2766
      %v2770 = vpack.c.b16 %v2768, %v2768
      %v2772 = vsel %vm2701, %v2769, 0
      %v2775 = vsel %vm2701, %v2770, 0
      %2777 = vmatprep.subr.bf16.mxu0 0
      %2778 = vmatpush1.bf16.msra.mxu0 0
      %2779 = vmatprep.subr.bf16.mxu0 0
      %2780 = vmatpush1.bf16.msra.mxu0 0
      %2781 = vmatprep.subr.bf16.mxu0 0
      %2782 = vmatpush1.bf16.msra.mxu0 0
      %2783 = vmatprep.subr.bf16.mxu0 0
      %2784 = vmatpush1.bf16.msra.mxu0 0
      %2785 = vmatprep.subr.bf16.mxu0 0
      %2786 = vmatpush1.bf16.msra.mxu0 0
      %2787 = vmatprep.subr.bf16.mxu0 0
      %2788 = vmatpush1.bf16.msra.mxu0 %v2710
      %2789 = vmatprep.subr.bf16.mxu0 0
      %2790 = vmatpush1.bf16.msra.mxu0 %v2691
      %2791 = vmatprep.subr.bf16.mxu0 0
      %2792 = vmatpush1.bf16.msra.mxu0 %v2690
      %2793 = vmatprep.subr.bf16.mxu0 0
      %2794 = vmatpush2.bf16.msra.mxu0 0
      %2795 = vmatprep.subr.bf16.mxu0 0
      %2796 = vmatpush2.bf16.msra.mxu0 0
      %2797 = vmatprep.subr.bf16.mxu0 0
      %2798 = vmatpush2.bf16.msra.mxu0 0
      %2799 = vmatprep.subr.bf16.mxu0 0
      %2800 = vmatpush2.bf16.msra.mxu0 0
      %2801 = vmatprep.subr.bf16.mxu0 0
      %2802 = vmatpush2.bf16.msra.mxu0 0
      %2803 = vmatprep.subr.bf16.mxu0 0
      %2804 = vmatpush2.bf16.msra.mxu0 0
      %2805 = vmatprep.subr.bf16.mxu0 0
      %2806 = vmatpush2.bf16.msra.mxu0 0
      %2807 = vmatprep.subr.bf16.mxu0 0
      %2808 = vmatpush2.bf16.msra.mxu0 0
      %2809 = vmatprep.mubr.bf16.mxu0 0
      %2810 = vmatmul.mubr.bf16.gmra.mxu0 %v2772
      %v2811 = vpop.f32.mrf.mxu0
      %v2812 = vadd.f32 0.0, %v2811
      %v2813 = vpop.f32.mrf.mxu0
      %v2814 = vpop.f32.mrf.mxu0
      %v2815 = vadd.f32 0.0, %v2814
      %v2816 = vpop.f32.mrf.mxu0
      %2817 = vmatprep.mubr.bf16.mxu0 0
      %2818 = vmatmul.mubr.bf16.gmra.mxu0 %v2775
      %v2819 = vpop.f32.mrf.mxu0
      %v2820 = vadd.f32 0.0, %v2819
      %v2821 = vpop.f32.mrf.mxu0
      %v2822 = vpop.f32.mrf.mxu0
      %v2823 = vpop.f32.mrf.mxu0
      %2824 = vdwg.mxu0
      %v2825 = vmax.f32 %v2747, %v2812
      %v2826 = vmax.f32 %v2750, %v2815
      %v2827 = vmax.f32 %v2755, %v2820
      %v2828 = vpack.c.bf16 %v2826, %v2825
      %v2829 = vpack.c.bf16 %v2827, %v2827
      %v2830 = vld [vmem:[%s14] sm:$0xf]
      %v2831 = vld [vmem:[%s14 + $0x4] sm:$0xf]
      %v2832 = vld [vmem:[%s14 + $0x8] sm:$0xf]
      %v2833 = vld [vmem:[%s14 + $0xc] sm:$0xf]
      %s2834 = scalar_lea.vmem %s14, 16
      %v2835 = vld [vmem:[%s2834] sm:$0xf]
      %v2836 = vld [vmem:[%s2834 + $0x4] sm:$0xf]
      %v2837 = vld [vmem:[%s2834 + $0x8] sm:$0xf]
      %v2838 = vld [vmem:[%s2834 + $0xc] sm:$0xf]
      %v2840 = vshrl.u32 %v2828, 16
      %v2842 = vshll.u32 %v2828, 16
      %v2844 = vrot.slane %v2842, 1
      %v2845 = vor.u32 %v2840, %v2844
      %v2847 = vshll.u32 %v2829, 16
      %v2849 = vrot.slane %v2847, 1
      %v2850 = vsel %vm954, %v2845, %v2849
      %v2851 = vshrl.u32 %v2829, 16
      %v2853 = vor.u32 %v2851, %v2849
      %v2858 = vunpack.c.l.b16 %v2835
      %v2859 = vunpack.c.l.b16 %v2836
      %v2860 = vunpack.c.l.b16 %v2837
      %v2861 = vunpack.c.l.b16 %v2838
      %v2862 = vpack.c.b16 %v2859, %v2858
      %v2863 = vpack.c.b16 %v2861, %v2860
      %vm2866 = vcmask 261120
      %v2868 = vsel %vm2866, %v2850, 0
      %v2871 = vsel %vm2866, %v2853, 0
      %2873 = vmatprep.subr.bf16.mxu0 0
      %2874 = vmatpush1.bf16.msra.mxu0 0
      %2875 = vmatprep.subr.bf16.mxu0 0
      %2876 = vmatpush1.bf16.msra.mxu0 0
      %2877 = vmatprep.subr.bf16.mxu0 0
      %2878 = vmatpush1.bf16.msra.mxu0 0
      %2879 = vmatprep.subr.bf16.mxu0 0
      %2880 = vmatpush1.bf16.msra.mxu0 0
      %2881 = vmatprep.subr.bf16.mxu0 0
      %2882 = vmatpush1.bf16.msra.mxu0 0
      %2883 = vmatprep.subr.bf16.mxu0 0
      %2884 = vmatpush1.bf16.msra.mxu0 0
      %2885 = vmatprep.subr.bf16.mxu0 0
      %2886 = vmatpush1.bf16.msra.mxu0 %v2863
      %2887 = vmatprep.subr.bf16.mxu0 0
      %2888 = vmatpush1.bf16.msra.mxu0 %v2862
      %2889 = vmatprep.subr.bf16.mxu0 0
      %2890 = vmatpush2.bf16.msra.mxu0 0
      %2891 = vmatprep.subr.bf16.mxu0 0
      %2892 = vmatpush2.bf16.msra.mxu0 0
      %2893 = vmatprep.subr.bf16.mxu0 0
      %2894 = vmatpush2.bf16.msra.mxu0 0
      %2895 = vmatprep.subr.bf16.mxu0 0
      %2896 = vmatpush2.bf16.msra.mxu0 0
      %2897 = vmatprep.subr.bf16.mxu0 0
      %2898 = vmatpush2.bf16.msra.mxu0 0
      %2899 = vmatprep.subr.bf16.mxu0 0
      %2900 = vmatpush2.bf16.msra.mxu0 0
      %2901 = vmatprep.subr.bf16.mxu0 0
      %2902 = vmatpush2.bf16.msra.mxu0 0
      %2903 = vmatprep.subr.bf16.mxu0 0
      %2904 = vmatpush2.bf16.msra.mxu0 0
      %2905 = vmatprep.mubr.bf16.mxu0 0
      %2906 = vmatmul.mubr.bf16.gmra.mxu0 %v2868
      %v2907 = vpop.f32.mrf.mxu0
      %v2908 = vadd.f32 0.0, %v2907
      %v2909 = vpop.f32.mrf.mxu0
      %v2910 = vpop.f32.mrf.mxu0
      %v2911 = vadd.f32 0.0, %v2910
      %v2912 = vpop.f32.mrf.mxu0
      %2913 = vmatprep.mubr.bf16.mxu0 0
      %2914 = vmatmul.mubr.bf16.gmra.mxu0 %v2871
      %v2915 = vpop.f32.mrf.mxu0
      %v2916 = vadd.f32 0.0, %v2915
      %v2917 = vpop.f32.mrf.mxu0
      %v2918 = vpop.f32.mrf.mxu0
      %v2919 = vpop.f32.mrf.mxu0
      %2920 = vdwg.mxu0
      %v2925 = vunpack.c.l.b16 %v2830
      %v2926 = vunpack.c.l.b16 %v2831
      %v2927 = vunpack.c.l.b16 %v2832
      %v2928 = vunpack.c.l.b16 %v2833
      %v2929 = vpack.c.b16 %v2926, %v2925
      %v2930 = vpack.c.b16 %v2928, %v2927
      %v2933 = vsel %vm2866, %v2828, 0
      %v2935 = vsel %vm2866, %v2829, 0
      %2937 = vmatprep.subr.bf16.mxu0 0
      %2938 = vmatpush1.bf16.msra.mxu0 0
      %2939 = vmatprep.subr.bf16.mxu0 0
      %2940 = vmatpush1.bf16.msra.mxu0 0
      %2941 = vmatprep.subr.bf16.mxu0 0
      %2942 = vmatpush1.bf16.msra.mxu0 0
      %2943 = vmatprep.subr.bf16.mxu0 0
      %2944 = vmatpush1.bf16.msra.mxu0 0
      %2945 = vmatprep.subr.bf16.mxu0 0
      %2946 = vmatpush1.bf16.msra.mxu0 0
      %2947 = vmatprep.subr.bf16.mxu0 0
      %2948 = vmatpush1.bf16.msra.mxu0 0
      %2949 = vmatprep.subr.bf16.mxu0 0
      %2950 = vmatpush1.bf16.msra.mxu0 %v2930
      %2951 = vmatprep.subr.bf16.mxu0 0
      %2952 = vmatpush1.bf16.msra.mxu0 %v2929
      %2953 = vmatprep.subr.bf16.mxu0 0
      %2954 = vmatpush2.bf16.msra.mxu0 0
      %2955 = vmatprep.subr.bf16.mxu0 0
      %2956 = vmatpush2.bf16.msra.mxu0 0
      %2957 = vmatprep.subr.bf16.mxu0 0
      %2958 = vmatpush2.bf16.msra.mxu0 0
      %2959 = vmatprep.subr.bf16.mxu0 0
      %2960 = vmatpush2.bf16.msra.mxu0 0
      %2961 = vmatprep.subr.bf16.mxu0 0
      %2962 = vmatpush2.bf16.msra.mxu0 0
      %2963 = vmatprep.subr.bf16.mxu0 0
      %2964 = vmatpush2.bf16.msra.mxu0 0
      %2965 = vmatprep.subr.bf16.mxu0 0
      %2966 = vmatpush2.bf16.msra.mxu0 0
      %2967 = vmatprep.subr.bf16.mxu0 0
      %2968 = vmatpush2.bf16.msra.mxu0 0
      %2969 = vmatprep.mubr.bf16.mxu0 0
      %2970 = vmatmul.mubr.bf16.gmra.mxu0 %v2933
      %v2971 = vpop.f32.mrf.mxu0
      %v2972 = vadd.f32 %v2908, %v2971
      %v2973 = vpop.f32.mrf.mxu0
      %v2974 = vpop.f32.mrf.mxu0
      %v2975 = vadd.f32 %v2911, %v2974
      %v2976 = vpop.f32.mrf.mxu0
      %2977 = vmatprep.mubr.bf16.mxu0 0
      %2978 = vmatmul.mubr.bf16.gmra.mxu0 %v2935
      %v2979 = vpop.f32.mrf.mxu0
      %v2980 = vadd.f32 %v2916, %v2979
      %v2981 = vpop.f32.mrf.mxu0
      %v2982 = vpop.f32.mrf.mxu0
      %v2983 = vpop.f32.mrf.mxu0
      %2984 = vdwg.mxu0
      %s2985 = scalar_lea.vmem %s14, 32
      %v2986 = vld [vmem:[%s2985] sm:$0xf]
      %v2987 = vld [vmem:[%s2985 + $0x4] sm:$0xf]
      %v2988 = vld [vmem:[%s2985 + $0x8] sm:$0xf]
      %v2989 = vld [vmem:[%s2985 + $0xc] sm:$0xf]
      %v2992 = vrot.slane %v2828, 1
      %v2993 = vrot.slane %v2829, 1
      %v2994 = vsel %vm1227, %v2992, %v2993
      %v2999 = vunpack.c.l.b16 %v2986
      %v3000 = vunpack.c.l.b16 %v2987
      %v3001 = vunpack.c.l.b16 %v2988
      %v3002 = vunpack.c.l.b16 %v2989
      %v3003 = vpack.c.b16 %v3000, %v2999
      %v3004 = vpack.c.b16 %v3002, %v3001
      %v3008 = vsel %vm2866, %v2994, 0
      %v3011 = vsel %vm2866, %v2993, 0
      %3013 = vmatprep.subr.bf16.mxu0 0
      %3014 = vmatpush1.bf16.msra.mxu0 0
      %3015 = vmatprep.subr.bf16.mxu0 0
      %3016 = vmatpush1.bf16.msra.mxu0 0
      %3017 = vmatprep.subr.bf16.mxu0 0
      %3018 = vmatpush1.bf16.msra.mxu0 0
      %3019 = vmatprep.subr.bf16.mxu0 0
      %3020 = vmatpush1.bf16.msra.mxu0 0
      %3021 = vmatprep.subr.bf16.mxu0 0
      %3022 = vmatpush1.bf16.msra.mxu0 0
      %3023 = vmatprep.subr.bf16.mxu0 0
      %3024 = vmatpush1.bf16.msra.mxu0 0
      %3025 = vmatprep.subr.bf16.mxu0 0
      %3026 = vmatpush1.bf16.msra.mxu0 %v3004
      %3027 = vmatprep.subr.bf16.mxu0 0
      %3028 = vmatpush1.bf16.msra.mxu0 %v3003
      %3029 = vmatprep.subr.bf16.mxu0 0
      %3030 = vmatpush2.bf16.msra.mxu0 0
      %3031 = vmatprep.subr.bf16.mxu0 0
      %3032 = vmatpush2.bf16.msra.mxu0 0
      %3033 = vmatprep.subr.bf16.mxu0 0
      %3034 = vmatpush2.bf16.msra.mxu0 0
      %3035 = vmatprep.subr.bf16.mxu0 0
      %3036 = vmatpush2.bf16.msra.mxu0 0
      %3037 = vmatprep.subr.bf16.mxu0 0
      %3038 = vmatpush2.bf16.msra.mxu0 0
      %3039 = vmatprep.subr.bf16.mxu0 0
      %3040 = vmatpush2.bf16.msra.mxu0 0
      %3041 = vmatprep.subr.bf16.mxu0 0
      %3042 = vmatpush2.bf16.msra.mxu0 0
      %3043 = vmatprep.subr.bf16.mxu0 0
      %3044 = vmatpush2.bf16.msra.mxu0 0
      %3045 = vmatprep.mubr.bf16.mxu0 0
      %3046 = vmatmul.mubr.bf16.gmra.mxu0 %v3008
      %v3047 = vpop.f32.mrf.mxu0
      %v3048 = vadd.f32 0.0, %v3047
      %v3049 = vpop.f32.mrf.mxu0
      %v3050 = vpop.f32.mrf.mxu0
      %v3051 = vadd.f32 0.0, %v3050
      %v3052 = vpop.f32.mrf.mxu0
      %3053 = vmatprep.mubr.bf16.mxu0 0
      %3054 = vmatmul.mubr.bf16.gmra.mxu0 %v3011
      %v3055 = vpop.f32.mrf.mxu0
      %v3056 = vadd.f32 0.0, %v3055
      %v3057 = vpop.f32.mrf.mxu0
      %v3058 = vpop.f32.mrf.mxu0
      %v3059 = vpop.f32.mrf.mxu0
      %3060 = vdwg.mxu0
      %v3061 = vadd.f32 %v2972, %v3048
      %v3062 = vadd.f32 %v2975, %v3051
      %v3063 = vadd.f32 %v2980, %v3056
      %v3064 = vld [vmem:[%s15] sm:$0x1]
      %v3066 = vlaneseq
      %v3067 = vshrl.u32 %v3066, 7
      %v3068 = vsub.s32 0, %v3067
      %v3069 = vrot.slane %v3064, %v3068
      %v3071 = vadd.f32 %v3061, %v3069
      %v3072 = vadd.f32 %v3062, %v3069
      %v3073 = vadd.f32 %v3063, %v3069
      %v3074 = vmax.f32 %v3071, 0.0
      %v3075 = vmax.f32 %v3072, 0.0
      %v3076 = vmax.f32 %v3073, 0.0
      %v3077 = vld [vmem:[%s16] sm:$0xf]
      %v3078 = vld [vmem:[%s16 + $0x4] sm:$0xf]
      %v3079 = vld [vmem:[%s16 + $0x8] sm:$0xf]
      %v3080 = vld [vmem:[%s16 + $0xc] sm:$0xf]
      %v3081 = vpack.c.bf16 %v3075, %v3074
      %v3082 = vpack.c.bf16 %v3076, %v3076
      %v3087 = vunpack.c.l.b16 %v3077
      %v3088 = vunpack.c.l.b16 %v3078
      %v3089 = vunpack.c.l.b16 %v3079
      %v3090 = vunpack.c.l.b16 %v3080
      %v3091 = vpack.c.b16 %v3088, %v3087
      %v3092 = vpack.c.b16 %v3090, %v3089
      %vm3093 = vcmask 179200
      %v3095 = vsel %vm3093, %v3091, 0
      %v3098 = vsel %vm3093, %v3092, 0
      %v3101 = vsel %vm2708, %v3082, 0
      %3103 = vmatprep.subr.bf16.mxu0 0
      %3104 = vmatpush1.bf16.msra.mxu0 0
      %3105 = vmatprep.subr.bf16.mxu0 0
      %3106 = vmatpush1.bf16.msra.mxu0 0
      %3107 = vmatprep.subr.bf16.mxu0 0
      %3108 = vmatpush1.bf16.msra.mxu0 0
      %3109 = vmatprep.subr.bf16.mxu0 0
      %3110 = vmatpush1.bf16.msra.mxu0 0
      %3111 = vmatprep.subr.bf16.mxu0 0
      %3112 = vmatpush1.bf16.msra.mxu0 0
      %3113 = vmatprep.subr.bf16.mxu0 0
      %3114 = vmatpush1.bf16.msra.mxu0 0
      %3115 = vmatprep.subr.bf16.mxu0 0
      %3116 = vmatpush1.bf16.msra.mxu0 %v3101
      %3117 = vmatprep.subr.bf16.mxu0 0
      %3118 = vmatpush1.bf16.msra.mxu0 %v3081
      %3119 = vmatprep.subr.bf16.mxu0 0
      %3120 = vmatpush2.bf16.msra.mxu0 0
      %3121 = vmatprep.subr.bf16.mxu0 0
      %3122 = vmatpush2.bf16.msra.mxu0 0
      %3123 = vmatprep.subr.bf16.mxu0 0
      %3124 = vmatpush2.bf16.msra.mxu0 0
      %3125 = vmatprep.subr.bf16.mxu0 0
      %3126 = vmatpush2.bf16.msra.mxu0 0
      %3127 = vmatprep.subr.bf16.mxu0 0
      %3128 = vmatpush2.bf16.msra.mxu0 0
      %3129 = vmatprep.subr.bf16.mxu0 0
      %3130 = vmatpush2.bf16.msra.mxu0 0
      %3131 = vmatprep.subr.bf16.mxu0 0
      %3132 = vmatpush2.bf16.msra.mxu0 0
      %3133 = vmatprep.subr.bf16.mxu0 0
      %3134 = vmatpush2.bf16.msra.mxu0 0
      %3135 = vmatprep.mubr.bf16.mxu0 0
      %3136 = vmatmul.mubr.bf16.gmra.mxu0 %v3095
      %v3137 = vpop.f32.mrf.mxu0
      %v3138 = vadd.f32 0.0, %v3137
      %v3139 = vpop.f32.mrf.mxu0
      %v3140 = vpop.f32.mrf.mxu0
      %v3141 = vadd.f32 0.0, %v3140
      %v3142 = vpop.f32.mrf.mxu0
      %3143 = vmatprep.mubr.bf16.mxu0 0
      %3144 = vmatmul.mubr.bf16.gmra.mxu0 %v3098
      %v3145 = vpop.f32.mrf.mxu0
      %v3146 = vadd.f32 0.0, %v3145
      %v3147 = vpop.f32.mrf.mxu0
      %v3148 = vpop.f32.mrf.mxu0
      %v3149 = vadd.f32 0.0, %v3148
      %v3150 = vpop.f32.mrf.mxu0
      %3151 = vdwg.mxu0
      %v3152 = vpack.c.bf16 %v3141, %v3138
      %v3153 = vpack.c.bf16 %v3149, %v3146
      %v3154 = vld [vmem:[%s17] sm:$0x3]
      %s3155 = scalar_lea.vmem %s17, 2
      %v3156 = vld [vmem:[%s3155] sm:$0x3]
      %v3158 = vshrl.u32 %v3152, 16
      %v3160 = vshll.u32 %v3152, 16
      %v3162 = vrot.slane %v3160, 1
      %v3163 = vor.u32 %v3158, %v3162
      %v3165 = vshll.u32 %v3153, 16
      %v3167 = vrot.slane %v3165, 1
      %v3168 = vsel %vm954, %v3163, %v3167
      %v3169 = vshrl.u32 %v3153, 16
      %v3171 = vor.u32 %v3169, %v3167
      %vm3172 = vcmask 31744
      %v3174 = vsel %vm3172, %v3168, 0
      %v3177 = vsel %vm3172, %v3171, 0
      %vm3179 = vcmask 1041408
      %v3181 = vsel %vm3179, %v3156, 0
      %3183 = vmatprep.subr.bf16.mxu0 0
      %3184 = vmatpush1.bf16.msra.mxu0 0
      %3185 = vmatprep.subr.bf16.mxu0 0
      %3186 = vmatpush1.bf16.msra.mxu0 0
      %3187 = vmatprep.subr.bf16.mxu0 0
      %3188 = vmatpush1.bf16.msra.mxu0 0
      %3189 = vmatprep.subr.bf16.mxu0 0
      %3190 = vmatpush1.bf16.msra.mxu0 0
      %3191 = vmatprep.subr.bf16.mxu0 0
      %3192 = vmatpush1.bf16.msra.mxu0 0
      %3193 = vmatprep.subr.bf16.mxu0 0
      %3194 = vmatpush1.bf16.msra.mxu0 0
      %3195 = vmatprep.subr.bf16.mxu0 0
      %3196 = vmatpush1.bf16.msra.mxu0 0
      %3197 = vmatprep.subr.bf16.mxu0 0
      %3198 = vmatpush1.bf16.msra.mxu0 %v3181
      %3199 = vmatprep.subr.bf16.mxu0 0
      %3200 = vmatpush2.bf16.msra.mxu0 0
      %3201 = vmatprep.subr.bf16.mxu0 0
      %3202 = vmatpush2.bf16.msra.mxu0 0
      %3203 = vmatprep.subr.bf16.mxu0 0
      %3204 = vmatpush2.bf16.msra.mxu0 0
      %3205 = vmatprep.subr.bf16.mxu0 0
      %3206 = vmatpush2.bf16.msra.mxu0 0
      %3207 = vmatprep.subr.bf16.mxu0 0
      %3208 = vmatpush2.bf16.msra.mxu0 0
      %3209 = vmatprep.subr.bf16.mxu0 0
      %3210 = vmatpush2.bf16.msra.mxu0 0
      %3211 = vmatprep.subr.bf16.mxu0 0
      %3212 = vmatpush2.bf16.msra.mxu0 0
      %3213 = vmatprep.subr.bf16.mxu0 0
      %3214 = vmatpush2.bf16.msra.mxu0 0
      %3215 = vmatprep.mubr.bf16.mxu0 0
      %3216 = vmatmul.mubr.bf16.gmra.mxu0 %v3174
      %v3217 = vpop.f32.mrf.mxu0
      %v3218 = vadd.f32 0.0, %v3217
      %v3219 = vpop.f32.mrf.mxu0
      %v3220 = vpop.f32.mrf.mxu0
      %v3221 = vadd.f32 0.0, %v3220
      %v3222 = vpop.f32.mrf.mxu0
      %3223 = vmatprep.mubr.bf16.mxu0 0
      %3224 = vmatmul.mubr.bf16.gmra.mxu0 %v3177
      %v3225 = vpop.f32.mrf.mxu0
      %v3226 = vadd.f32 0.0, %v3225
      %v3227 = vpop.f32.mrf.mxu0
      %v3228 = vpop.f32.mrf.mxu0
      %v3229 = vadd.f32 0.0, %v3228
      %v3230 = vpop.f32.mrf.mxu0
      %3231 = vdwg.mxu0
      %v3232 = vsel %vm3172, %v3152, 0
      %v3234 = vsel %vm3172, %v3153, 0
      %v3237 = vsel %vm3179, %v3154, 0
      %3239 = vmatprep.subr.bf16.mxu0 0
      %3240 = vmatpush1.bf16.msra.mxu0 0
      %3241 = vmatprep.subr.bf16.mxu0 0
      %3242 = vmatpush1.bf16.msra.mxu0 0
      %3243 = vmatprep.subr.bf16.mxu0 0
      %3244 = vmatpush1.bf16.msra.mxu0 0
      %3245 = vmatprep.subr.bf16.mxu0 0
      %3246 = vmatpush1.bf16.msra.mxu0 0
      %3247 = vmatprep.subr.bf16.mxu0 0
      %3248 = vmatpush1.bf16.msra.mxu0 0
      %3249 = vmatprep.subr.bf16.mxu0 0
      %3250 = vmatpush1.bf16.msra.mxu0 0
      %3251 = vmatprep.subr.bf16.mxu0 0
      %3252 = vmatpush1.bf16.msra.mxu0 0
      %3253 = vmatprep.subr.bf16.mxu0 0
      %3254 = vmatpush1.bf16.msra.mxu0 %v3237
      %3255 = vmatprep.subr.bf16.mxu0 0
      %3256 = vmatpush2.bf16.msra.mxu0 0
      %3257 = vmatprep.subr.bf16.mxu0 0
      %3258 = vmatpush2.bf16.msra.mxu0 0
      %3259 = vmatprep.subr.bf16.mxu0 0
      %3260 = vmatpush2.bf16.msra.mxu0 0
      %3261 = vmatprep.subr.bf16.mxu0 0
      %3262 = vmatpush2.bf16.msra.mxu0 0
      %3263 = vmatprep.subr.bf16.mxu0 0
      %3264 = vmatpush2.bf16.msra.mxu0 0
      %3265 = vmatprep.subr.bf16.mxu0 0
      %3266 = vmatpush2.bf16.msra.mxu0 0
      %3267 = vmatprep.subr.bf16.mxu0 0
      %3268 = vmatpush2.bf16.msra.mxu0 0
      %3269 = vmatprep.subr.bf16.mxu0 0
      %3270 = vmatpush2.bf16.msra.mxu0 0
      %3271 = vmatprep.mubr.bf16.mxu0 0
      %3272 = vmatmul.mubr.bf16.gmra.mxu0 %v3232
      %v3273 = vpop.f32.mrf.mxu0
      %v3274 = vadd.f32 %v3218, %v3273
      %v3275 = vpop.f32.mrf.mxu0
      %v3276 = vpop.f32.mrf.mxu0
      %v3277 = vadd.f32 %v3221, %v3276
      %v3278 = vpop.f32.mrf.mxu0
      %3279 = vmatprep.mubr.bf16.mxu0 0
      %3280 = vmatmul.mubr.bf16.gmra.mxu0 %v3234
      %v3281 = vpop.f32.mrf.mxu0
      %v3282 = vadd.f32 %v3226, %v3281
      %v3283 = vpop.f32.mrf.mxu0
      %v3284 = vpop.f32.mrf.mxu0
      %v3285 = vadd.f32 %v3229, %v3284
      %v3286 = vpop.f32.mrf.mxu0
      %3287 = vdwg.mxu0
      %s3288 = scalar_lea.vmem %s17, 4
      %v3289 = vld [vmem:[%s3288] sm:$0x3]
      %v3292 = vrot.slane %v3152, 1
      %v3293 = vrot.slane %v3153, 1
      %v3294 = vsel %vm1227, %v3292, %v3293
      %v3296 = vsel %vm3172, %v3294, 0
      %v3299 = vsel %vm3172, %v3293, 0
      %v3302 = vsel %vm3179, %v3289, 0
      %3304 = vmatprep.subr.bf16.mxu0 0
      %3305 = vmatpush1.bf16.msra.mxu0 0
      %3306 = vmatprep.subr.bf16.mxu0 0
      %3307 = vmatpush1.bf16.msra.mxu0 0
      %3308 = vmatprep.subr.bf16.mxu0 0
      %3309 = vmatpush1.bf16.msra.mxu0 0
      %3310 = vmatprep.subr.bf16.mxu0 0
      %3311 = vmatpush1.bf16.msra.mxu0 0
      %3312 = vmatprep.subr.bf16.mxu0 0
      %3313 = vmatpush1.bf16.msra.mxu0 0
      %3314 = vmatprep.subr.bf16.mxu0 0
      %3315 = vmatpush1.bf16.msra.mxu0 0
      %3316 = vmatprep.subr.bf16.mxu0 0
      %3317 = vmatpush1.bf16.msra.mxu0 0
      %3318 = vmatprep.subr.bf16.mxu0 0
      %3319 = vmatpush1.bf16.msra.mxu0 %v3302
      %3320 = vmatprep.subr.bf16.mxu0 0
      %3321 = vmatpush2.bf16.msra.mxu0 0
      %3322 = vmatprep.subr.bf16.mxu0 0
      %3323 = vmatpush2.bf16.msra.mxu0 0
      %3324 = vmatprep.subr.bf16.mxu0 0
      %3325 = vmatpush2.bf16.msra.mxu0 0
      %3326 = vmatprep.subr.bf16.mxu0 0
      %3327 = vmatpush2.bf16.msra.mxu0 0
      %3328 = vmatprep.subr.bf16.mxu0 0
      %3329 = vmatpush2.bf16.msra.mxu0 0
      %3330 = vmatprep.subr.bf16.mxu0 0
      %3331 = vmatpush2.bf16.msra.mxu0 0
      %3332 = vmatprep.subr.bf16.mxu0 0
      %3333 = vmatpush2.bf16.msra.mxu0 0
      %3334 = vmatprep.subr.bf16.mxu0 0
      %3335 = vmatpush2.bf16.msra.mxu0 0
      %3336 = vmatprep.mubr.bf16.mxu0 0
      %3337 = vmatmul.mubr.bf16.gmra.mxu0 %v3296
      %v3338 = vpop.f32.mrf.mxu0
      %v3339 = vadd.f32 0.0, %v3338
      %v3340 = vpop.f32.mrf.mxu0
      %v3341 = vpop.f32.mrf.mxu0
      %v3342 = vadd.f32 0.0, %v3341
      %v3343 = vpop.f32.mrf.mxu0
      %3344 = vmatprep.mubr.bf16.mxu0 0
      %3345 = vmatmul.mubr.bf16.gmra.mxu0 %v3299
      %v3346 = vpop.f32.mrf.mxu0
      %v3347 = vadd.f32 0.0, %v3346
      %v3348 = vpop.f32.mrf.mxu0
      %v3349 = vpop.f32.mrf.mxu0
      %v3350 = vadd.f32 0.0, %v3349
      %v3351 = vpop.f32.mrf.mxu0
      %3352 = vdwg.mxu0
      %v3353 = vadd.f32 %v3274, %v3339
      %v3354 = vadd.f32 %v3277, %v3342
      %v3355 = vadd.f32 %v3282, %v3347
      %v3356 = vadd.f32 %v3285, %v3350
      %s3357 = scalar_lea.vmem %s17, 6
      %v3358 = vld [vmem:[%s3357] sm:$0x3]
      %v3359 = vrot.slane %v3158, 1
      %v3360 = vrot.slane %v3160, 2
      %v3361 = vor.u32 %v3359, %v3360
      %v3362 = vrot.slane %v3169, 1
      %v3363 = vrot.slane %v3165, 2
      %v3364 = vor.u32 %v3362, %v3363
      %v3365 = vsel %vm1368, %v3361, %v3364
      %v3367 = vsel %vm3172, %v3365, 0
      %v3370 = vsel %vm3172, %v3364, 0
      %v3373 = vsel %vm3179, %v3358, 0
      %3375 = vmatprep.subr.bf16.mxu0 0
      %3376 = vmatpush1.bf16.msra.mxu0 0
      %3377 = vmatprep.subr.bf16.mxu0 0
      %3378 = vmatpush1.bf16.msra.mxu0 0
      %3379 = vmatprep.subr.bf16.mxu0 0
      %3380 = vmatpush1.bf16.msra.mxu0 0
      %3381 = vmatprep.subr.bf16.mxu0 0
      %3382 = vmatpush1.bf16.msra.mxu0 0
      %3383 = vmatprep.subr.bf16.mxu0 0
      %3384 = vmatpush1.bf16.msra.mxu0 0
      %3385 = vmatprep.subr.bf16.mxu0 0
      %3386 = vmatpush1.bf16.msra.mxu0 0
      %3387 = vmatprep.subr.bf16.mxu0 0
      %3388 = vmatpush1.bf16.msra.mxu0 0
      %3389 = vmatprep.subr.bf16.mxu0 0
      %3390 = vmatpush1.bf16.msra.mxu0 %v3373
      %3391 = vmatprep.subr.bf16.mxu0 0
      %3392 = vmatpush2.bf16.msra.mxu0 0
      %3393 = vmatprep.subr.bf16.mxu0 0
      %3394 = vmatpush2.bf16.msra.mxu0 0
      %3395 = vmatprep.subr.bf16.mxu0 0
      %3396 = vmatpush2.bf16.msra.mxu0 0
      %3397 = vmatprep.subr.bf16.mxu0 0
      %3398 = vmatpush2.bf16.msra.mxu0 0
      %3399 = vmatprep.subr.bf16.mxu0 0
      %3400 = vmatpush2.bf16.msra.mxu0 0
      %3401 = vmatprep.subr.bf16.mxu0 0
      %3402 = vmatpush2.bf16.msra.mxu0 0
      %3403 = vmatprep.subr.bf16.mxu0 0
      %3404 = vmatpush2.bf16.msra.mxu0 0
      %3405 = vmatprep.subr.bf16.mxu0 0
      %3406 = vmatpush2.bf16.msra.mxu0 0
      %3407 = vmatprep.mubr.bf16.mxu0 0
      %3408 = vmatmul.mubr.bf16.gmra.mxu0 %v3367
      %v3409 = vpop.f32.mrf.mxu0
      %v3410 = vadd.f32 0.0, %v3409
      %v3411 = vpop.f32.mrf.mxu0
      %v3412 = vpop.f32.mrf.mxu0
      %v3413 = vadd.f32 0.0, %v3412
      %v3414 = vpop.f32.mrf.mxu0
      %3415 = vmatprep.mubr.bf16.mxu0 0
      %3416 = vmatmul.mubr.bf16.gmra.mxu0 %v3370
      %v3417 = vpop.f32.mrf.mxu0
      %v3418 = vadd.f32 0.0, %v3417
      %v3419 = vpop.f32.mrf.mxu0
      %v3420 = vpop.f32.mrf.mxu0
      %v3421 = vadd.f32 0.0, %v3420
      %v3422 = vpop.f32.mrf.mxu0
      %3423 = vdwg.mxu0
      %v3424 = vadd.f32 %v3353, %v3410
      %v3425 = vadd.f32 %v3354, %v3413
      %v3426 = vadd.f32 %v3355, %v3418
      %v3427 = vadd.f32 %v3356, %v3421
      %s3428 = scalar_lea.vmem %s17, 8
      %v3429 = vld [vmem:[%s3428] sm:$0x3]
      %v3430 = vrot.slane %v3152, 2
      %v3431 = vrot.slane %v3153, 2
      %v3432 = vsel %vm1519, %v3430, %v3431
      %v3434 = vsel %vm3172, %v3432, 0
      %v3437 = vsel %vm3172, %v3431, 0
      %v3440 = vsel %vm3179, %v3429, 0
      %3442 = vmatprep.subr.bf16.mxu0 0
      %3443 = vmatpush1.bf16.msra.mxu0 0
      %3444 = vmatprep.subr.bf16.mxu0 0
      %3445 = vmatpush1.bf16.msra.mxu0 0
      %3446 = vmatprep.subr.bf16.mxu0 0
      %3447 = vmatpush1.bf16.msra.mxu0 0
      %3448 = vmatprep.subr.bf16.mxu0 0
      %3449 = vmatpush1.bf16.msra.mxu0 0
      %3450 = vmatprep.subr.bf16.mxu0 0
      %3451 = vmatpush1.bf16.msra.mxu0 0
      %3452 = vmatprep.subr.bf16.mxu0 0
      %3453 = vmatpush1.bf16.msra.mxu0 0
      %3454 = vmatprep.subr.bf16.mxu0 0
      %3455 = vmatpush1.bf16.msra.mxu0 0
      %3456 = vmatprep.subr.bf16.mxu0 0
      %3457 = vmatpush1.bf16.msra.mxu0 %v3440
      %3458 = vmatprep.subr.bf16.mxu0 0
      %3459 = vmatpush2.bf16.msra.mxu0 0
      %3460 = vmatprep.subr.bf16.mxu0 0
      %3461 = vmatpush2.bf16.msra.mxu0 0
      %3462 = vmatprep.subr.bf16.mxu0 0
      %3463 = vmatpush2.bf16.msra.mxu0 0
      %3464 = vmatprep.subr.bf16.mxu0 0
      %3465 = vmatpush2.bf16.msra.mxu0 0
      %3466 = vmatprep.subr.bf16.mxu0 0
      %3467 = vmatpush2.bf16.msra.mxu0 0
      %3468 = vmatprep.subr.bf16.mxu0 0
      %3469 = vmatpush2.bf16.msra.mxu0 0
      %3470 = vmatprep.subr.bf16.mxu0 0
      %3471 = vmatpush2.bf16.msra.mxu0 0
      %3472 = vmatprep.subr.bf16.mxu0 0
      %3473 = vmatpush2.bf16.msra.mxu0 0
      %3474 = vmatprep.mubr.bf16.mxu0 0
      %3475 = vmatmul.mubr.bf16.gmra.mxu0 %v3434
      %v3476 = vpop.f32.mrf.mxu0
      %v3477 = vadd.f32 0.0, %v3476
      %v3478 = vpop.f32.mrf.mxu0
      %v3479 = vpop.f32.mrf.mxu0
      %v3480 = vadd.f32 0.0, %v3479
      %v3481 = vpop.f32.mrf.mxu0
      %3482 = vmatprep.mubr.bf16.mxu0 0
      %3483 = vmatmul.mubr.bf16.gmra.mxu0 %v3437
      %v3484 = vpop.f32.mrf.mxu0
      %v3485 = vadd.f32 0.0, %v3484
      %v3486 = vpop.f32.mrf.mxu0
      %v3487 = vpop.f32.mrf.mxu0
      %v3488 = vadd.f32 0.0, %v3487
      %v3489 = vpop.f32.mrf.mxu0
      %3490 = vdwg.mxu0
      %v3491 = vadd.f32 %v3424, %v3477
      %v3492 = vadd.f32 %v3425, %v3480
      %v3493 = vadd.f32 %v3426, %v3485
      %v3494 = vadd.f32 %v3427, %v3488
      %v3495 = vld [vmem:[%s18] sm:$0x1]
      %v3497 = vlaneseq
      %v3498 = vshrl.u32 %v3497, 7
      %v3499 = vsub.s32 0, %v3498
      %v3500 = vrot.slane %v3495, %v3499
      %v3502 = vadd.f32 %v3491, %v3500
      %v3503 = vadd.f32 %v3492, %v3500
      %v3504 = vadd.f32 %v3493, %v3500
      %v3505 = vadd.f32 %v3494, %v3500
      %v3506 = vmax.f32 %v3502, 0.0
      %v3507 = vmax.f32 %v3503, 0.0
      %v3508 = vmax.f32 %v3504, 0.0
      %v3509 = vmax.f32 %v3505, 0.0
      %v3510 = vld [vmem:[%s19] sm:$0xf]
      %v3511 = vld [vmem:[%s19 + $0x4] sm:$0xf]
      %v3512 = vld [vmem:[%s19 + $0x8] sm:$0xf]
      %v3513 = vld [vmem:[%s19 + $0xc] sm:$0xf]
      %v3514 = vld [vmem:[%s19 + $0x10] sm:$0xf]
      %v3515 = vpack.c.bf16 %v3507, %v3506
      %v3516 = vpack.c.bf16 %v3509, %v3508
      %v3522 = vunpack.c.l.b16 %v3510
      %v3523 = vunpack.c.l.b16 %v3511
      %v3524 = vunpack.c.l.b16 %v3512
      %v3525 = vunpack.c.l.b16 %v3513
      %v3526 = vunpack.c.l.b16 %v3514
      %v3527 = vpack.c.b16 %v3523, %v3522
      %v3528 = vpack.c.b16 %v3525, %v3524
      %v3529 = vpack.c.b16 %v3526, %v3526
      %vm3530 = vcmask 228352
      %v3532 = vsel %vm3530, %v3527, 0
      %v3535 = vsel %vm3530, %v3528, 0
      %v3538 = vsel %vm3530, %v3529, 0
      %v3541 = vsel %vm2000, %v3516, 0
      %3543 = vmatprep.subr.bf16.mxu0 0
      %3544 = vmatpush1.bf16.msra.mxu0 0
      %3545 = vmatprep.subr.bf16.mxu0 0
      %3546 = vmatpush1.bf16.msra.mxu0 0
      %3547 = vmatprep.subr.bf16.mxu0 0
      %3548 = vmatpush1.bf16.msra.mxu0 0
      %3549 = vmatprep.subr.bf16.mxu0 0
      %3550 = vmatpush1.bf16.msra.mxu0 0
      %3551 = vmatprep.subr.bf16.mxu0 0
      %3552 = vmatpush1.bf16.msra.mxu0 0
      %3553 = vmatprep.subr.bf16.mxu0 0
      %3554 = vmatpush1.bf16.msra.mxu0 0
      %3555 = vmatprep.subr.bf16.mxu0 0
      %3556 = vmatpush1.bf16.msra.mxu0 %v3541
      %3557 = vmatprep.subr.bf16.mxu0 0
      %3558 = vmatpush1.bf16.msra.mxu0 %v3515
      %3559 = vmatprep.subr.bf16.mxu0 0
      %3560 = vmatpush2.bf16.msra.mxu0 0
      %3561 = vmatprep.subr.bf16.mxu0 0
      %3562 = vmatpush2.bf16.msra.mxu0 0
      %3563 = vmatprep.subr.bf16.mxu0 0
      %3564 = vmatpush2.bf16.msra.mxu0 0
      %3565 = vmatprep.subr.bf16.mxu0 0
      %3566 = vmatpush2.bf16.msra.mxu0 0
      %3567 = vmatprep.subr.bf16.mxu0 0
      %3568 = vmatpush2.bf16.msra.mxu0 0
      %3569 = vmatprep.subr.bf16.mxu0 0
      %3570 = vmatpush2.bf16.msra.mxu0 0
      %3571 = vmatprep.subr.bf16.mxu0 0
      %3572 = vmatpush2.bf16.msra.mxu0 0
      %3573 = vmatprep.subr.bf16.mxu0 0
      %3574 = vmatpush2.bf16.msra.mxu0 0
      %3575 = vmatprep.mubr.bf16.mxu0 0
      %3576 = vmatmul.mubr.bf16.gmra.mxu0 %v3532
      %v3577 = vpop.f32.mrf.mxu0
      %v3578 = vadd.f32 0.0, %v3577
      %v3579 = vpop.f32.mrf.mxu0
      %v3580 = vpop.f32.mrf.mxu0
      %v3581 = vadd.f32 0.0, %v3580
      %v3582 = vpop.f32.mrf.mxu0
      %3583 = vmatprep.mubr.bf16.mxu0 0
      %3584 = vmatmul.mubr.bf16.gmra.mxu0 %v3535
      %v3585 = vpop.f32.mrf.mxu0
      %v3586 = vadd.f32 0.0, %v3585
      %v3587 = vpop.f32.mrf.mxu0
      %v3588 = vpop.f32.mrf.mxu0
      %v3589 = vadd.f32 0.0, %v3588
      %v3590 = vpop.f32.mrf.mxu0
      %3591 = vmatprep.mubr.bf16.mxu0 0
      %3592 = vmatmul.mubr.bf16.gmra.mxu0 %v3538
      %v3593 = vpop.f32.mrf.mxu0
      %v3594 = vadd.f32 0.0, %v3593
      %v3595 = vpop.f32.mrf.mxu0
      %v3596 = vpop.f32.mrf.mxu0
      %v3597 = vpop.f32.mrf.mxu0
      %3598 = vdwg.mxu0
      %v3599 = vpack.c.bf16 %v3581, %v3578
      %v3600 = vpack.c.bf16 %v3589, %v3586
      %v3601 = vpack.c.bf16 %v3594, %v3594
      %v3602 = vld [vmem:[%s20] sm:$0xf]
      %v3603 = vld [vmem:[%s20 + $0x4] sm:$0xf]
      %v3604 = vld [vmem:[%s20 + $0x8] sm:$0xf]
      %v3605 = vld [vmem:[%s20 + $0xc] sm:$0xf]
      %s3606 = scalar_lea.vmem %s20, 16
      %v3607 = vld [vmem:[%s3606] sm:$0xf]
      %v3608 = vld [vmem:[%s3606 + $0x4] sm:$0xf]
      %v3609 = vld [vmem:[%s3606 + $0x8] sm:$0xf]
      %v3610 = vld [vmem:[%s3606 + $0xc] sm:$0xf]
      %v3612 = vshrl.u32 %v3599, 16
      %v3614 = vshll.u32 %v3599, 16
      %v3616 = vrot.slane %v3614, 1
      %v3617 = vor.u32 %v3612, %v3616
      %v3619 = vshll.u32 %v3600, 16
      %v3621 = vrot.slane %v3619, 1
      %v3622 = vsel %vm954, %v3617, %v3621
      %v3623 = vshrl.u32 %v3600, 16
      %v3625 = vor.u32 %v3623, %v3621
      %v3627 = vshll.u32 %v3601, 16
      %v3629 = vrot.slane %v3627, 1
      %v3630 = vsel %vm954, %v3625, %v3629
      %v3631 = vshrl.u32 %v3601, 16
      %v3633 = vor.u32 %v3631, %v3629
      %v3638 = vunpack.c.l.b16 %v3607
      %v3639 = vunpack.c.l.b16 %v3608
      %v3640 = vunpack.c.l.b16 %v3609
      %v3641 = vunpack.c.l.b16 %v3610
      %v3642 = vpack.c.b16 %v3639, %v3638
      %v3643 = vpack.c.b16 %v3641, %v3640
      %v3647 = vsel %vm2866, %v3622, 0
      %v3650 = vsel %vm2866, %v3630, 0
      %v3653 = vsel %vm2866, %v3633, 0
      %3655 = vmatprep.subr.bf16.mxu0 0
      %3656 = vmatpush1.bf16.msra.mxu0 0
      %3657 = vmatprep.subr.bf16.mxu0 0
      %3658 = vmatpush1.bf16.msra.mxu0 0
      %3659 = vmatprep.subr.bf16.mxu0 0
      %3660 = vmatpush1.bf16.msra.mxu0 0
      %3661 = vmatprep.subr.bf16.mxu0 0
      %3662 = vmatpush1.bf16.msra.mxu0 0
      %3663 = vmatprep.subr.bf16.mxu0 0
      %3664 = vmatpush1.bf16.msra.mxu0 0
      %3665 = vmatprep.subr.bf16.mxu0 0
      %3666 = vmatpush1.bf16.msra.mxu0 0
      %3667 = vmatprep.subr.bf16.mxu0 0
      %3668 = vmatpush1.bf16.msra.mxu0 %v3643
      %3669 = vmatprep.subr.bf16.mxu0 0
      %3670 = vmatpush1.bf16.msra.mxu0 %v3642
      %3671 = vmatprep.subr.bf16.mxu0 0
      %3672 = vmatpush2.bf16.msra.mxu0 0
      %3673 = vmatprep.subr.bf16.mxu0 0
      %3674 = vmatpush2.bf16.msra.mxu0 0
      %3675 = vmatprep.subr.bf16.mxu0 0
      %3676 = vmatpush2.bf16.msra.mxu0 0
      %3677 = vmatprep.subr.bf16.mxu0 0
      %3678 = vmatpush2.bf16.msra.mxu0 0
      %3679 = vmatprep.subr.bf16.mxu0 0
      %3680 = vmatpush2.bf16.msra.mxu0 0
      %3681 = vmatprep.subr.bf16.mxu0 0
      %3682 = vmatpush2.bf16.msra.mxu0 0
      %3683 = vmatprep.subr.bf16.mxu0 0
      %3684 = vmatpush2.bf16.msra.mxu0 0
      %3685 = vmatprep.subr.bf16.mxu0 0
      %3686 = vmatpush2.bf16.msra.mxu0 0
      %3687 = vmatprep.mubr.bf16.mxu0 0
      %3688 = vmatmul.mubr.bf16.gmra.mxu0 %v3647
      %v3689 = vpop.f32.mrf.mxu0
      %v3690 = vadd.f32 0.0, %v3689
      %v3691 = vpop.f32.mrf.mxu0
      %v3692 = vpop.f32.mrf.mxu0
      %v3693 = vadd.f32 0.0, %v3692
      %v3694 = vpop.f32.mrf.mxu0
      %3695 = vmatprep.mubr.bf16.mxu0 0
      %3696 = vmatmul.mubr.bf16.gmra.mxu0 %v3650
      %v3697 = vpop.f32.mrf.mxu0
      %v3698 = vadd.f32 0.0, %v3697
      %v3699 = vpop.f32.mrf.mxu0
      %v3700 = vpop.f32.mrf.mxu0
      %v3701 = vadd.f32 0.0, %v3700
      %v3702 = vpop.f32.mrf.mxu0
      %3703 = vmatprep.mubr.bf16.mxu0 0
      %3704 = vmatmul.mubr.bf16.gmra.mxu0 %v3653
      %v3705 = vpop.f32.mrf.mxu0
      %v3706 = vadd.f32 0.0, %v3705
      %v3707 = vpop.f32.mrf.mxu0
      %v3708 = vpop.f32.mrf.mxu0
      %v3709 = vpop.f32.mrf.mxu0
      %3710 = vdwg.mxu0
      %v3715 = vunpack.c.l.b16 %v3602
      %v3716 = vunpack.c.l.b16 %v3603
      %v3717 = vunpack.c.l.b16 %v3604
      %v3718 = vunpack.c.l.b16 %v3605
      %v3719 = vpack.c.b16 %v3716, %v3715
      %v3720 = vpack.c.b16 %v3718, %v3717
      %v3723 = vsel %vm2866, %v3599, 0
      %v3725 = vsel %vm2866, %v3600, 0
      %v3727 = vsel %vm2866, %v3601, 0
      %3729 = vmatprep.subr.bf16.mxu0 0
      %3730 = vmatpush1.bf16.msra.mxu0 0
      %3731 = vmatprep.subr.bf16.mxu0 0
      %3732 = vmatpush1.bf16.msra.mxu0 0
      %3733 = vmatprep.subr.bf16.mxu0 0
      %3734 = vmatpush1.bf16.msra.mxu0 0
      %3735 = vmatprep.subr.bf16.mxu0 0
      %3736 = vmatpush1.bf16.msra.mxu0 0
      %3737 = vmatprep.subr.bf16.mxu0 0
      %3738 = vmatpush1.bf16.msra.mxu0 0
      %3739 = vmatprep.subr.bf16.mxu0 0
      %3740 = vmatpush1.bf16.msra.mxu0 0
      %3741 = vmatprep.subr.bf16.mxu0 0
      %3742 = vmatpush1.bf16.msra.mxu0 %v3720
      %3743 = vmatprep.subr.bf16.mxu0 0
      %3744 = vmatpush1.bf16.msra.mxu0 %v3719
      %3745 = vmatprep.subr.bf16.mxu0 0
      %3746 = vmatpush2.bf16.msra.mxu0 0
      %3747 = vmatprep.subr.bf16.mxu0 0
      %3748 = vmatpush2.bf16.msra.mxu0 0
      %3749 = vmatprep.subr.bf16.mxu0 0
      %3750 = vmatpush2.bf16.msra.mxu0 0
      %3751 = vmatprep.subr.bf16.mxu0 0
      %3752 = vmatpush2.bf16.msra.mxu0 0
      %3753 = vmatprep.subr.bf16.mxu0 0
      %3754 = vmatpush2.bf16.msra.mxu0 0
      %3755 = vmatprep.subr.bf16.mxu0 0
      %3756 = vmatpush2.bf16.msra.mxu0 0
      %3757 = vmatprep.subr.bf16.mxu0 0
      %3758 = vmatpush2.bf16.msra.mxu0 0
      %3759 = vmatprep.subr.bf16.mxu0 0
      %3760 = vmatpush2.bf16.msra.mxu0 0
      %3761 = vmatprep.mubr.bf16.mxu0 0
      %3762 = vmatmul.mubr.bf16.gmra.mxu0 %v3723
      %v3763 = vpop.f32.mrf.mxu0
      %v3764 = vadd.f32 %v3690, %v3763
      %v3765 = vpop.f32.mrf.mxu0
      %v3766 = vpop.f32.mrf.mxu0
      %v3767 = vadd.f32 %v3693, %v3766
      %v3768 = vpop.f32.mrf.mxu0
      %3769 = vmatprep.mubr.bf16.mxu0 0
      %3770 = vmatmul.mubr.bf16.gmra.mxu0 %v3725
      %v3771 = vpop.f32.mrf.mxu0
      %v3772 = vadd.f32 %v3698, %v3771
      %v3773 = vpop.f32.mrf.mxu0
      %v3774 = vpop.f32.mrf.mxu0
      %v3775 = vadd.f32 %v3701, %v3774
      %v3776 = vpop.f32.mrf.mxu0
      %3777 = vmatprep.mubr.bf16.mxu0 0
      %3778 = vmatmul.mubr.bf16.gmra.mxu0 %v3727
      %v3779 = vpop.f32.mrf.mxu0
      %v3780 = vadd.f32 %v3706, %v3779
      %v3781 = vpop.f32.mrf.mxu0
      %v3782 = vpop.f32.mrf.mxu0
      %v3783 = vpop.f32.mrf.mxu0
      %3784 = vdwg.mxu0
      %s3785 = scalar_lea.vmem %s20, 32
      %v3786 = vld [vmem:[%s3785] sm:$0xf]
      %v3787 = vld [vmem:[%s3785 + $0x4] sm:$0xf]
      %v3788 = vld [vmem:[%s3785 + $0x8] sm:$0xf]
      %v3789 = vld [vmem:[%s3785 + $0xc] sm:$0xf]
      %v3793 = vrot.slane %v3599, 1
      %v3794 = vrot.slane %v3600, 1
      %v3795 = vsel %vm1227, %v3793, %v3794
      %v3796 = vrot.slane %v3601, 1
      %v3797 = vsel %vm1227, %v3794, %v3796
      %v3802 = vunpack.c.l.b16 %v3786
      %v3803 = vunpack.c.l.b16 %v3787
      %v3804 = vunpack.c.l.b16 %v3788
      %v3805 = vunpack.c.l.b16 %v3789
      %v3806 = vpack.c.b16 %v3803, %v3802
      %v3807 = vpack.c.b16 %v3805, %v3804
      %v3811 = vsel %vm2866, %v3795, 0
      %v3814 = vsel %vm2866, %v3797, 0
      %v3817 = vsel %vm2866, %v3796, 0
      %3819 = vmatprep.subr.bf16.mxu0 0
      %3820 = vmatpush1.bf16.msra.mxu0 0
      %3821 = vmatprep.subr.bf16.mxu0 0
      %3822 = vmatpush1.bf16.msra.mxu0 0
      %3823 = vmatprep.subr.bf16.mxu0 0
      %3824 = vmatpush1.bf16.msra.mxu0 0
      %3825 = vmatprep.subr.bf16.mxu0 0
      %3826 = vmatpush1.bf16.msra.mxu0 0
      %3827 = vmatprep.subr.bf16.mxu0 0
      %3828 = vmatpush1.bf16.msra.mxu0 0
      %3829 = vmatprep.subr.bf16.mxu0 0
      %3830 = vmatpush1.bf16.msra.mxu0 0
      %3831 = vmatprep.subr.bf16.mxu0 0
      %3832 = vmatpush1.bf16.msra.mxu0 %v3807
      %3833 = vmatprep.subr.bf16.mxu0 0
      %3834 = vmatpush1.bf16.msra.mxu0 %v3806
      %3835 = vmatprep.subr.bf16.mxu0 0
      %3836 = vmatpush2.bf16.msra.mxu0 0
      %3837 = vmatprep.subr.bf16.mxu0 0
      %3838 = vmatpush2.bf16.msra.mxu0 0
      %3839 = vmatprep.subr.bf16.mxu0 0
      %3840 = vmatpush2.bf16.msra.mxu0 0
      %3841 = vmatprep.subr.bf16.mxu0 0
      %3842 = vmatpush2.bf16.msra.mxu0 0
      %3843 = vmatprep.subr.bf16.mxu0 0
      %3844 = vmatpush2.bf16.msra.mxu0 0
      %3845 = vmatprep.subr.bf16.mxu0 0
      %3846 = vmatpush2.bf16.msra.mxu0 0
      %3847 = vmatprep.subr.bf16.mxu0 0
      %3848 = vmatpush2.bf16.msra.mxu0 0
      %3849 = vmatprep.subr.bf16.mxu0 0
      %3850 = vmatpush2.bf16.msra.mxu0 0
      %3851 = vmatprep.mubr.bf16.mxu0 0
      %3852 = vmatmul.mubr.bf16.gmra.mxu0 %v3811
      %v3853 = vpop.f32.mrf.mxu0
      %v3854 = vadd.f32 0.0, %v3853
      %v3855 = vpop.f32.mrf.mxu0
      %v3856 = vpop.f32.mrf.mxu0
      %v3857 = vadd.f32 0.0, %v3856
      %v3858 = vpop.f32.mrf.mxu0
      %3859 = vmatprep.mubr.bf16.mxu0 0
      %3860 = vmatmul.mubr.bf16.gmra.mxu0 %v3814
      %v3861 = vpop.f32.mrf.mxu0
      %v3862 = vadd.f32 0.0, %v3861
      %v3863 = vpop.f32.mrf.mxu0
      %v3864 = vpop.f32.mrf.mxu0
      %v3865 = vadd.f32 0.0, %v3864
      %v3866 = vpop.f32.mrf.mxu0
      %3867 = vmatprep.mubr.bf16.mxu0 0
      %3868 = vmatmul.mubr.bf16.gmra.mxu0 %v3817
      %v3869 = vpop.f32.mrf.mxu0
      %v3870 = vadd.f32 0.0, %v3869
      %v3871 = vpop.f32.mrf.mxu0
      %v3872 = vpop.f32.mrf.mxu0
      %v3873 = vpop.f32.mrf.mxu0
      %3874 = vdwg.mxu0
      %v3875 = vadd.f32 %v3764, %v3854
      %v3876 = vadd.f32 %v3767, %v3857
      %v3877 = vadd.f32 %v3772, %v3862
      %v3878 = vadd.f32 %v3775, %v3865
      %v3879 = vadd.f32 %v3780, %v3870
      %v3880 = vld [vmem:[%s21] sm:$0x1]
      %v3882 = vlaneseq
      %v3883 = vshrl.u32 %v3882, 7
      %v3884 = vsub.s32 0, %v3883
      %v3885 = vrot.slane %v3880, %v3884
      %v3887 = vadd.f32 %v3875, %v3885
      %v3888 = vadd.f32 %v3876, %v3885
      %v3889 = vadd.f32 %v3877, %v3885
      %v3890 = vadd.f32 %v3878, %v3885
      %v3891 = vadd.f32 %v3879, %v3885
      %v3892 = vmax.f32 %v3887, 0.0
      %v3893 = vmax.f32 %v3888, 0.0
      %v3894 = vmax.f32 %v3889, 0.0
      %v3895 = vmax.f32 %v3890, 0.0
      %v3896 = vmax.f32 %v3891, 0.0
      %v3897 = vld [vmem:[%s22] sm:$0xf]
      %v3898 = vld [vmem:[%s22 + $0x4] sm:$0xf]
      %v3899 = vld [vmem:[%s22 + $0x8] sm:$0xf]
      %v3900 = vld [vmem:[%s22 + $0xc] sm:$0xf]
      %v3901 = vld [vmem:[%s22 + $0x10] sm:$0xf]
      %v3902 = vld [vmem:[%s22 + $0x14] sm:$0xf]
      %v3903 = vld [vmem:[%s22 + $0x18] sm:$0xf]
      %v3904 = vld [vmem:[%s22 + $0x1c] sm:$0xf]
      %v3905 = vld [vmem:[%s22 + $0x20] sm:$0xf]
      %v3906 = vpack.c.bf16 %v3893, %v3892
      %v3907 = vpack.c.bf16 %v3895, %v3894
      %v3908 = vpack.c.bf16 %v3896, %v3896
      %v3918 = vunpack.c.l.b16 %v3897
      %v3919 = vunpack.c.l.b16 %v3898
      %v3920 = vunpack.c.l.b16 %v3899
      %v3921 = vunpack.c.l.b16 %v3900
      %v3922 = vunpack.c.l.b16 %v3901
      %v3923 = vunpack.c.l.b16 %v3902
      %v3924 = vunpack.c.l.b16 %v3903
      %v3925 = vunpack.c.l.b16 %v3904
      %v3926 = vunpack.c.l.b16 %v3905
      %v3927 = vpack.c.b16 %v3919, %v3918
      %v3928 = vpack.c.b16 %v3921, %v3920
      %v3929 = vpack.c.b16 %v3923, %v3922
      %v3930 = vpack.c.b16 %v3925, %v3924
      %v3931 = vpack.c.b16 %v3926, %v3926
      %v3933 = vsel %vm2701, %v3927, 0
      %v3936 = vsel %vm2701, %v3928, 0
      %v3939 = vsel %vm2701, %v3929, 0
      %v3942 = vsel %vm2701, %v3930, 0
      %v3945 = vsel %vm2701, %v3931, 0
      %v3948 = vsel %vm2708, %v3908, 0
      %3950 = vmatprep.subr.bf16.mxu0 0
      %3951 = vmatpush1.bf16.msra.mxu0 0
      %3952 = vmatprep.subr.bf16.mxu0 0
      %3953 = vmatpush1.bf16.msra.mxu0 0
      %3954 = vmatprep.subr.bf16.mxu0 0
      %3955 = vmatpush1.bf16.msra.mxu0 0
      %3956 = vmatprep.subr.bf16.mxu0 0
      %3957 = vmatpush1.bf16.msra.mxu0 0
      %3958 = vmatprep.subr.bf16.mxu0 0
      %3959 = vmatpush1.bf16.msra.mxu0 0
      %3960 = vmatprep.subr.bf16.mxu0 0
      %3961 = vmatpush1.bf16.msra.mxu0 %v3948
      %3962 = vmatprep.subr.bf16.mxu0 0
      %3963 = vmatpush1.bf16.msra.mxu0 %v3907
      %3964 = vmatprep.subr.bf16.mxu0 0
      %3965 = vmatpush1.bf16.msra.mxu0 %v3906
      %3966 = vmatprep.subr.bf16.mxu0 0
      %3967 = vmatpush2.bf16.msra.mxu0 0
      %3968 = vmatprep.subr.bf16.mxu0 0
      %3969 = vmatpush2.bf16.msra.mxu0 0
      %3970 = vmatprep.subr.bf16.mxu0 0
      %3971 = vmatpush2.bf16.msra.mxu0 0
      %3972 = vmatprep.subr.bf16.mxu0 0
      %3973 = vmatpush2.bf16.msra.mxu0 0
      %3974 = vmatprep.subr.bf16.mxu0 0
      %3975 = vmatpush2.bf16.msra.mxu0 0
      %3976 = vmatprep.subr.bf16.mxu0 0
      %3977 = vmatpush2.bf16.msra.mxu0 0
      %3978 = vmatprep.subr.bf16.mxu0 0
      %3979 = vmatpush2.bf16.msra.mxu0 0
      %3980 = vmatprep.subr.bf16.mxu0 0
      %3981 = vmatpush2.bf16.msra.mxu0 0
      %3982 = vmatprep.mubr.bf16.mxu0 0
      %3983 = vmatmul.mubr.bf16.gmra.mxu0 %v3933
      %v3984 = vpop.f32.mrf.mxu0
      %v3985 = vadd.f32 0.0, %v3984
      %v3986 = vpop.f32.mrf.mxu0
      %v3987 = vpop.f32.mrf.mxu0
      %v3988 = vadd.f32 0.0, %v3987
      %v3989 = vpop.f32.mrf.mxu0
      %3990 = vmatprep.mubr.bf16.mxu0 0
      %3991 = vmatmul.mubr.bf16.gmra.mxu0 %v3936
      %v3992 = vpop.f32.mrf.mxu0
      %v3993 = vadd.f32 0.0, %v3992
      %v3994 = vpop.f32.mrf.mxu0
      %v3995 = vpop.f32.mrf.mxu0
      %v3996 = vadd.f32 0.0, %v3995
      %v3997 = vpop.f32.mrf.mxu0
      %3998 = vmatprep.mubr.bf16.mxu0 0
      %3999 = vmatmul.mubr.bf16.gmra.mxu0 %v3939
      %v4000 = vpop.f32.mrf.mxu0
      %v4001 = vadd.f32 0.0, %v4000
      %v4002 = vpop.f32.mrf.mxu0
      %v4003 = vpop.f32.mrf.mxu0
      %v4004 = vadd.f32 0.0, %v4003
      %v4005 = vpop.f32.mrf.mxu0
      %4006 = vmatprep.mubr.bf16.mxu0 0
      %4007 = vmatmul.mubr.bf16.gmra.mxu0 %v3942
      %v4008 = vpop.f32.mrf.mxu0
      %v4009 = vadd.f32 0.0, %v4008
      %v4010 = vpop.f32.mrf.mxu0
      %v4011 = vpop.f32.mrf.mxu0
      %v4012 = vadd.f32 0.0, %v4011
      %v4013 = vpop.f32.mrf.mxu0
      %4014 = vmatprep.mubr.bf16.mxu0 0
      %4015 = vmatmul.mubr.bf16.gmra.mxu0 %v3945
      %v4016 = vpop.f32.mrf.mxu0
      %v4017 = vadd.f32 0.0, %v4016
      %v4018 = vpop.f32.mrf.mxu0
      %v4019 = vpop.f32.mrf.mxu0
      %v4020 = vpop.f32.mrf.mxu0
      %4021 = vdwg.mxu0
      %v4022 = vpack.c.bf16 %v3988, %v3985
      %v4023 = vpack.c.bf16 %v3996, %v3993
      %v4024 = vpack.c.bf16 %v4004, %v4001
      %v4025 = vpack.c.bf16 %v4012, %v4009
      %v4026 = vpack.c.bf16 %v4017, %v4017
      %v4027 = vld [vmem:[%s23] sm:$0xf]
      %v4028 = vld [vmem:[%s23 + $0x4] sm:$0xf]
      %v4029 = vld [vmem:[%s23 + $0x8] sm:$0xf]
      %v4030 = vld [vmem:[%s23 + $0xc] sm:$0xf]
      %v4031 = vld [vmem:[%s23 + $0x10] sm:$0xf]
      %v4032 = vld [vmem:[%s23 + $0x14] sm:$0xf]
      %v4033 = vld [vmem:[%s23 + $0x18] sm:$0xf]
      %v4034 = vld [vmem:[%s23 + $0x1c] sm:$0xf]
      %s4035 = scalar_lea.vmem %s23, 32
      %v4036 = vld [vmem:[%s4035] sm:$0xf]
      %v4037 = vld [vmem:[%s4035 + $0x4] sm:$0xf]
      %v4038 = vld [vmem:[%s4035 + $0x8] sm:$0xf]
      %v4039 = vld [vmem:[%s4035 + $0xc] sm:$0xf]
      %v4040 = vld [vmem:[%s4035 + $0x10] sm:$0xf]
      %v4041 = vld [vmem:[%s4035 + $0x14] sm:$0xf]
      %v4042 = vld [vmem:[%s4035 + $0x18] sm:$0xf]
      %v4043 = vld [vmem:[%s4035 + $0x1c] sm:$0xf]
      %v4045 = vshrl.u32 %v4022, 16
      %v4047 = vshll.u32 %v4022, 16
      %v4049 = vrot.slane %v4047, 1
      %v4050 = vor.u32 %v4045, %v4049
      %v4052 = vshll.u32 %v4023, 16
      %v4054 = vrot.slane %v4052, 1
      %v4055 = vsel %vm954, %v4050, %v4054
      %v4056 = vshrl.u32 %v4023, 16
      %v4058 = vor.u32 %v4056, %v4054
      %v4060 = vshll.u32 %v4024, 16
      %v4062 = vrot.slane %v4060, 1
      %v4063 = vsel %vm954, %v4058, %v4062
      %v4064 = vshrl.u32 %v4024, 16
      %v4066 = vor.u32 %v4064, %v4062
      %v4068 = vshll.u32 %v4025, 16
      %v4070 = vrot.slane %v4068, 1
      %v4071 = vsel %vm954, %v4066, %v4070
      %v4072 = vshrl.u32 %v4025, 16
      %v4074 = vor.u32 %v4072, %v4070
      %v4076 = vshll.u32 %v4026, 16
      %v4078 = vrot.slane %v4076, 1
      %v4079 = vsel %vm954, %v4074, %v4078
      %v4080 = vshrl.u32 %v4026, 16
      %v4082 = vor.u32 %v4080, %v4078
      %v4091 = vunpack.c.l.b16 %v4036
      %v4092 = vunpack.c.l.b16 %v4037
      %v4093 = vunpack.c.l.b16 %v4038
      %v4094 = vunpack.c.l.b16 %v4039
      %v4095 = vunpack.c.l.b16 %v4040
      %v4096 = vunpack.c.l.b16 %v4041
      %v4097 = vunpack.c.l.b16 %v4042
      %v4098 = vunpack.c.l.b16 %v4043
      %v4099 = vpack.c.b16 %v4092, %v4091
      %v4100 = vpack.c.b16 %v4094, %v4093
      %v4101 = vpack.c.b16 %v4096, %v4095
      %v4102 = vpack.c.b16 %v4098, %v4097
      %v4108 = vsel %vm843, %v4055, 0
      %v4111 = vsel %vm843, %v4063, 0
      %v4114 = vsel %vm843, %v4071, 0
      %v4117 = vsel %vm843, %v4079, 0
      %v4120 = vsel %vm843, %v4082, 0
      %4122 = vmatprep.subr.bf16.mxu0 0
      %4123 = vmatpush1.bf16.msra.mxu0 0
      %4124 = vmatprep.subr.bf16.mxu0 0
      %4125 = vmatpush1.bf16.msra.mxu0 0
      %4126 = vmatprep.subr.bf16.mxu0 0
      %4127 = vmatpush1.bf16.msra.mxu0 0
      %4128 = vmatprep.subr.bf16.mxu0 0
      %4129 = vmatpush1.bf16.msra.mxu0 0
      %4130 = vmatprep.subr.bf16.mxu0 0
      %4131 = vmatpush1.bf16.msra.mxu0 %v4102
      %4132 = vmatprep.subr.bf16.mxu0 0
      %4133 = vmatpush1.bf16.msra.mxu0 %v4101
      %4134 = vmatprep.subr.bf16.mxu0 0
      %4135 = vmatpush1.bf16.msra.mxu0 %v4100
      %4136 = vmatprep.subr.bf16.mxu0 0
      %4137 = vmatpush1.bf16.msra.mxu0 %v4099
      %4138 = vmatprep.subr.bf16.mxu0 0
      %4139 = vmatpush2.bf16.msra.mxu0 0
      %4140 = vmatprep.subr.bf16.mxu0 0
      %4141 = vmatpush2.bf16.msra.mxu0 0
      %4142 = vmatprep.subr.bf16.mxu0 0
      %4143 = vmatpush2.bf16.msra.mxu0 0
      %4144 = vmatprep.subr.bf16.mxu0 0
      %4145 = vmatpush2.bf16.msra.mxu0 0
      %4146 = vmatprep.subr.bf16.mxu0 0
      %4147 = vmatpush2.bf16.msra.mxu0 0
      %4148 = vmatprep.subr.bf16.mxu0 0
      %4149 = vmatpush2.bf16.msra.mxu0 0
      %4150 = vmatprep.subr.bf16.mxu0 0
      %4151 = vmatpush2.bf16.msra.mxu0 0
      %4152 = vmatprep.subr.bf16.mxu0 0
      %4153 = vmatpush2.bf16.msra.mxu0 0
      %4154 = vmatprep.mubr.bf16.mxu0 0
      %4155 = vmatmul.mubr.bf16.gmra.mxu0 %v4108
      %v4156 = vpop.f32.mrf.mxu0
      %v4157 = vadd.f32 0.0, %v4156
      %v4158 = vpop.f32.mrf.mxu0
      %v4159 = vpop.f32.mrf.mxu0
      %v4160 = vadd.f32 0.0, %v4159
      %v4161 = vpop.f32.mrf.mxu0
      %4162 = vmatprep.mubr.bf16.mxu0 0
      %4163 = vmatmul.mubr.bf16.gmra.mxu0 %v4111
      %v4164 = vpop.f32.mrf.mxu0
      %v4165 = vadd.f32 0.0, %v4164
      %v4166 = vpop.f32.mrf.mxu0
      %v4167 = vpop.f32.mrf.mxu0
      %v4168 = vadd.f32 0.0, %v4167
      %v4169 = vpop.f32.mrf.mxu0
      %4170 = vmatprep.mubr.bf16.mxu0 0
      %4171 = vmatmul.mubr.bf16.gmra.mxu0 %v4114
      %v4172 = vpop.f32.mrf.mxu0
      %v4173 = vadd.f32 0.0, %v4172
      %v4174 = vpop.f32.mrf.mxu0
      %v4175 = vpop.f32.mrf.mxu0
      %v4176 = vadd.f32 0.0, %v4175
      %v4177 = vpop.f32.mrf.mxu0
      %4178 = vmatprep.mubr.bf16.mxu0 0
      %4179 = vmatmul.mubr.bf16.gmra.mxu0 %v4117
      %v4180 = vpop.f32.mrf.mxu0
      %v4181 = vadd.f32 0.0, %v4180
      %v4182 = vpop.f32.mrf.mxu0
      %v4183 = vpop.f32.mrf.mxu0
      %v4184 = vadd.f32 0.0, %v4183
      %v4185 = vpop.f32.mrf.mxu0
      %4186 = vmatprep.mubr.bf16.mxu0 0
      %4187 = vmatmul.mubr.bf16.gmra.mxu0 %v4120
      %v4188 = vpop.f32.mrf.mxu0
      %v4189 = vadd.f32 0.0, %v4188
      %v4190 = vpop.f32.mrf.mxu0
      %v4191 = vpop.f32.mrf.mxu0
      %v4192 = vpop.f32.mrf.mxu0
      %4193 = vdwg.mxu0
      %v4202 = vunpack.c.l.b16 %v4027
      %v4203 = vunpack.c.l.b16 %v4028
      %v4204 = vunpack.c.l.b16 %v4029
      %v4205 = vunpack.c.l.b16 %v4030
      %v4206 = vunpack.c.l.b16 %v4031
      %v4207 = vunpack.c.l.b16 %v4032
      %v4208 = vunpack.c.l.b16 %v4033
      %v4209 = vunpack.c.l.b16 %v4034
      %v4210 = vpack.c.b16 %v4203, %v4202
      %v4211 = vpack.c.b16 %v4205, %v4204
      %v4212 = vpack.c.b16 %v4207, %v4206
      %v4213 = vpack.c.b16 %v4209, %v4208
      %v4218 = vsel %vm843, %v4022, 0
      %v4220 = vsel %vm843, %v4023, 0
      %v4222 = vsel %vm843, %v4024, 0
      %v4224 = vsel %vm843, %v4025, 0
      %v4226 = vsel %vm843, %v4026, 0
      %4228 = vmatprep.subr.bf16.mxu0 0
      %4229 = vmatpush1.bf16.msra.mxu0 0
      %4230 = vmatprep.subr.bf16.mxu0 0
      %4231 = vmatpush1.bf16.msra.mxu0 0
      %4232 = vmatprep.subr.bf16.mxu0 0
      %4233 = vmatpush1.bf16.msra.mxu0 0
      %4234 = vmatprep.subr.bf16.mxu0 0
      %4235 = vmatpush1.bf16.msra.mxu0 0
      %4236 = vmatprep.subr.bf16.mxu0 0
      %4237 = vmatpush1.bf16.msra.mxu0 %v4213
      %4238 = vmatprep.subr.bf16.mxu0 0
      %4239 = vmatpush1.bf16.msra.mxu0 %v4212
      %4240 = vmatprep.subr.bf16.mxu0 0
      %4241 = vmatpush1.bf16.msra.mxu0 %v4211
      %4242 = vmatprep.subr.bf16.mxu0 0
      %4243 = vmatpush1.bf16.msra.mxu0 %v4210
      %4244 = vmatprep.subr.bf16.mxu0 0
      %4245 = vmatpush2.bf16.msra.mxu0 0
      %4246 = vmatprep.subr.bf16.mxu0 0
      %4247 = vmatpush2.bf16.msra.mxu0 0
      %4248 = vmatprep.subr.bf16.mxu0 0
      %4249 = vmatpush2.bf16.msra.mxu0 0
      %4250 = vmatprep.subr.bf16.mxu0 0
      %4251 = vmatpush2.bf16.msra.mxu0 0
      %4252 = vmatprep.subr.bf16.mxu0 0
      %4253 = vmatpush2.bf16.msra.mxu0 0
      %4254 = vmatprep.subr.bf16.mxu0 0
      %4255 = vmatpush2.bf16.msra.mxu0 0
      %4256 = vmatprep.subr.bf16.mxu0 0
      %4257 = vmatpush2.bf16.msra.mxu0 0
      %4258 = vmatprep.subr.bf16.mxu0 0
      %4259 = vmatpush2.bf16.msra.mxu0 0
      %4260 = vmatprep.mubr.bf16.mxu0 0
      %4261 = vmatmul.mubr.bf16.gmra.mxu0 %v4218
      %v4262 = vpop.f32.mrf.mxu0
      %v4263 = vadd.f32 %v4157, %v4262
      %v4264 = vpop.f32.mrf.mxu0
      %v4265 = vpop.f32.mrf.mxu0
      %v4266 = vadd.f32 %v4160, %v4265
      %v4267 = vpop.f32.mrf.mxu0
      %4268 = vmatprep.mubr.bf16.mxu0 0
      %4269 = vmatmul.mubr.bf16.gmra.mxu0 %v4220
      %v4270 = vpop.f32.mrf.mxu0
      %v4271 = vadd.f32 %v4165, %v4270
      %v4272 = vpop.f32.mrf.mxu0
      %v4273 = vpop.f32.mrf.mxu0
      %v4274 = vadd.f32 %v4168, %v4273
      %v4275 = vpop.f32.mrf.mxu0
      %4276 = vmatprep.mubr.bf16.mxu0 0
      %4277 = vmatmul.mubr.bf16.gmra.mxu0 %v4222
      %v4278 = vpop.f32.mrf.mxu0
      %v4279 = vadd.f32 %v4173, %v4278
      %v4280 = vpop.f32.mrf.mxu0
      %v4281 = vpop.f32.mrf.mxu0
      %v4282 = vadd.f32 %v4176, %v4281
      %v4283 = vpop.f32.mrf.mxu0
      %4284 = vmatprep.mubr.bf16.mxu0 0
      %4285 = vmatmul.mubr.bf16.gmra.mxu0 %v4224
      %v4286 = vpop.f32.mrf.mxu0
      %v4287 = vadd.f32 %v4181, %v4286
      %v4288 = vpop.f32.mrf.mxu0
      %v4289 = vpop.f32.mrf.mxu0
      %v4290 = vadd.f32 %v4184, %v4289
      %v4291 = vpop.f32.mrf.mxu0
      %4292 = vmatprep.mubr.bf16.mxu0 0
      %4293 = vmatmul.mubr.bf16.gmra.mxu0 %v4226
      %v4294 = vpop.f32.mrf.mxu0
      %v4295 = vadd.f32 %v4189, %v4294
      %v4296 = vpop.f32.mrf.mxu0
      %v4297 = vpop.f32.mrf.mxu0
      %v4298 = vpop.f32.mrf.mxu0
      %4299 = vdwg.mxu0
      %s4300 = scalar_lea.vmem %s23, 64
      %v4301 = vld [vmem:[%s4300] sm:$0xf]
      %v4302 = vld [vmem:[%s4300 + $0x4] sm:$0xf]
      %v4303 = vld [vmem:[%s4300 + $0x8] sm:$0xf]
      %v4304 = vld [vmem:[%s4300 + $0xc] sm:$0xf]
      %v4305 = vld [vmem:[%s4300 + $0x10] sm:$0xf]
      %v4306 = vld [vmem:[%s4300 + $0x14] sm:$0xf]
      %v4307 = vld [vmem:[%s4300 + $0x18] sm:$0xf]
      %v4308 = vld [vmem:[%s4300 + $0x1c] sm:$0xf]
      %v4314 = vrot.slane %v4022, 1
      %v4315 = vrot.slane %v4023, 1
      %v4316 = vsel %vm1227, %v4314, %v4315
      %v4317 = vrot.slane %v4024, 1
      %v4318 = vsel %vm1227, %v4315, %v4317
      %v4319 = vrot.slane %v4025, 1
      %v4320 = vsel %vm1227, %v4317, %v4319
      %v4321 = vrot.slane %v4026, 1
      %v4322 = vsel %vm1227, %v4319, %v4321
      %v4331 = vunpack.c.l.b16 %v4301
      %v4332 = vunpack.c.l.b16 %v4302
      %v4333 = vunpack.c.l.b16 %v4303
      %v4334 = vunpack.c.l.b16 %v4304
      %v4335 = vunpack.c.l.b16 %v4305
      %v4336 = vunpack.c.l.b16 %v4306
      %v4337 = vunpack.c.l.b16 %v4307
      %v4338 = vunpack.c.l.b16 %v4308
      %v4339 = vpack.c.b16 %v4332, %v4331
      %v4340 = vpack.c.b16 %v4334, %v4333
      %v4341 = vpack.c.b16 %v4336, %v4335
      %v4342 = vpack.c.b16 %v4338, %v4337
      %v4348 = vsel %vm843, %v4316, 0
      %v4351 = vsel %vm843, %v4318, 0
      %v4354 = vsel %vm843, %v4320, 0
      %v4357 = vsel %vm843, %v4322, 0
      %v4360 = vsel %vm843, %v4321, 0
      %4362 = vmatprep.subr.bf16.mxu0 0
      %4363 = vmatpush1.bf16.msra.mxu0 0
      %4364 = vmatprep.subr.bf16.mxu0 0
      %4365 = vmatpush1.bf16.msra.mxu0 0
      %4366 = vmatprep.subr.bf16.mxu0 0
      %4367 = vmatpush1.bf16.msra.mxu0 0
      %4368 = vmatprep.subr.bf16.mxu0 0
      %4369 = vmatpush1.bf16.msra.mxu0 0
      %4370 = vmatprep.subr.bf16.mxu0 0
      %4371 = vmatpush1.bf16.msra.mxu0 %v4342
      %4372 = vmatprep.subr.bf16.mxu0 0
      %4373 = vmatpush1.bf16.msra.mxu0 %v4341
      %4374 = vmatprep.subr.bf16.mxu0 0
      %4375 = vmatpush1.bf16.msra.mxu0 %v4340
      %4376 = vmatprep.subr.bf16.mxu0 0
      %4377 = vmatpush1.bf16.msra.mxu0 %v4339
      %4378 = vmatprep.subr.bf16.mxu0 0
      %4379 = vmatpush2.bf16.msra.mxu0 0
      %4380 = vmatprep.subr.bf16.mxu0 0
      %4381 = vmatpush2.bf16.msra.mxu0 0
      %4382 = vmatprep.subr.bf16.mxu0 0
      %4383 = vmatpush2.bf16.msra.mxu0 0
      %4384 = vmatprep.subr.bf16.mxu0 0
      %4385 = vmatpush2.bf16.msra.mxu0 0
      %4386 = vmatprep.subr.bf16.mxu0 0
      %4387 = vmatpush2.bf16.msra.mxu0 0
      %4388 = vmatprep.subr.bf16.mxu0 0
      %4389 = vmatpush2.bf16.msra.mxu0 0
      %4390 = vmatprep.subr.bf16.mxu0 0
      %4391 = vmatpush2.bf16.msra.mxu0 0
      %4392 = vmatprep.subr.bf16.mxu0 0
      %4393 = vmatpush2.bf16.msra.mxu0 0
      %4394 = vmatprep.mubr.bf16.mxu0 0
      %4395 = vmatmul.mubr.bf16.gmra.mxu0 %v4348
      %v4396 = vpop.f32.mrf.mxu0
      %v4397 = vadd.f32 0.0, %v4396
      %v4398 = vpop.f32.mrf.mxu0
      %v4399 = vpop.f32.mrf.mxu0
      %v4400 = vadd.f32 0.0, %v4399
      %v4401 = vpop.f32.mrf.mxu0
      %4402 = vmatprep.mubr.bf16.mxu0 0
      %4403 = vmatmul.mubr.bf16.gmra.mxu0 %v4351
      %v4404 = vpop.f32.mrf.mxu0
      %v4405 = vadd.f32 0.0, %v4404
      %v4406 = vpop.f32.mrf.mxu0
      %v4407 = vpop.f32.mrf.mxu0
      %v4408 = vadd.f32 0.0, %v4407
      %v4409 = vpop.f32.mrf.mxu0
      %4410 = vmatprep.mubr.bf16.mxu0 0
      %4411 = vmatmul.mubr.bf16.gmra.mxu0 %v4354
      %v4412 = vpop.f32.mrf.mxu0
      %v4413 = vadd.f32 0.0, %v4412
      %v4414 = vpop.f32.mrf.mxu0
      %v4415 = vpop.f32.mrf.mxu0
      %v4416 = vadd.f32 0.0, %v4415
      %v4417 = vpop.f32.mrf.mxu0
      %4418 = vmatprep.mubr.bf16.mxu0 0
      %4419 = vmatmul.mubr.bf16.gmra.mxu0 %v4357
      %v4420 = vpop.f32.mrf.mxu0
      %v4421 = vadd.f32 0.0, %v4420
      %v4422 = vpop.f32.mrf.mxu0
      %v4423 = vpop.f32.mrf.mxu0
      %v4424 = vadd.f32 0.0, %v4423
      %v4425 = vpop.f32.mrf.mxu0
      %4426 = vmatprep.mubr.bf16.mxu0 0
      %4427 = vmatmul.mubr.bf16.gmra.mxu0 %v4360
      %v4428 = vpop.f32.mrf.mxu0
      %v4429 = vadd.f32 0.0, %v4428
      %v4430 = vpop.f32.mrf.mxu0
      %v4431 = vpop.f32.mrf.mxu0
      %v4432 = vpop.f32.mrf.mxu0
      %4433 = vdwg.mxu0
      %v4434 = vadd.f32 %v4263, %v4397
      %v4435 = vadd.f32 %v4266, %v4400
      %v4436 = vadd.f32 %v4271, %v4405
      %v4437 = vadd.f32 %v4274, %v4408
      %v4438 = vadd.f32 %v4279, %v4413
      %v4439 = vadd.f32 %v4282, %v4416
      %v4440 = vadd.f32 %v4287, %v4421
      %v4441 = vadd.f32 %v4290, %v4424
      %v4442 = vadd.f32 %v4295, %v4429
      %v4443 = vld [vmem:[%s24] sm:$0x1]
      %v4445 = vlaneseq
      %v4446 = vshrl.u32 %v4445, 7
      %v4447 = vsub.s32 0, %v4446
      %v4448 = vrot.slane %v4443, %v4447
      %v4450 = vadd.f32 %v4434, %v4448
      %v4451 = vadd.f32 %v4435, %v4448
      %v4452 = vadd.f32 %v4436, %v4448
      %v4453 = vadd.f32 %v4437, %v4448
      %v4454 = vadd.f32 %v4438, %v4448
      %v4455 = vadd.f32 %v4439, %v4448
      %v4456 = vadd.f32 %v4440, %v4448
      %v4457 = vadd.f32 %v4441, %v4448
      %v4458 = vadd.f32 %v4442, %v4448
      %v4459 = vmax.f32 %v4450, 0.0
      %v4460 = vmax.f32 %v4451, 0.0
      %v4461 = vmax.f32 %v4452, 0.0
      %v4462 = vmax.f32 %v4453, 0.0
      %v4463 = vmax.f32 %v4454, 0.0
      %v4464 = vmax.f32 %v4455, 0.0
      %v4465 = vmax.f32 %v4456, 0.0
      %v4466 = vmax.f32 %v4457, 0.0
      %v4467 = vmax.f32 %v4458, 0.0
      %v4468 = vld [vmem:[%s25] sm:$0xf]
      %v4469 = vld [vmem:[%s25 + $0x4] sm:$0xf]
      %v4470 = vld [vmem:[%s25 + $0x8] sm:$0xf]
      %v4471 = vld [vmem:[%s25 + $0xc] sm:$0xf]
      %v4472 = vld [vmem:[%s25 + $0x10] sm:$0xf]
      %v4473 = vld [vmem:[%s25 + $0x14] sm:$0xf]
      %v4474 = vld [vmem:[%s25 + $0x18] sm:$0xf]
      %v4475 = vld [vmem:[%s25 + $0x1c] sm:$0xf]
      %v4476 = vpack.c.bf16 %v4460, %v4459
      %v4477 = vpack.c.bf16 %v4462, %v4461
      %v4478 = vpack.c.bf16 %v4464, %v4463
      %v4479 = vpack.c.bf16 %v4466, %v4465
      %v4480 = vpack.c.bf16 %v4467, %v4467
      %v4489 = vunpack.c.l.b16 %v4468
      %v4490 = vunpack.c.l.b16 %v4469
      %v4491 = vunpack.c.l.b16 %v4470
      %v4492 = vunpack.c.l.b16 %v4471
      %v4493 = vunpack.c.l.b16 %v4472
      %v4494 = vunpack.c.l.b16 %v4473
      %v4495 = vunpack.c.l.b16 %v4474
      %v4496 = vunpack.c.l.b16 %v4475
      %v4497 = vpack.c.b16 %v4490, %v4489
      %v4498 = vpack.c.b16 %v4492, %v4491
      %v4499 = vpack.c.b16 %v4494, %v4493
      %v4500 = vpack.c.b16 %v4496, %v4495
      %vm4501 = vcmask 572416
      %v4503 = vsel %vm4501, %v4497, 0
      %v4506 = vsel %vm4501, %v4498, 0
      %v4509 = vsel %vm4501, %v4499, 0
      %v4512 = vsel %vm4501, %v4500, 0
      %v4515 = vsel %vm2708, %v4480, 0
      %4517 = vmatprep.subr.bf16.mxu0 0
      %4518 = vmatpush1.bf16.msra.mxu0 0
      %4519 = vmatprep.subr.bf16.mxu0 0
      %4520 = vmatpush1.bf16.msra.mxu0 0
      %4521 = vmatprep.subr.bf16.mxu0 0
      %4522 = vmatpush1.bf16.msra.mxu0 0
      %4523 = vmatprep.subr.bf16.mxu0 0
      %4524 = vmatpush1.bf16.msra.mxu0 %v4515
      %4525 = vmatprep.subr.bf16.mxu0 0
      %4526 = vmatpush1.bf16.msra.mxu0 %v4479
      %4527 = vmatprep.subr.bf16.mxu0 0
      %4528 = vmatpush1.bf16.msra.mxu0 %v4478
      %4529 = vmatprep.subr.bf16.mxu0 0
      %4530 = vmatpush1.bf16.msra.mxu0 %v4477
      %4531 = vmatprep.subr.bf16.mxu0 0
      %4532 = vmatpush1.bf16.msra.mxu0 %v4476
      %4533 = vmatprep.subr.bf16.mxu0 0
      %4534 = vmatpush2.bf16.msra.mxu0 0
      %4535 = vmatprep.subr.bf16.mxu0 0
      %4536 = vmatpush2.bf16.msra.mxu0 0
      %4537 = vmatprep.subr.bf16.mxu0 0
      %4538 = vmatpush2.bf16.msra.mxu0 0
      %4539 = vmatprep.subr.bf16.mxu0 0
      %4540 = vmatpush2.bf16.msra.mxu0 0
      %4541 = vmatprep.subr.bf16.mxu0 0
      %4542 = vmatpush2.bf16.msra.mxu0 0
      %4543 = vmatprep.subr.bf16.mxu0 0
      %4544 = vmatpush2.bf16.msra.mxu0 0
      %4545 = vmatprep.subr.bf16.mxu0 0
      %4546 = vmatpush2.bf16.msra.mxu0 0
      %4547 = vmatprep.subr.bf16.mxu0 0
      %4548 = vmatpush2.bf16.msra.mxu0 0
      %4549 = vmatprep.mubr.bf16.mxu0 0
      %4550 = vmatmul.mubr.bf16.gmra.mxu0 %v4503
      %v4551 = vpop.f32.mrf.mxu0
      %v4552 = vadd.f32 0.0, %v4551
      %v4553 = vpop.f32.mrf.mxu0
      %v4554 = vpop.f32.mrf.mxu0
      %v4555 = vadd.f32 0.0, %v4554
      %v4556 = vpop.f32.mrf.mxu0
      %4557 = vmatprep.mubr.bf16.mxu0 0
      %4558 = vmatmul.mubr.bf16.gmra.mxu0 %v4506
      %v4559 = vpop.f32.mrf.mxu0
      %v4560 = vadd.f32 0.0, %v4559
      %v4561 = vpop.f32.mrf.mxu0
      %v4562 = vpop.f32.mrf.mxu0
      %v4563 = vadd.f32 0.0, %v4562
      %v4564 = vpop.f32.mrf.mxu0
      %4565 = vmatprep.mubr.bf16.mxu0 0
      %4566 = vmatmul.mubr.bf16.gmra.mxu0 %v4509
      %v4567 = vpop.f32.mrf.mxu0
      %v4568 = vadd.f32 0.0, %v4567
      %v4569 = vpop.f32.mrf.mxu0
      %v4570 = vpop.f32.mrf.mxu0
      %v4571 = vadd.f32 0.0, %v4570
      %v4572 = vpop.f32.mrf.mxu0
      %4573 = vmatprep.mubr.bf16.mxu0 0
      %4574 = vmatmul.mubr.bf16.gmra.mxu0 %v4512
      %v4575 = vpop.f32.mrf.mxu0
      %v4576 = vadd.f32 0.0, %v4575
      %v4577 = vpop.f32.mrf.mxu0
      %v4578 = vpop.f32.mrf.mxu0
      %v4579 = vadd.f32 0.0, %v4578
      %v4580 = vpop.f32.mrf.mxu0
      %4581 = vdwg.mxu0
      %4582 = vst.msk [vmem:[%s793] sm:$0xff] %vm843, %v4552
      %4583 = vst.msk [vmem:[%s793 + $0x8] sm:$0xff] %vm843, %v4555
      %4584 = vst.msk [vmem:[%s793 + $0x10] sm:$0xff] %vm843, %v4560
      %4585 = vst.msk [vmem:[%s793 + $0x18] sm:$0xff] %vm843, %v4563
      %4586 = vst.msk [vmem:[%s793 + $0x20] sm:$0xff] %vm843, %v4568
      %4587 = vst.msk [vmem:[%s793 + $0x28] sm:$0xff] %vm843, %v4571
      %4588 = vst.msk [vmem:[%s793 + $0x30] sm:$0xff] %vm843, %v4576
      %4589 = vst.msk [vmem:[%s793 + $0x38] sm:$0xff] %vm843, %v4579
      %s4590 = smul.u32 8, %s37
      %p4591 = scmp.lt.s32.totalorder %s4590, 15
      %s4592 = scalar_select %p4591, %s4590, 15
      %s4593 = smul.addr %s4592, 8
      %s4594 = scalar_lea.vmem %s26, %s4593
      // Predicated region
      $region125: #{autoencoder_forward.1} parent=123 // pred_check
        %p4595 = pneg %p606
      $region126: #{autoencoder_forward.1} parent=123 // pred_check_branch
        %4597 = sbr.rel (%p4595) target = $region128
      $region127: #{autoencoder_forward.1} parent=123 // pred_region
        %s4598 = smul.u32 8, %s37
      $region128: #{autoencoder_forward.1} parent=123 // pred_fallthru
        _
    $region124: #{autoencoder_forward.1} parent=5 // pred_fallthru
      _
    %p4599 = scmp.le.s32.totalorder 2, %s32
    // Predicated region
    $region129: #{autoencoder_forward.1} parent=5 // pred_check
      %p4600 = pneg %p4599
    $region130: #{autoencoder_forward.1} parent=5 // pred_check_branch
      %4602 = sbr.rel (%p4600) target = $region132
    $region131: #{autoencoder_forward.1} parent=5 // pred_region
      %s4603 = ssub.s32 %s32, 2
      // Predicated region
      $region133: #{autoencoder_forward.1} parent=131 // pred_check
        %p4604 = pneg %p612
      $region134: #{autoencoder_forward.1} parent=131 // pred_check_branch
        %4606 = sbr.rel (%p4604) target = $region136
      $region135: #{autoencoder_forward.1} parent=131 // pred_region
        %s4607 = smul.u32 8, %s38
        %p4608 = scmp.lt.s32.totalorder %s4607, 15
        %s4609 = scalar_select %p4608, %s4607, 15
        %s4610 = smul.addr %s4609, 8
        %s4611 = scalar_lea.vmem %s26, %s4610
      $region136: #{autoencoder_forward.1} parent=131 // pred_fallthru
        _
    $region132: #{autoencoder_forward.1} parent=5 // pred_fallthru
      _
  $region6: #{autoencoder_forward.1} parent=0 // loop_footer
    %s36 = sadd.s32 1, %s32
  $region7: #{autoencoder_forward.1} parent=0 // loop_footer_branch
    %31 = sbr.rel target = $region3
  $region8: #{autoencoder_forward.1} parent=0 // loop_exit
    _

</llo_original>
